<compile_context>
chip_gen: v6e
topology: v6e:2x2x1
jax: 0.10.0
libtpu: 0.0.40
codegen_flags: <defaults>
</compile_context>

<pallas_src>
import functools
import math

import jax
import jax.numpy as jnp
from jax import lax
from jax.experimental import pallas as pl
from jax.experimental.pallas import tpu as pltpu

LN_EPS = 1e-5  # torch.nn.LayerNorm default


# ----------------------------------------------------------------------------
# In-kernel helpers
# ----------------------------------------------------------------------------
def _layernorm(z, g, b):
    """LayerNorm(z) over the last dim, f32 math."""
    mean = jnp.mean(z, axis=-1, keepdims=True)
    zc = z - mean
    var = jnp.mean(zc * zc, axis=-1, keepdims=True)
    return zc * lax.rsqrt(var + LN_EPS) * g + b


# ----------------------------------------------------------------------------
# Fused decoder-stack kernel: grid = (batch, layer); per-layer weights streamed,
# activation carried in VMEM scratch across the layer axis; final norm+projection
# fused into the last layer step.
# ----------------------------------------------------------------------------
def _decoder_stack_kernel(
    x_ref, cross_ref,
    sa_wqkv_ref, sa_bqkv_ref, sa_wo_ref, sa_bo_ref,
    ca_wq_ref, ca_bq_ref, ca_wkv_ref, ca_bkv_ref, ca_wo_ref, ca_bo_ref,
    w1_ref, b1_ref, w2_ref, b2_ref,
    ln1_g_ref, ln1_b_ref, ln2_g_ref, ln2_b_ref, ln3_g_ref, ln3_b_ref,
    norm_g_ref, norm_b_ref, proj_w_ref, proj_b_ref,
    o_ref,
    x_carry, q_scr, k_scr, v_scr, attn_scr,
    *, n_heads, matmul_dtype):
    wd = matmul_dtype
    layer = pl.program_id(1)
    last_layer = pl.num_programs(1) - 1

    L, D = x_carry.shape
    Lc = cross_ref.shape[1]
    Dh = D // n_heads
    scale = 1.0 / (Dh ** 0.5)

    # Load the batch-element activation into the carry at the first layer step.
    @pl.when(layer == 0)
    def _():
        x_carry[...] = x_ref[0]

    x = x_carry[...]          # (L, D)  f32 running activation
    cr = cross_ref[0]         # (Lc, D) f32

    def mm(a, w_ref, b_ref):
        # matmul operands in `wd` (bf16 on v5e/v6e/v7x MXU), f32 accumulate + f32 bias.
        return jnp.dot(a.astype(wd), w_ref[0].astype(wd),
                       preferred_element_type=jnp.float32) + b_ref[0]

    def attention(Lk, wo_ref, bo_ref, causal):
        """Multi-head attention; q/k/v are read from lane-dense VMEM scratch, heads are
        static Dh-wide lane slices, head outputs land in attn_scr, then ONE fused
        (L,D)@(D,D) output projection (concat(o_h) @ Wo == per-column writes + 1 matmul)."""
        if causal:
            row = lax.broadcasted_iota(jnp.int32, (L, Lk), 0)
            col = lax.broadcasted_iota(jnp.int32, (L, Lk), 1)
            neg = jnp.where(col <= row, 0.0, -1e30).astype(jnp.float32)
        # TODO(synk): at production L / n_heads this should be a fori_loop over heads with
        # flash-style (tq, tk) online-softmax tiling; per-head temporaries here retire into
        # the attn_scr store so live vreg state stays bounded.
        for h in range(n_heads):
            sl = slice(h * Dh, (h + 1) * Dh)
            s = lax.dot_general(q_scr[:, sl], k_scr[0:Lk, sl],
                                (((1,), (1,)), ((), ())),
                                preferred_element_type=jnp.float32)       # (L, Lk) f32
            if causal:
                s = s + neg
            s = s - jnp.max(s, axis=-1, keepdims=True)
            p = jnp.exp(s)
            p = p * pl.reciprocal(jnp.sum(p, axis=-1, keepdims=True), approx=True)
            attn_scr[:, sl] = jnp.dot(p.astype(wd), v_scr[0:Lk, sl],
                                      preferred_element_type=jnp.float32).astype(wd)
        return jnp.dot(attn_scr[...], wo_ref[0].astype(wd),
                       preferred_element_type=jnp.float32) + bo_ref[0]    # (L, D) f32

    # ---- self-attention (causal) + add & norm --------------------------------
    qkv = mm(x, sa_wqkv_ref, sa_bqkv_ref)                  # (L, 3D), fused QKV matmul
    q_scr[...] = (qkv[:, 0:D] * scale).astype(wd)          # fold 1/sqrt(Dh) into q
    k_scr[0:L, :] = qkv[:, D:2 * D].astype(wd)
    v_scr[0:L, :] = qkv[:, 2 * D:3 * D].astype(wd)
    x = _layernorm(x + attention(L, sa_wo_ref, sa_bo_ref, True),
                   ln1_g_ref[0], ln1_b_ref[0])

    # ---- cross-attention + add & norm ----------------------------------------
    q = mm(x, ca_wq_ref, ca_bq_ref)                        # (L, D)
    kv = mm(cr, ca_wkv_ref, ca_bkv_ref)                    # (Lc, 2D), fused K/V matmul
    q_scr[...] = (q * scale).astype(wd)
    k_scr[0:Lc, :] = kv[:, 0:D].astype(wd)
    v_scr[0:Lc, :] = kv[:, D:2 * D].astype(wd)
    x = _layernorm(x + attention(Lc, ca_wo_ref, ca_bo_ref, False),
                   ln2_g_ref[0], ln2_b_ref[0])

    # ---- position-wise FFN (Conv1d k=1 pair == Linear) + add & norm ----------
    y = jnp.maximum(mm(x, w1_ref, b1_ref), 0.0)
    y = mm(y, w2_ref, b2_ref)
    x = _layernorm(x + y, ln3_g_ref[0], ln3_b_ref[0])

    x_carry[...] = x                                       # carry to next layer step

    # ---- fused Decoder-level LayerNorm + projection (lane-dense padded c_out) ----
    @pl.when(layer == last_layer)
    def _():
        zn = _layernorm(x, norm_g_ref[...], norm_b_ref[...])
        yo = jnp.dot(zn.astype(wd), proj_w_ref[...].astype(wd),
                     preferred_element_type=jnp.float32) + proj_b_ref[...]
        o_ref[0] = yo.astype(o_ref.dtype)


# ----------------------------------------------------------------------------
# pallas_call wrapper: one call for the whole stack
# ----------------------------------------------------------------------------
_LAYER_KEYS = ("sa_wqkv", "sa_bqkv", "sa_wo", "sa_bo",
               "ca_wq", "ca_bq", "ca_wkv", "ca_bkv", "ca_wo", "ca_bo",
               "w1", "b1", "w2", "b2",
               "ln1_g", "ln1_b", "ln2_g", "ln2_b", "ln3_g", "ln3_b")
_CONST_KEYS = ("norm_g", "norm_b", "proj_w", "proj_b")


@functools.partial(jax.jit, static_argnames=("n_heads", "c_out", "matmul_dtype"))
def pallas_decoder_forward(packed, x, cross, *, n_heads, c_out, matmul_dtype):
    B, L, D = x.shape
    Lc = cross.shape[1]
    n_layers = packed["sa_wqkv"].shape[0]
    c_pad = packed["proj_w"].shape[1]
    Lkv = max(L, Lc)

    layer_args = [packed[k] for k in _LAYER_KEYS]
    const_args = [packed[k] for k in _CONST_KEYS]

    def layer_spec(a):
        # Layer-indexed weight block: streamed (double-buffered) along the layer axis.
        blk = (1,) + a.shape[1:]
        nz = len(blk) - 1
        return pl.BlockSpec(blk, lambda b, l: (l,) + (0,) * nz)

    def const_spec(a):
        # Grid-constant block: single-buffered (never changes its block index).
        nd = a.ndim
        return pl.BlockSpec(a.shape, lambda b, l: (0,) * nd,
                            pipeline_mode=pl.Buffered(1))

    # Explicit VMEM budget: 2x streamed per-layer weights + activations + scratch + margin.
    wd_bytes = jnp.dtype(matmul_dtype).itemsize
    layer_blk_bytes = sum(math.prod(a.shape[1:]) * a.dtype.itemsize for a in layer_args)
    const_bytes = sum(a.size * a.dtype.itemsize for a in const_args)
    act_bytes = (L * D + Lc * D) * 4 + L * c_pad * 4
    scratch_bytes = L * D * 4 + (2 * L + 2 * Lkv) * D * wd_bytes
    est = 2 * layer_blk_bytes + 2 * act_bytes + const_bytes + scratch_bytes + (8 << 20)
    vmem_limit = int(min(max(est, 32 << 20), 100 << 20))

    kernel = functools.partial(_decoder_stack_kernel,
                               n_heads=n_heads, matmul_dtype=matmul_dtype)
    out = pl.pallas_call(
        kernel,
        out_shape=jax.ShapeDtypeStruct((B, L, c_pad), jnp.float32),
        grid=(B, n_layers),
        in_specs=[
            pl.BlockSpec((1, L, D), lambda b, l: (b, 0, 0)),
            pl.BlockSpec((1, Lc, D), lambda b, l: (b, 0, 0)),
        ] + [layer_spec(a) for a in layer_args]
          + [const_spec(a) for a in const_args],
        out_specs=pl.BlockSpec((1, L, c_pad), lambda b, l: (b, 0, 0)),
        scratch_shapes=[
            pltpu.VMEM((L, D), jnp.float32),      # x carried across the layer axis
            pltpu.VMEM((L, D), matmul_dtype),     # q (pre-scaled)
            pltpu.VMEM((Lkv, D), matmul_dtype),   # k (self or cross)
            pltpu.VMEM((Lkv, D), matmul_dtype),   # v (self or cross)
            pltpu.VMEM((L, D), matmul_dtype),     # per-head outputs (pre O-proj)
        ],
        compiler_params=pltpu.CompilerParams(
            dimension_semantics=("parallel", "arbitrary"),  # batch split across v7x TCs
            vmem_limit_bytes=vmem_limit),
    )(x, cross, *layer_args, *const_args)
    return out[..., :c_out]   # drop the lane-dense padding of the projection output


# ----------------------------------------------------------------------------
# Parameter packing: stack per-layer weights along a leading layer axis, fuse
# QKV / KV weights, pad the projection to a lane-dense width, optionally cast
# matmul weights to bf16 (halves weight DMA bytes / VMEM on v5e/v6e/v7x).
# ----------------------------------------------------------------------------
def pack_params(params, matmul_dtype):
    wd = matmul_dtype
    f32 = jnp.float32

    def row(v):
        return v.reshape(1, -1).astype(f32)

    per = {k: [] for k in _LAYER_KEYS}
    for lp in params["layers"]:
        sa, ca = lp["self"], lp["cross"]
        per["sa_wqkv"].append(jnp.concatenate([sa["wq"], sa["wk"], sa["wv"]], axis=1).astype(wd))
        per["sa_bqkv"].append(row(jnp.concatenate([sa["bq"], sa["bk"], sa["bv"]])))
        per["sa_wo"].append(sa["wo"].astype(wd))
        per["sa_bo"].append(row(sa["bo"]))
        per["ca_wq"].append(ca["wq"].astype(wd))
        per["ca_bq"].append(row(ca["bq"]))
        per["ca_wkv"].append(jnp.concatenate([ca["wk"], ca["wv"]], axis=1).astype(wd))
        per["ca_bkv"].append(row(jnp.concatenate([ca["bk"], ca["bv"]])))
        per["ca_wo"].append(ca["wo"].astype(wd))
        per["ca_bo"].append(row(ca["bo"]))
        per["w1"].append(lp["w1"].astype(wd))
        per["b1"].append(row(lp["b1"]))
        per["w2"].append(lp["w2"].astype(wd))
        per["b2"].append(row(lp["b2"]))
        for nm in ("ln1", "ln2", "ln3"):
            per[nm + "_g"].append(row(lp[nm + "_g"]))
            per[nm + "_b"].append(row(lp[nm + "_b"]))
    packed = {k: jnp.stack(v, axis=0) for k, v in per.items()}

    D, c_out = params["proj_w"].shape
    c_pad = ((c_out + 127) // 128) * 128
    proj_w = jnp.zeros((D, c_pad), f32).at[:, :c_out].set(params["proj_w"]).astype(wd)
    proj_b = jnp.zeros((1, c_pad), f32).at[:, :c_out].set(params["proj_b"][None, :])
    packed.update(norm_g=row(params["norm_g"]), norm_b=row(params["norm_b"]),
                  proj_w=proj_w, proj_b=proj_b)
    return packed


# ----------------------------------------------------------------------------
# Plain-JAX f32 reference (same math, no Pallas) for correctness checking
# ----------------------------------------------------------------------------
def reference_forward(params, x, cross):
    H = params["n_heads"]
    B, L, D = x.shape
    Dh = D // H
    scale = 1.0 / (Dh ** 0.5)

    def attn(xq, xkv, p, causal):
        Lq, Lk = xq.shape[1], xkv.shape[1]
        q = (xq @ p["wq"] + p["bq"]).reshape(B, Lq, H, Dh).transpose(0, 2, 1, 3)
        k = (xkv @ p["wk"] + p["bk"]).reshape(B, Lk, H, Dh).transpose(0, 2, 1, 3)
        v = (xkv @ p["wv"] + p["bv"]).reshape(B, Lk, H, Dh).transpose(0, 2, 1, 3)
        s = jnp.einsum("bhqd,bhkd->bhqk", q, k) * scale
        if causal:
            mask = jnp.tril(jnp.ones((Lq, Lk), bool))
            s = jnp.where(mask, s, -1e30)
        pr = jax.nn.softmax(s, axis=-1)
        o = jnp.einsum("bhqk,bhkd->bhqd", pr, v).transpose(0, 2, 1, 3).reshape(B, Lq, D)
        return o @ p["wo"] + p["bo"]

    def ln(z, g, b):
        mean = z.mean(-1, keepdims=True)
        var = ((z - mean) ** 2).mean(-1, keepdims=True)
        return (z - mean) / jnp.sqrt(var + LN_EPS) * g + b

    for lp in params["layers"]:
        x = ln(x + attn(x, x, lp["self"], True), lp["ln1_g"], lp["ln1_b"])
        x = ln(x + attn(x, cross, lp["cross"], False), lp["ln2_g"], lp["ln2_b"])
        y = jnp.maximum(x @ lp["w1"] + lp["b1"], 0.0) @ lp["w2"] + lp["b2"]
        x = ln(x + y, lp["ln3_g"], lp["ln3_b"])
    x = ln(x, params["norm_g"], params["norm_b"])
    return x @ params["proj_w"] + params["proj_b"]


# ----------------------------------------------------------------------------
# Deterministic parameter initialization (shapes implied by the module)
# ----------------------------------------------------------------------------
def init_params(key, num_layers, d_model, n_heads, d_ff, c_out):
    def dense(k, fan_in, fan_out):
        k1, k2 = jax.random.split(k)
        bound = 1.0 / (fan_in ** 0.5)
        w = jax.random.uniform(k1, (fan_in, fan_out), jnp.float32, -bound, bound)
        b = jax.random.uniform(k2, (fan_out,), jnp.float32, -bound, bound)
        return w, b

    keys = jax.random.split(key, num_layers + 1)
    layers = []
    for lk in keys[:num_layers]:
        sub = jax.random.split(lk, 10)

        def attn_params(ks):
            wq, bq = dense(ks[0], d_model, d_model)
            wk, bk = dense(ks[1], d_model, d_model)
            wv, bv = dense(ks[2], d_model, d_model)
            wo, bo = dense(ks[3], d_model, d_model)
            return dict(wq=wq, bq=bq, wk=wk, bk=bk, wv=wv, bv=bv, wo=wo, bo=bo)

        w1, b1 = dense(sub[8], d_model, d_ff)
        w2, b2 = dense(sub[9], d_ff, d_model)
        layers.append(dict(
            self=attn_params(sub[0:4]),
            cross=attn_params(sub[4:8]),
            w1=w1, b1=b1, w2=w2, b2=b2,
            ln1_g=jnp.ones(d_model, jnp.float32), ln1_b=jnp.zeros(d_model, jnp.float32),
            ln2_g=jnp.ones(d_model, jnp.float32), ln2_b=jnp.zeros(d_model, jnp.float32),
            ln3_g=jnp.ones(d_model, jnp.float32), ln3_b=jnp.zeros(d_model, jnp.float32),
        ))
    proj_w, proj_b = dense(keys[-1], d_model, c_out)
    return dict(layers=layers, n_heads=n_heads,
                norm_g=jnp.ones(d_model, jnp.float32),
                norm_b=jnp.zeros(d_model, jnp.float32),
                proj_w=proj_w, proj_b=proj_b)


# ----------------------------------------------------------------------------
if __name__ == "__main__":
    B, L, Lc = 2, 8, 16
    d_model, n_heads, d_ff, c_out, n_layers = 32, 4, 64, 8, 2

    key = jax.random.PRNGKey(0)
    kp, kx, kc = jax.random.split(key, 3)
    params = init_params(kp, n_layers, d_model, n_heads, d_ff, c_out)
    x = jax.random.normal(kx, (B, L, d_model), jnp.float32)
    cross = jax.random.normal(kc, (B, Lc, d_model), jnp.float32)

    ref = reference_forward(params, x, cross)

    # f32 operands (matches PyTorch default dtype); check vs plain-JAX reference.
    packed_f32 = pack_params(params, jnp.float32)
    out = pallas_decoder_forward(packed_f32, x, cross,
                                 n_heads=n_heads, c_out=c_out, matmul_dtype=jnp.float32)
    out = jax.block_until_ready(out)
    assert out.shape == (B, L, c_out)
    assert jnp.allclose(out, ref, atol=1e-2, rtol=1e-2)

    # bf16 matmul operands (MXU path); softmax & LayerNorm stay in f32.
    # Relaxed-tolerance comparison against the f32 reference (not just finiteness).
    packed_bf16 = pack_params(params, jnp.bfloat16)
    out_bf16 = pallas_decoder_forward(packed_bf16, x, cross,
                                      n_heads=n_heads, c_out=c_out,
                                      matmul_dtype=jnp.bfloat16)
    out_bf16 = jax.block_until_ready(out_bf16)
    assert out_bf16.shape == (B, L, c_out)
    assert bool(jnp.isfinite(out_bf16).all())
    assert jnp.allclose(out_bf16, ref, atol=5e-2, rtol=5e-2)

    print("KERNEL_OK")
</pallas_src>

<mosaic_0001>
module attributes {stable_mosaic.version = 11 : i64} {
  func.func @_decoder_stack_kernel(%arg0: i32, %arg1: i32, %arg2: memref<1x8x32xf32, #tpu.memory_space<vmem>>, %arg3: memref<1x16x32xf32, #tpu.memory_space<vmem>>, %arg4: memref<1x32x96xf32, #tpu.memory_space<vmem>>, %arg5: memref<1x1x96xf32, #tpu.memory_space<vmem>>, %arg6: memref<1x32x32xf32, #tpu.memory_space<vmem>>, %arg7: memref<1x1x32xf32, #tpu.memory_space<vmem>>, %arg8: memref<1x32x32xf32, #tpu.memory_space<vmem>>, %arg9: memref<1x1x32xf32, #tpu.memory_space<vmem>>, %arg10: memref<1x32x64xf32, #tpu.memory_space<vmem>>, %arg11: memref<1x1x64xf32, #tpu.memory_space<vmem>>, %arg12: memref<1x32x32xf32, #tpu.memory_space<vmem>>, %arg13: memref<1x1x32xf32, #tpu.memory_space<vmem>>, %arg14: memref<1x32x64xf32, #tpu.memory_space<vmem>>, %arg15: memref<1x1x64xf32, #tpu.memory_space<vmem>>, %arg16: memref<1x64x32xf32, #tpu.memory_space<vmem>>, %arg17: memref<1x1x32xf32, #tpu.memory_space<vmem>>, %arg18: memref<1x1x32xf32, #tpu.memory_space<vmem>>, %arg19: memref<1x1x32xf32, #tpu.memory_space<vmem>>, %arg20: memref<1x1x32xf32, #tpu.memory_space<vmem>>, %arg21: memref<1x1x32xf32, #tpu.memory_space<vmem>>, %arg22: memref<1x1x32xf32, #tpu.memory_space<vmem>>, %arg23: memref<1x1x32xf32, #tpu.memory_space<vmem>>, %arg24: memref<1x32xf32, #tpu.memory_space<vmem>>, %arg25: memref<1x32xf32, #tpu.memory_space<vmem>>, %arg26: memref<32x128xf32, #tpu.memory_space<vmem>>, %arg27: memref<1x128xf32, #tpu.memory_space<vmem>>, %arg28: memref<1x8x128xf32, #tpu.memory_space<vmem>>, %arg29: memref<8x32xf32, #tpu.memory_space<vmem>>, %arg30: memref<8x32xf32, #tpu.memory_space<vmem>>, %arg31: memref<16x32xf32, #tpu.memory_space<vmem>>, %arg32: memref<16x32xf32, #tpu.memory_space<vmem>>, %arg33: memref<8x32xf32, #tpu.memory_space<vmem>>) attributes {dimension_semantics = [#tpu.dimension_semantics<parallel>, #tpu.dimension_semantics<arbitrary>], iteration_bounds = array<i64: 2, 2>, scalar_prefetch = 0 : i64, scratch_operands = 5 : i64, tpu.core_type = #tpu.core_type<tc>, window_params = [{transform_indices = @transform_0, window_bounds = array<i64: 1, 8, 32>}, {transform_indices = @transform_1, window_bounds = array<i64: 1, 16, 32>}, {transform_indices = @transform_2, window_bounds = array<i64: 1, 32, 96>}, {transform_indices = @transform_3, window_bounds = array<i64: 1, 1, 96>}, {transform_indices = @transform_4, window_bounds = array<i64: 1, 32, 32>}, {transform_indices = @transform_5, window_bounds = array<i64: 1, 1, 32>}, {transform_indices = @transform_6, window_bounds = array<i64: 1, 32, 32>}, {transform_indices = @transform_7, window_bounds = array<i64: 1, 1, 32>}, {transform_indices = @transform_8, window_bounds = array<i64: 1, 32, 64>}, {transform_indices = @transform_9, window_bounds = array<i64: 1, 1, 64>}, {transform_indices = @transform_10, window_bounds = array<i64: 1, 32, 32>}, {transform_indices = @transform_11, window_bounds = array<i64: 1, 1, 32>}, {transform_indices = @transform_12, window_bounds = array<i64: 1, 32, 64>}, {transform_indices = @transform_13, window_bounds = array<i64: 1, 1, 64>}, {transform_indices = @transform_14, window_bounds = array<i64: 1, 64, 32>}, {transform_indices = @transform_15, window_bounds = array<i64: 1, 1, 32>}, {transform_indices = @transform_16, window_bounds = array<i64: 1, 1, 32>}, {transform_indices = @transform_17, window_bounds = array<i64: 1, 1, 32>}, {transform_indices = @transform_18, window_bounds = array<i64: 1, 1, 32>}, {transform_indices = @transform_19, window_bounds = array<i64: 1, 1, 32>}, {transform_indices = @transform_20, window_bounds = array<i64: 1, 1, 32>}, {transform_indices = @transform_21, window_bounds = array<i64: 1, 1, 32>}, {pipeline_mode = #tpu.pipeline_mode<synchronous>, transform_indices = @transform_22, window_bounds = array<i64: 1, 32>}, {pipeline_mode = #tpu.pipeline_mode<synchronous>, transform_indices = @transform_23, window_bounds = array<i64: 1, 32>}, {pipeline_mode = #tpu.pipeline_mode<synchronous>, transform_indices = @transform_24, window_bounds = array<i64: 32, 128>}, {pipeline_mode = #tpu.pipeline_mode<synchronous>, transform_indices = @transform_25, window_bounds = array<i64: 1, 128>}, {transform_indices = @transform_26, window_bounds = array<i64: 1, 8, 128>}]} {
    %c0_i32 = arith.constant 0 : i32
    %0 = arith.cmpi eq, %arg1, %c0_i32 : i32
    %1 = arith.extui %0 : i1 to i32
    %c0_i32_0 = arith.constant 0 : i32
    %2 = arith.cmpi ne, %1, %c0_i32_0 : i32
    scf.if %2 {
      %c0_203 = arith.constant 0 : index
      %c0_204 = arith.constant 0 : index
      %c0_205 = arith.constant 0 : index
      %291 = vector.load %arg2[%c0_203, %c0_204, %c0_205] : memref<1x8x32xf32, #tpu.memory_space<vmem>>, vector<1x8x32xf32>
      %292 = vector.shape_cast %291 : vector<1x8x32xf32> to vector<8x32xf32>
      %c0_206 = arith.constant 0 : index
      %c0_207 = arith.constant 0 : index
      %293 = vector.load %arg29[%c0_206, %c0_207] : memref<8x32xf32, #tpu.memory_space<vmem>>, vector<8x32xf32>
      tpu.vector_store %arg29[%c0_206, %c0_207], %292 {strides = array<i32>} : memref<8x32xf32, #tpu.memory_space<vmem>>, vector<8x32xf32>,
    } else {
    }
    %c0 = arith.constant 0 : index
    %c0_1 = arith.constant 0 : index
    %3 = vector.load %arg29[%c0, %c0_1] : memref<8x32xf32, #tpu.memory_space<vmem>>, vector<8x32xf32>
    %c0_2 = arith.constant 0 : index
    %c0_3 = arith.constant 0 : index
    %c0_4 = arith.constant 0 : index
    %4 = vector.load %arg3[%c0_2, %c0_3, %c0_4] : memref<1x16x32xf32, #tpu.memory_space<vmem>>, vector<1x16x32xf32>
    %5 = vector.shape_cast %4 : vector<1x16x32xf32> to vector<16x32xf32>
    %c0_5 = arith.constant 0 : index
    %c0_6 = arith.constant 0 : index
    %c0_7 = arith.constant 0 : index
    %6 = vector.load %arg4[%c0_5, %c0_6, %c0_7] : memref<1x32x96xf32, #tpu.memory_space<vmem>>, vector<1x32x96xf32>
    %7 = vector.shape_cast %6 : vector<1x32x96xf32> to vector<32x96xf32>
    %cst = arith.constant dense<0.000000e+00> : vector<8x96xf32>
    %8 = tpu.matmul %3, %7, %cst {dimension_numbers = #tpu.dot_dimension_numbers<[1], [0], [0], [1], [0, 0, 1, 1], [], []>} : vector<8x32xf32>, vector<32x96xf32>, vector<8x96xf32> -> vector<8x96xf32>
    %c0_8 = arith.constant 0 : index
    %c0_9 = arith.constant 0 : index
    %c0_10 = arith.constant 0 : index
    %9 = vector.load %arg5[%c0_8, %c0_9, %c0_10] : memref<1x1x96xf32, #tpu.memory_space<vmem>>, vector<1x1x96xf32>
    %10 = vector.shape_cast %9 : vector<1x1x96xf32> to vector<1x96xf32>
    %11 = vector.broadcast %10 : vector<1x96xf32> to vector<8x96xf32>
    %12 = arith.addf %8, %11 : vector<8x96xf32>
    %13 = vector.extract_strided_slice %12 {offsets = [0, 0], sizes = [8, 32], strides = [1, 1]} : vector<8x96xf32> to vector<8x32xf32>
    %cst_11 = arith.constant 0.353553385 : f32
    %14 = vector.broadcast %cst_11 : f32 to vector<8x32xf32>
    %15 = arith.mulf %13, %14 : vector<8x32xf32>
    %c0_12 = arith.constant 0 : index
    %c0_13 = arith.constant 0 : index
    %16 = vector.load %arg30[%c0_12, %c0_13] : memref<8x32xf32, #tpu.memory_space<vmem>>, vector<8x32xf32>
    tpu.vector_store %arg30[%c0_12, %c0_13], %15 {strides = array<i32>} : memref<8x32xf32, #tpu.memory_space<vmem>>, vector<8x32xf32>,
    %17 = vector.extract_strided_slice %12 {offsets = [0, 32], sizes = [8, 32], strides = [1, 1]} : vector<8x96xf32> to vector<8x32xf32>
    %c0_14 = arith.constant 0 : index
    %c0_15 = arith.constant 0 : index
    %18 = vector.load %arg31[%c0_14, %c0_15] : memref<16x32xf32, #tpu.memory_space<vmem>>, vector<8x32xf32>
    tpu.vector_store %arg31[%c0_14, %c0_15], %17 {strides = array<i32>} : memref<16x32xf32, #tpu.memory_space<vmem>>, vector<8x32xf32>,
    %19 = vector.extract_strided_slice %12 {offsets = [0, 64], sizes = [8, 32], strides = [1, 1]} : vector<8x96xf32> to vector<8x32xf32>
    %c0_16 = arith.constant 0 : index
    %c0_17 = arith.constant 0 : index
    %20 = vector.load %arg32[%c0_16, %c0_17] : memref<16x32xf32, #tpu.memory_space<vmem>>, vector<8x32xf32>
    tpu.vector_store %arg32[%c0_16, %c0_17], %19 {strides = array<i32>} : memref<16x32xf32, #tpu.memory_space<vmem>>, vector<8x32xf32>,
    %21 = tpu.iota {dimensions = array<i32: 0>} : vector<8x8xi32>
    %22 = tpu.iota {dimensions = array<i32: 1>} : vector<8x8xi32>
    %23 = arith.cmpi sle, %22, %21 : vector<8x8xi32>
    %cst_18 = arith.constant 0.000000e+00 : f32
    %cst_19 = arith.constant -1.000000e+30 : f32
    %24 = vector.broadcast %cst_18 : f32 to vector<8x8xf32>
    %25 = vector.broadcast %cst_19 : f32 to vector<8x8xf32>
    %26 = arith.select %23, %24, %25 : vector<8x8xi1>, vector<8x8xf32>
    %c0_20 = arith.constant 0 : index
    %c0_21 = arith.constant 0 : index
    %27 = vector.load %arg30[%c0_20, %c0_21] : memref<8x32xf32, #tpu.memory_space<vmem>>, vector<8x8xf32>
    %c0_22 = arith.constant 0 : index
    %c0_23 = arith.constant 0 : index
    %28 = vector.load %arg31[%c0_22, %c0_23] : memref<16x32xf32, #tpu.memory_space<vmem>>, vector<8x8xf32>
    %cst_24 = arith.constant dense<0.000000e+00> : vector<8x8xf32>
    %29 = tpu.matmul %27, %28, %cst_24 {dimension_numbers = #tpu.dot_dimension_numbers<[1], [1], [0], [0], [0, 0, 1, 0], [], []>} : vector<8x8xf32>, vector<8x8xf32>, vector<8x8xf32> -> vector<8x8xf32>
    %30 = arith.addf %29, %26 : vector<8x8xf32>
    %cst_25 = arith.constant dense<0xFF800000> : vector<8xf32>
    %31 = vector.multi_reduction <maximumf>, %30, %cst_25 [1] : vector<8x8xf32> to vector<8xf32>
    %32 = vector.shape_cast %31 : vector<8xf32> to vector<8x1xf32>
    %33 = vector.broadcast %32 : vector<8x1xf32> to vector<8x8xf32>
    %34 = arith.subf %30, %33 : vector<8x8xf32>
    %35 = math.exp %34 : vector<8x8xf32>
    %cst_26 = arith.constant dense<0.000000e+00> : vector<8xf32>
    %36 = vector.multi_reduction <add>, %35, %cst_26 [1] : vector<8x8xf32> to vector<8xf32>
    %37 = vector.shape_cast %36 : vector<8xf32> to vector<8x1xf32>
    %38 = tpu.reciprocal %37 {approx = true} : vector<8x1xf32> -> vector<8x1xf32>
    %39 = vector.broadcast %38 : vector<8x1xf32> to vector<8x8xf32>
    %40 = arith.mulf %35, %39 : vector<8x8xf32>
    %c0_27 = arith.constant 0 : index
    %c0_28 = arith.constant 0 : index
    %41 = vector.load %arg32[%c0_27, %c0_28] : memref<16x32xf32, #tpu.memory_space<vmem>>, vector<8x8xf32>
    %cst_29 = arith.constant dense<0.000000e+00> : vector<8x8xf32>
    %42 = tpu.matmul %40, %41, %cst_29 {dimension_numbers = #tpu.dot_dimension_numbers<[1], [0], [0], [1], [0, 0, 1, 1], [], []>} : vector<8x8xf32>, vector<8x8xf32>, vector<8x8xf32> -> vector<8x8xf32>
    %c0_30 = arith.constant 0 : index
    %c0_31 = arith.constant 0 : index
    %43 = vector.load %arg33[%c0_30, %c0_31] : memref<8x32xf32, #tpu.memory_space<vmem>>, vector<8x8xf32>
    tpu.vector_store %arg33[%c0_30, %c0_31], %42 {strides = array<i32>} : memref<8x32xf32, #tpu.memory_space<vmem>>, vector<8x8xf32>,
    %c0_32 = arith.constant 0 : index
    %c8 = arith.constant 8 : index
    %44 = vector.load %arg30[%c0_32, %c8] : memref<8x32xf32, #tpu.memory_space<vmem>>, vector<8x8xf32>
    %c0_33 = arith.constant 0 : index
    %c8_34 = arith.constant 8 : index
    %45 = vector.load %arg31[%c0_33, %c8_34] : memref<16x32xf32, #tpu.memory_space<vmem>>, vector<8x8xf32>
    %cst_35 = arith.constant dense<0.000000e+00> : vector<8x8xf32>
    %46 = tpu.matmul %44, %45, %cst_35 {dimension_numbers = #tpu.dot_dimension_numbers<[1], [1], [0], [0], [0, 0, 1, 0], [], []>} : vector<8x8xf32>, vector<8x8xf32>, vector<8x8xf32> -> vector<8x8xf32>
    %47 = arith.addf %46, %26 : vector<8x8xf32>
    %cst_36 = arith.constant dense<0xFF800000> : vector<8xf32>
    %48 = vector.multi_reduction <maximumf>, %47, %cst_36 [1] : vector<8x8xf32> to vector<8xf32>
    %49 = vector.shape_cast %48 : vector<8xf32> to vector<8x1xf32>
    %50 = vector.broadcast %49 : vector<8x1xf32> to vector<8x8xf32>
    %51 = arith.subf %47, %50 : vector<8x8xf32>
    %52 = math.exp %51 : vector<8x8xf32>
    %cst_37 = arith.constant dense<0.000000e+00> : vector<8xf32>
    %53 = vector.multi_reduction <add>, %52, %cst_37 [1] : vector<8x8xf32> to vector<8xf32>
    %54 = vector.shape_cast %53 : vector<8xf32> to vector<8x1xf32>
    %55 = tpu.reciprocal %54 {approx = true} : vector<8x1xf32> -> vector<8x1xf32>
    %56 = vector.broadcast %55 : vector<8x1xf32> to vector<8x8xf32>
    %57 = arith.mulf %52, %56 : vector<8x8xf32>
    %c0_38 = arith.constant 0 : index
    %c8_39 = arith.constant 8 : index
    %58 = vector.load %arg32[%c0_38, %c8_39] : memref<16x32xf32, #tpu.memory_space<vmem>>, vector<8x8xf32>
    %cst_40 = arith.constant dense<0.000000e+00> : vector<8x8xf32>
    %59 = tpu.matmul %57, %58, %cst_40 {dimension_numbers = #tpu.dot_dimension_numbers<[1], [0], [0], [1], [0, 0, 1, 1], [], []>} : vector<8x8xf32>, vector<8x8xf32>, vector<8x8xf32> -> vector<8x8xf32>
    %c0_41 = arith.constant 0 : index
    %c8_42 = arith.constant 8 : index
    %60 = vector.load %arg33[%c0_41, %c8_42] : memref<8x32xf32, #tpu.memory_space<vmem>>, vector<8x8xf32>
    tpu.vector_store %arg33[%c0_41, %c8_42], %59 {strides = array<i32>} : memref<8x32xf32, #tpu.memory_space<vmem>>, vector<8x8xf32>,
    %c0_43 = arith.constant 0 : index
    %c16 = arith.constant 16 : index
    %61 = vector.load %arg30[%c0_43, %c16] : memref<8x32xf32, #tpu.memory_space<vmem>>, vector<8x8xf32>
    %c0_44 = arith.constant 0 : index
    %c16_45 = arith.constant 16 : index
    %62 = vector.load %arg31[%c0_44, %c16_45] : memref<16x32xf32, #tpu.memory_space<vmem>>, vector<8x8xf32>
    %cst_46 = arith.constant dense<0.000000e+00> : vector<8x8xf32>
    %63 = tpu.matmul %61, %62, %cst_46 {dimension_numbers = #tpu.dot_dimension_numbers<[1], [1], [0], [0], [0, 0, 1, 0], [], []>} : vector<8x8xf32>, vector<8x8xf32>, vector<8x8xf32> -> vector<8x8xf32>
    %64 = arith.addf %63, %26 : vector<8x8xf32>
    %cst_47 = arith.constant dense<0xFF800000> : vector<8xf32>
    %65 = vector.multi_reduction <maximumf>, %64, %cst_47 [1] : vector<8x8xf32> to vector<8xf32>
    %66 = vector.shape_cast %65 : vector<8xf32> to vector<8x1xf32>
    %67 = vector.broadcast %66 : vector<8x1xf32> to vector<8x8xf32>
    %68 = arith.subf %64, %67 : vector<8x8xf32>
    %69 = math.exp %68 : vector<8x8xf32>
    %cst_48 = arith.constant dense<0.000000e+00> : vector<8xf32>
    %70 = vector.multi_reduction <add>, %69, %cst_48 [1] : vector<8x8xf32> to vector<8xf32>
    %71 = vector.shape_cast %70 : vector<8xf32> to vector<8x1xf32>
    %72 = tpu.reciprocal %71 {approx = true} : vector<8x1xf32> -> vector<8x1xf32>
    %73 = vector.broadcast %72 : vector<8x1xf32> to vector<8x8xf32>
    %74 = arith.mulf %69, %73 : vector<8x8xf32>
    %c0_49 = arith.constant 0 : index
    %c16_50 = arith.constant 16 : index
    %75 = vector.load %arg32[%c0_49, %c16_50] : memref<16x32xf32, #tpu.memory_space<vmem>>, vector<8x8xf32>
    %cst_51 = arith.constant dense<0.000000e+00> : vector<8x8xf32>
    %76 = tpu.matmul %74, %75, %cst_51 {dimension_numbers = #tpu.dot_dimension_numbers<[1], [0], [0], [1], [0, 0, 1, 1], [], []>} : vector<8x8xf32>, vector<8x8xf32>, vector<8x8xf32> -> vector<8x8xf32>
    %c0_52 = arith.constant 0 : index
    %c16_53 = arith.constant 16 : index
    %77 = vector.load %arg33[%c0_52, %c16_53] : memref<8x32xf32, #tpu.memory_space<vmem>>, vector<8x8xf32>
    tpu.vector_store %arg33[%c0_52, %c16_53], %76 {strides = array<i32>} : memref<8x32xf32, #tpu.memory_space<vmem>>, vector<8x8xf32>,
    %c0_54 = arith.constant 0 : index
    %c24 = arith.constant 24 : index
    %78 = vector.load %arg30[%c0_54, %c24] : memref<8x32xf32, #tpu.memory_space<vmem>>, vector<8x8xf32>
    %c0_55 = arith.constant 0 : index
    %c24_56 = arith.constant 24 : index
    %79 = vector.load %arg31[%c0_55, %c24_56] : memref<16x32xf32, #tpu.memory_space<vmem>>, vector<8x8xf32>
    %cst_57 = arith.constant dense<0.000000e+00> : vector<8x8xf32>
    %80 = tpu.matmul %78, %79, %cst_57 {dimension_numbers = #tpu.dot_dimension_numbers<[1], [1], [0], [0], [0, 0, 1, 0], [], []>} : vector<8x8xf32>, vector<8x8xf32>, vector<8x8xf32> -> vector<8x8xf32>
    %81 = arith.addf %80, %26 : vector<8x8xf32>
    %cst_58 = arith.constant dense<0xFF800000> : vector<8xf32>
    %82 = vector.multi_reduction <maximumf>, %81, %cst_58 [1] : vector<8x8xf32> to vector<8xf32>
    %83 = vector.shape_cast %82 : vector<8xf32> to vector<8x1xf32>
    %84 = vector.broadcast %83 : vector<8x1xf32> to vector<8x8xf32>
    %85 = arith.subf %81, %84 : vector<8x8xf32>
    %86 = math.exp %85 : vector<8x8xf32>
    %cst_59 = arith.constant dense<0.000000e+00> : vector<8xf32>
    %87 = vector.multi_reduction <add>, %86, %cst_59 [1] : vector<8x8xf32> to vector<8xf32>
    %88 = vector.shape_cast %87 : vector<8xf32> to vector<8x1xf32>
    %89 = tpu.reciprocal %88 {approx = true} : vector<8x1xf32> -> vector<8x1xf32>
    %90 = vector.broadcast %89 : vector<8x1xf32> to vector<8x8xf32>
    %91 = arith.mulf %86, %90 : vector<8x8xf32>
    %c0_60 = arith.constant 0 : index
    %c24_61 = arith.constant 24 : index
    %92 = vector.load %arg32[%c0_60, %c24_61] : memref<16x32xf32, #tpu.memory_space<vmem>>, vector<8x8xf32>
    %cst_62 = arith.constant dense<0.000000e+00> : vector<8x8xf32>
    %93 = tpu.matmul %91, %92, %cst_62 {dimension_numbers = #tpu.dot_dimension_numbers<[1], [0], [0], [1], [0, 0, 1, 1], [], []>} : vector<8x8xf32>, vector<8x8xf32>, vector<8x8xf32> -> vector<8x8xf32>
    %c0_63 = arith.constant 0 : index
    %c24_64 = arith.constant 24 : index
    %94 = vector.load %arg33[%c0_63, %c24_64] : memref<8x32xf32, #tpu.memory_space<vmem>>, vector<8x8xf32>
    tpu.vector_store %arg33[%c0_63, %c24_64], %93 {strides = array<i32>} : memref<8x32xf32, #tpu.memory_space<vmem>>, vector<8x8xf32>,
    %c0_65 = arith.constant 0 : index
    %c0_66 = arith.constant 0 : index
    %95 = vector.load %arg33[%c0_65, %c0_66] : memref<8x32xf32, #tpu.memory_space<vmem>>, vector<8x32xf32>
    %c0_67 = arith.constant 0 : index
    %c0_68 = arith.constant 0 : index
    %c0_69 = arith.constant 0 : index
    %96 = vector.load %arg6[%c0_67, %c0_68, %c0_69] : memref<1x32x32xf32, #tpu.memory_space<vmem>>, vector<1x32x32xf32>
    %97 = vector.shape_cast %96 : vector<1x32x32xf32> to vector<32x32xf32>
    %cst_70 = arith.constant dense<0.000000e+00> : vector<8x32xf32>
    %98 = tpu.matmul %95, %97, %cst_70 {dimension_numbers = #tpu.dot_dimension_numbers<[1], [0], [0], [1], [0, 0, 1, 1], [], []>} : vector<8x32xf32>, vector<32x32xf32>, vector<8x32xf32> -> vector<8x32xf32>
    %c0_71 = arith.constant 0 : index
    %c0_72 = arith.constant 0 : index
    %c0_73 = arith.constant 0 : index
    %99 = vector.load %arg7[%c0_71, %c0_72, %c0_73] : memref<1x1x32xf32, #tpu.memory_space<vmem>>, vector<1x1x32xf32>
    %100 = vector.shape_cast %99 : vector<1x1x32xf32> to vector<1x32xf32>
    %101 = vector.broadcast %100 : vector<1x32xf32> to vector<8x32xf32>
    %102 = arith.addf %98, %101 : vector<8x32xf32>
    %103 = arith.addf %3, %102 : vector<8x32xf32>
    %c0_74 = arith.constant 0 : index
    %c0_75 = arith.constant 0 : index
    %c0_76 = arith.constant 0 : index
    %104 = vector.load %arg18[%c0_74, %c0_75, %c0_76] : memref<1x1x32xf32, #tpu.memory_space<vmem>>, vector<1x1x32xf32>
    %105 = vector.shape_cast %104 : vector<1x1x32xf32> to vector<1x32xf32>
    %c0_77 = arith.constant 0 : index
    %c0_78 = arith.constant 0 : index
    %c0_79 = arith.constant 0 : index
    %106 = vector.load %arg19[%c0_77, %c0_78, %c0_79] : memref<1x1x32xf32, #tpu.memory_space<vmem>>, vector<1x1x32xf32>
    %107 = vector.shape_cast %106 : vector<1x1x32xf32> to vector<1x32xf32>
    %cst_80 = arith.constant dense<0.000000e+00> : vector<8xf32>
    %108 = vector.multi_reduction <add>, %103, %cst_80 [1] : vector<8x32xf32> to vector<8xf32>
    %109 = vector.shape_cast %108 : vector<8xf32> to vector<8x1xf32>
    %cst_81 = arith.constant 3.200000e+01 : f32
    %110 = vector.broadcast %cst_81 : f32 to vector<8x1xf32>
    %111 = arith.divf %109, %110 : vector<8x1xf32>
    %112 = vector.broadcast %111 : vector<8x1xf32> to vector<8x32xf32>
    %113 = arith.subf %103, %112 : vector<8x32xf32>
    %114 = arith.mulf %113, %113 : vector<8x32xf32>
    %cst_82 = arith.constant dense<0.000000e+00> : vector<8xf32>
    %115 = vector.multi_reduction <add>, %114, %cst_82 [1] : vector<8x32xf32> to vector<8xf32>
    %116 = vector.shape_cast %115 : vector<8xf32> to vector<8x1xf32>
    %cst_83 = arith.constant 3.200000e+01 : f32
    %117 = vector.broadcast %cst_83 : f32 to vector<8x1xf32>
    %118 = arith.divf %116, %117 : vector<8x1xf32>
    %cst_84 = arith.constant 9.99999974E-6 : f32
    %119 = vector.broadcast %cst_84 : f32 to vector<8x1xf32>
    %120 = arith.addf %118, %119 : vector<8x1xf32>
    %121 = math.rsqrt %120 : vector<8x1xf32>
    %122 = vector.broadcast %121 : vector<8x1xf32> to vector<8x32xf32>
    %123 = arith.mulf %113, %122 : vector<8x32xf32>
    %124 = vector.broadcast %105 : vector<1x32xf32> to vector<8x32xf32>
    %125 = arith.mulf %123, %124 : vector<8x32xf32>
    %126 = vector.broadcast %107 : vector<1x32xf32> to vector<8x32xf32>
    %127 = arith.addf %125, %126 : vector<8x32xf32>
    %c0_85 = arith.constant 0 : index
    %c0_86 = arith.constant 0 : index
    %c0_87 = arith.constant 0 : index
    %128 = vector.load %arg8[%c0_85, %c0_86, %c0_87] : memref<1x32x32xf32, #tpu.memory_space<vmem>>, vector<1x32x32xf32>
    %129 = vector.shape_cast %128 : vector<1x32x32xf32> to vector<32x32xf32>
    %cst_88 = arith.constant dense<0.000000e+00> : vector<8x32xf32>
    %130 = tpu.matmul %127, %129, %cst_88 {dimension_numbers = #tpu.dot_dimension_numbers<[1], [0], [0], [1], [0, 0, 1, 1], [], []>} : vector<8x32xf32>, vector<32x32xf32>, vector<8x32xf32> -> vector<8x32xf32>
    %c0_89 = arith.constant 0 : index
    %c0_90 = arith.constant 0 : index
    %c0_91 = arith.constant 0 : index
    %131 = vector.load %arg9[%c0_89, %c0_90, %c0_91] : memref<1x1x32xf32, #tpu.memory_space<vmem>>, vector<1x1x32xf32>
    %132 = vector.shape_cast %131 : vector<1x1x32xf32> to vector<1x32xf32>
    %133 = vector.broadcast %132 : vector<1x32xf32> to vector<8x32xf32>
    %134 = arith.addf %130, %133 : vector<8x32xf32>
    %c0_92 = arith.constant 0 : index
    %c0_93 = arith.constant 0 : index
    %c0_94 = arith.constant 0 : index
    %135 = vector.load %arg10[%c0_92, %c0_93, %c0_94] : memref<1x32x64xf32, #tpu.memory_space<vmem>>, vector<1x32x64xf32>
    %136 = vector.shape_cast %135 : vector<1x32x64xf32> to vector<32x64xf32>
    %cst_95 = arith.constant dense<0.000000e+00> : vector<16x64xf32>
    %137 = tpu.matmul %5, %136, %cst_95 {dimension_numbers = #tpu.dot_dimension_numbers<[1], [0], [0], [1], [0, 0, 1, 1], [], []>} : vector<16x32xf32>, vector<32x64xf32>, vector<16x64xf32> -> vector<16x64xf32>
    %c0_96 = arith.constant 0 : index
    %c0_97 = arith.constant 0 : index
    %c0_98 = arith.constant 0 : index
    %138 = vector.load %arg11[%c0_96, %c0_97, %c0_98] : memref<1x1x64xf32, #tpu.memory_space<vmem>>, vector<1x1x64xf32>
    %139 = vector.shape_cast %138 : vector<1x1x64xf32> to vector<1x64xf32>
    %140 = vector.broadcast %139 : vector<1x64xf32> to vector<16x64xf32>
    %141 = arith.addf %137, %140 : vector<16x64xf32>
    %cst_99 = arith.constant 0.353553385 : f32
    %142 = vector.broadcast %cst_99 : f32 to vector<8x32xf32>
    %143 = arith.mulf %134, %142 : vector<8x32xf32>
    %c0_100 = arith.constant 0 : index
    %c0_101 = arith.constant 0 : index
    %144 = vector.load %arg30[%c0_100, %c0_101] : memref<8x32xf32, #tpu.memory_space<vmem>>, vector<8x32xf32>
    tpu.vector_store %arg30[%c0_100, %c0_101], %143 {strides = array<i32>} : memref<8x32xf32, #tpu.memory_space<vmem>>, vector<8x32xf32>,
    %145 = vector.extract_strided_slice %141 {offsets = [0, 0], sizes = [16, 32], strides = [1, 1]} : vector<16x64xf32> to vector<16x32xf32>
    %c0_102 = arith.constant 0 : index
    %c0_103 = arith.constant 0 : index
    %146 = vector.load %arg31[%c0_102, %c0_103] : memref<16x32xf32, #tpu.memory_space<vmem>>, vector<16x32xf32>
    tpu.vector_store %arg31[%c0_102, %c0_103], %145 {strides = array<i32>} : memref<16x32xf32, #tpu.memory_space<vmem>>, vector<16x32xf32>,
    %147 = vector.extract_strided_slice %141 {offsets = [0, 32], sizes = [16, 32], strides = [1, 1]} : vector<16x64xf32> to vector<16x32xf32>
    %c0_104 = arith.constant 0 : index
    %c0_105 = arith.constant 0 : index
    %148 = vector.load %arg32[%c0_104, %c0_105] : memref<16x32xf32, #tpu.memory_space<vmem>>, vector<16x32xf32>
    tpu.vector_store %arg32[%c0_104, %c0_105], %147 {strides = array<i32>} : memref<16x32xf32, #tpu.memory_space<vmem>>, vector<16x32xf32>,
    %c0_106 = arith.constant 0 : index
    %c0_107 = arith.constant 0 : index
    %149 = vector.load %arg30[%c0_106, %c0_107] : memref<8x32xf32, #tpu.memory_space<vmem>>, vector<8x8xf32>
    %c0_108 = arith.constant 0 : index
    %c0_109 = arith.constant 0 : index
    %150 = vector.load %arg31[%c0_108, %c0_109] : memref<16x32xf32, #tpu.memory_space<vmem>>, vector<16x8xf32>
    %cst_110 = arith.constant dense<0.000000e+00> : vector<8x16xf32>
    %151 = tpu.matmul %149, %150, %cst_110 {dimension_numbers = #tpu.dot_dimension_numbers<[1], [1], [0], [0], [0, 0, 1, 0], [], []>} : vector<8x8xf32>, vector<16x8xf32>, vector<8x16xf32> -> vector<8x16xf32>
    %cst_111 = arith.constant dense<0xFF800000> : vector<8xf32>
    %152 = vector.multi_reduction <maximumf>, %151, %cst_111 [1] : vector<8x16xf32> to vector<8xf32>
    %153 = vector.shape_cast %152 : vector<8xf32> to vector<8x1xf32>
    %154 = vector.broadcast %153 : vector<8x1xf32> to vector<8x16xf32>
    %155 = arith.subf %151, %154 : vector<8x16xf32>
    %156 = math.exp %155 : vector<8x16xf32>
    %cst_112 = arith.constant dense<0.000000e+00> : vector<8xf32>
    %157 = vector.multi_reduction <add>, %156, %cst_112 [1] : vector<8x16xf32> to vector<8xf32>
    %158 = vector.shape_cast %157 : vector<8xf32> to vector<8x1xf32>
    %159 = tpu.reciprocal %158 {approx = true} : vector<8x1xf32> -> vector<8x1xf32>
    %160 = vector.broadcast %159 : vector<8x1xf32> to vector<8x16xf32>
    %161 = arith.mulf %156, %160 : vector<8x16xf32>
    %c0_113 = arith.constant 0 : index
    %c0_114 = arith.constant 0 : index
    %162 = vector.load %arg32[%c0_113, %c0_114] : memref<16x32xf32, #tpu.memory_space<vmem>>, vector<16x8xf32>
    %cst_115 = arith.constant dense<0.000000e+00> : vector<8x8xf32>
    %163 = tpu.matmul %161, %162, %cst_115 {dimension_numbers = #tpu.dot_dimension_numbers<[1], [0], [0], [1], [0, 0, 1, 1], [], []>} : vector<8x16xf32>, vector<16x8xf32>, vector<8x8xf32> -> vector<8x8xf32>
    %c0_116 = arith.constant 0 : index
    %c0_117 = arith.constant 0 : index
    %164 = vector.load %arg33[%c0_116, %c0_117] : memref<8x32xf32, #tpu.memory_space<vmem>>, vector<8x8xf32>
    tpu.vector_store %arg33[%c0_116, %c0_117], %163 {strides = array<i32>} : memref<8x32xf32, #tpu.memory_space<vmem>>, vector<8x8xf32>,
    %c0_118 = arith.constant 0 : index
    %c8_119 = arith.constant 8 : index
    %165 = vector.load %arg30[%c0_118, %c8_119] : memref<8x32xf32, #tpu.memory_space<vmem>>, vector<8x8xf32>
    %c0_120 = arith.constant 0 : index
    %c8_121 = arith.constant 8 : index
    %166 = vector.load %arg31[%c0_120, %c8_121] : memref<16x32xf32, #tpu.memory_space<vmem>>, vector<16x8xf32>
    %cst_122 = arith.constant dense<0.000000e+00> : vector<8x16xf32>
    %167 = tpu.matmul %165, %166, %cst_122 {dimension_numbers = #tpu.dot_dimension_numbers<[1], [1], [0], [0], [0, 0, 1, 0], [], []>} : vector<8x8xf32>, vector<16x8xf32>, vector<8x16xf32> -> vector<8x16xf32>
    %cst_123 = arith.constant dense<0xFF800000> : vector<8xf32>
    %168 = vector.multi_reduction <maximumf>, %167, %cst_123 [1] : vector<8x16xf32> to vector<8xf32>
    %169 = vector.shape_cast %168 : vector<8xf32> to vector<8x1xf32>
    %170 = vector.broadcast %169 : vector<8x1xf32> to vector<8x16xf32>
    %171 = arith.subf %167, %170 : vector<8x16xf32>
    %172 = math.exp %171 : vector<8x16xf32>
    %cst_124 = arith.constant dense<0.000000e+00> : vector<8xf32>
    %173 = vector.multi_reduction <add>, %172, %cst_124 [1] : vector<8x16xf32> to vector<8xf32>
    %174 = vector.shape_cast %173 : vector<8xf32> to vector<8x1xf32>
    %175 = tpu.reciprocal %174 {approx = true} : vector<8x1xf32> -> vector<8x1xf32>
    %176 = vector.broadcast %175 : vector<8x1xf32> to vector<8x16xf32>
    %177 = arith.mulf %172, %176 : vector<8x16xf32>
    %c0_125 = arith.constant 0 : index
    %c8_126 = arith.constant 8 : index
    %178 = vector.load %arg32[%c0_125, %c8_126] : memref<16x32xf32, #tpu.memory_space<vmem>>, vector<16x8xf32>
    %cst_127 = arith.constant dense<0.000000e+00> : vector<8x8xf32>
    %179 = tpu.matmul %177, %178, %cst_127 {dimension_numbers = #tpu.dot_dimension_numbers<[1], [0], [0], [1], [0, 0, 1, 1], [], []>} : vector<8x16xf32>, vector<16x8xf32>, vector<8x8xf32> -> vector<8x8xf32>
    %c0_128 = arith.constant 0 : index
    %c8_129 = arith.constant 8 : index
    %180 = vector.load %arg33[%c0_128, %c8_129] : memref<8x32xf32, #tpu.memory_space<vmem>>, vector<8x8xf32>
    tpu.vector_store %arg33[%c0_128, %c8_129], %179 {strides = array<i32>} : memref<8x32xf32, #tpu.memory_space<vmem>>, vector<8x8xf32>,
    %c0_130 = arith.constant 0 : index
    %c16_131 = arith.constant 16 : index
    %181 = vector.load %arg30[%c0_130, %c16_131] : memref<8x32xf32, #tpu.memory_space<vmem>>, vector<8x8xf32>
    %c0_132 = arith.constant 0 : index
    %c16_133 = arith.constant 16 : index
    %182 = vector.load %arg31[%c0_132, %c16_133] : memref<16x32xf32, #tpu.memory_space<vmem>>, vector<16x8xf32>
    %cst_134 = arith.constant dense<0.000000e+00> : vector<8x16xf32>
    %183 = tpu.matmul %181, %182, %cst_134 {dimension_numbers = #tpu.dot_dimension_numbers<[1], [1], [0], [0], [0, 0, 1, 0], [], []>} : vector<8x8xf32>, vector<16x8xf32>, vector<8x16xf32> -> vector<8x16xf32>
    %cst_135 = arith.constant dense<0xFF800000> : vector<8xf32>
    %184 = vector.multi_reduction <maximumf>, %183, %cst_135 [1] : vector<8x16xf32> to vector<8xf32>
    %185 = vector.shape_cast %184 : vector<8xf32> to vector<8x1xf32>
    %186 = vector.broadcast %185 : vector<8x1xf32> to vector<8x16xf32>
    %187 = arith.subf %183, %186 : vector<8x16xf32>
    %188 = math.exp %187 : vector<8x16xf32>
    %cst_136 = arith.constant dense<0.000000e+00> : vector<8xf32>
    %189 = vector.multi_reduction <add>, %188, %cst_136 [1] : vector<8x16xf32> to vector<8xf32>
    %190 = vector.shape_cast %189 : vector<8xf32> to vector<8x1xf32>
    %191 = tpu.reciprocal %190 {approx = true} : vector<8x1xf32> -> vector<8x1xf32>
    %192 = vector.broadcast %191 : vector<8x1xf32> to vector<8x16xf32>
    %193 = arith.mulf %188, %192 : vector<8x16xf32>
    %c0_137 = arith.constant 0 : index
    %c16_138 = arith.constant 16 : index
    %194 = vector.load %arg32[%c0_137, %c16_138] : memref<16x32xf32, #tpu.memory_space<vmem>>, vector<16x8xf32>
    %cst_139 = arith.constant dense<0.000000e+00> : vector<8x8xf32>
    %195 = tpu.matmul %193, %194, %cst_139 {dimension_numbers = #tpu.dot_dimension_numbers<[1], [0], [0], [1], [0, 0, 1, 1], [], []>} : vector<8x16xf32>, vector<16x8xf32>, vector<8x8xf32> -> vector<8x8xf32>
    %c0_140 = arith.constant 0 : index
    %c16_141 = arith.constant 16 : index
    %196 = vector.load %arg33[%c0_140, %c16_141] : memref<8x32xf32, #tpu.memory_space<vmem>>, vector<8x8xf32>
    tpu.vector_store %arg33[%c0_140, %c16_141], %195 {strides = array<i32>} : memref<8x32xf32, #tpu.memory_space<vmem>>, vector<8x8xf32>,
    %c0_142 = arith.constant 0 : index
    %c24_143 = arith.constant 24 : index
    %197 = vector.load %arg30[%c0_142, %c24_143] : memref<8x32xf32, #tpu.memory_space<vmem>>, vector<8x8xf32>
    %c0_144 = arith.constant 0 : index
    %c24_145 = arith.constant 24 : index
    %198 = vector.load %arg31[%c0_144, %c24_145] : memref<16x32xf32, #tpu.memory_space<vmem>>, vector<16x8xf32>
    %cst_146 = arith.constant dense<0.000000e+00> : vector<8x16xf32>
    %199 = tpu.matmul %197, %198, %cst_146 {dimension_numbers = #tpu.dot_dimension_numbers<[1], [1], [0], [0], [0, 0, 1, 0], [], []>} : vector<8x8xf32>, vector<16x8xf32>, vector<8x16xf32> -> vector<8x16xf32>
    %cst_147 = arith.constant dense<0xFF800000> : vector<8xf32>
    %200 = vector.multi_reduction <maximumf>, %199, %cst_147 [1] : vector<8x16xf32> to vector<8xf32>
    %201 = vector.shape_cast %200 : vector<8xf32> to vector<8x1xf32>
    %202 = vector.broadcast %201 : vector<8x1xf32> to vector<8x16xf32>
    %203 = arith.subf %199, %202 : vector<8x16xf32>
    %204 = math.exp %203 : vector<8x16xf32>
    %cst_148 = arith.constant dense<0.000000e+00> : vector<8xf32>
    %205 = vector.multi_reduction <add>, %204, %cst_148 [1] : vector<8x16xf32> to vector<8xf32>
    %206 = vector.shape_cast %205 : vector<8xf32> to vector<8x1xf32>
    %207 = tpu.reciprocal %206 {approx = true} : vector<8x1xf32> -> vector<8x1xf32>
    %208 = vector.broadcast %207 : vector<8x1xf32> to vector<8x16xf32>
    %209 = arith.mulf %204, %208 : vector<8x16xf32>
    %c0_149 = arith.constant 0 : index
    %c24_150 = arith.constant 24 : index
    %210 = vector.load %arg32[%c0_149, %c24_150] : memref<16x32xf32, #tpu.memory_space<vmem>>, vector<16x8xf32>
    %cst_151 = arith.constant dense<0.000000e+00> : vector<8x8xf32>
    %211 = tpu.matmul %209, %210, %cst_151 {dimension_numbers = #tpu.dot_dimension_numbers<[1], [0], [0], [1], [0, 0, 1, 1], [], []>} : vector<8x16xf32>, vector<16x8xf32>, vector<8x8xf32> -> vector<8x8xf32>
    %c0_152 = arith.constant 0 : index
    %c24_153 = arith.constant 24 : index
    %212 = vector.load %arg33[%c0_152, %c24_153] : memref<8x32xf32, #tpu.memory_space<vmem>>, vector<8x8xf32>
    tpu.vector_store %arg33[%c0_152, %c24_153], %211 {strides = array<i32>} : memref<8x32xf32, #tpu.memory_space<vmem>>, vector<8x8xf32>,
    %c0_154 = arith.constant 0 : index
    %c0_155 = arith.constant 0 : index
    %213 = vector.load %arg33[%c0_154, %c0_155] : memref<8x32xf32, #tpu.memory_space<vmem>>, vector<8x32xf32>
    %c0_156 = arith.constant 0 : index
    %c0_157 = arith.constant 0 : index
    %c0_158 = arith.constant 0 : index
    %214 = vector.load %arg12[%c0_156, %c0_157, %c0_158] : memref<1x32x32xf32, #tpu.memory_space<vmem>>, vector<1x32x32xf32>
    %215 = vector.shape_cast %214 : vector<1x32x32xf32> to vector<32x32xf32>
    %cst_159 = arith.constant dense<0.000000e+00> : vector<8x32xf32>
    %216 = tpu.matmul %213, %215, %cst_159 {dimension_numbers = #tpu.dot_dimension_numbers<[1], [0], [0], [1], [0, 0, 1, 1], [], []>} : vector<8x32xf32>, vector<32x32xf32>, vector<8x32xf32> -> vector<8x32xf32>
    %c0_160 = arith.constant 0 : index
    %c0_161 = arith.constant 0 : index
    %c0_162 = arith.constant 0 : index
    %217 = vector.load %arg13[%c0_160, %c0_161, %c0_162] : memref<1x1x32xf32, #tpu.memory_space<vmem>>, vector<1x1x32xf32>
    %218 = vector.shape_cast %217 : vector<1x1x32xf32> to vector<1x32xf32>
    %219 = vector.broadcast %218 : vector<1x32xf32> to vector<8x32xf32>
    %220 = arith.addf %216, %219 : vector<8x32xf32>
    %221 = arith.addf %127, %220 : vector<8x32xf32>
    %c0_163 = arith.constant 0 : index
    %c0_164 = arith.constant 0 : index
    %c0_165 = arith.constant 0 : index
    %222 = vector.load %arg20[%c0_163, %c0_164, %c0_165] : memref<1x1x32xf32, #tpu.memory_space<vmem>>, vector<1x1x32xf32>
    %223 = vector.shape_cast %222 : vector<1x1x32xf32> to vector<1x32xf32>
    %c0_166 = arith.constant 0 : index
    %c0_167 = arith.constant 0 : index
    %c0_168 = arith.constant 0 : index
    %224 = vector.load %arg21[%c0_166, %c0_167, %c0_168] : memref<1x1x32xf32, #tpu.memory_space<vmem>>, vector<1x1x32xf32>
    %225 = vector.shape_cast %224 : vector<1x1x32xf32> to vector<1x32xf32>
    %cst_169 = arith.constant dense<0.000000e+00> : vector<8xf32>
    %226 = vector.multi_reduction <add>, %221, %cst_169 [1] : vector<8x32xf32> to vector<8xf32>
    %227 = vector.shape_cast %226 : vector<8xf32> to vector<8x1xf32>
    %cst_170 = arith.constant 3.200000e+01 : f32
    %228 = vector.broadcast %cst_170 : f32 to vector<8x1xf32>
    %229 = arith.divf %227, %228 : vector<8x1xf32>
    %230 = vector.broadcast %229 : vector<8x1xf32> to vector<8x32xf32>
    %231 = arith.subf %221, %230 : vector<8x32xf32>
    %232 = arith.mulf %231, %231 : vector<8x32xf32>
    %cst_171 = arith.constant dense<0.000000e+00> : vector<8xf32>
    %233 = vector.multi_reduction <add>, %232, %cst_171 [1] : vector<8x32xf32> to vector<8xf32>
    %234 = vector.shape_cast %233 : vector<8xf32> to vector<8x1xf32>
    %cst_172 = arith.constant 3.200000e+01 : f32
    %235 = vector.broadcast %cst_172 : f32 to vector<8x1xf32>
    %236 = arith.divf %234, %235 : vector<8x1xf32>
    %cst_173 = arith.constant 9.99999974E-6 : f32
    %237 = vector.broadcast %cst_173 : f32 to vector<8x1xf32>
    %238 = arith.addf %236, %237 : vector<8x1xf32>
    %239 = math.rsqrt %238 : vector<8x1xf32>
    %240 = vector.broadcast %239 : vector<8x1xf32> to vector<8x32xf32>
    %241 = arith.mulf %231, %240 : vector<8x32xf32>
    %242 = vector.broadcast %223 : vector<1x32xf32> to vector<8x32xf32>
    %243 = arith.mulf %241, %242 : vector<8x32xf32>
    %244 = vector.broadcast %225 : vector<1x32xf32> to vector<8x32xf32>
    %245 = arith.addf %243, %244 : vector<8x32xf32>
    %c0_174 = arith.constant 0 : index
    %c0_175 = arith.constant 0 : index
    %c0_176 = arith.constant 0 : index
    %246 = vector.load %arg14[%c0_174, %c0_175, %c0_176] : memref<1x32x64xf32, #tpu.memory_space<vmem>>, vector<1x32x64xf32>
    %247 = vector.shape_cast %246 : vector<1x32x64xf32> to vector<32x64xf32>
    %cst_177 = arith.constant dense<0.000000e+00> : vector<8x64xf32>
    %248 = tpu.matmul %245, %247, %cst_177 {dimension_numbers = #tpu.dot_dimension_numbers<[1], [0], [0], [1], [0, 0, 1, 1], [], []>} : vector<8x32xf32>, vector<32x64xf32>, vector<8x64xf32> -> vector<8x64xf32>
    %c0_178 = arith.constant 0 : index
    %c0_179 = arith.constant 0 : index
    %c0_180 = arith.constant 0 : index
    %249 = vector.load %arg15[%c0_178, %c0_179, %c0_180] : memref<1x1x64xf32, #tpu.memory_space<vmem>>, vector<1x1x64xf32>
    %250 = vector.shape_cast %249 : vector<1x1x64xf32> to vector<1x64xf32>
    %251 = vector.broadcast %250 : vector<1x64xf32> to vector<8x64xf32>
    %252 = arith.addf %248, %251 : vector<8x64xf32>
    %cst_181 = arith.constant 0.000000e+00 : f32
    %253 = vector.broadcast %cst_181 : f32 to vector<8x64xf32>
    %254 = arith.maximumf %252, %253 : vector<8x64xf32>
    %c0_182 = arith.constant 0 : index
    %c0_183 = arith.constant 0 : index
    %c0_184 = arith.constant 0 : index
    %255 = vector.load %arg16[%c0_182, %c0_183, %c0_184] : memref<1x64x32xf32, #tpu.memory_space<vmem>>, vector<1x64x32xf32>
    %256 = vector.shape_cast %255 : vector<1x64x32xf32> to vector<64x32xf32>
    %cst_185 = arith.constant dense<0.000000e+00> : vector<8x32xf32>
    %257 = tpu.matmul %254, %256, %cst_185 {dimension_numbers = #tpu.dot_dimension_numbers<[1], [0], [0], [1], [0, 0, 1, 1], [], []>} : vector<8x64xf32>, vector<64x32xf32>, vector<8x32xf32> -> vector<8x32xf32>
    %c0_186 = arith.constant 0 : index
    %c0_187 = arith.constant 0 : index
    %c0_188 = arith.constant 0 : index
    %258 = vector.load %arg17[%c0_186, %c0_187, %c0_188] : memref<1x1x32xf32, #tpu.memory_space<vmem>>, vector<1x1x32xf32>
    %259 = vector.shape_cast %258 : vector<1x1x32xf32> to vector<1x32xf32>
    %260 = vector.broadcast %259 : vector<1x32xf32> to vector<8x32xf32>
    %261 = arith.addf %257, %260 : vector<8x32xf32>
    %262 = arith.addf %245, %261 : vector<8x32xf32>
    %c0_189 = arith.constant 0 : index
    %c0_190 = arith.constant 0 : index
    %c0_191 = arith.constant 0 : index
    %263 = vector.load %arg22[%c0_189, %c0_190, %c0_191] : memref<1x1x32xf32, #tpu.memory_space<vmem>>, vector<1x1x32xf32>
    %264 = vector.shape_cast %263 : vector<1x1x32xf32> to vector<1x32xf32>
    %c0_192 = arith.constant 0 : index
    %c0_193 = arith.constant 0 : index
    %c0_194 = arith.constant 0 : index
    %265 = vector.load %arg23[%c0_192, %c0_193, %c0_194] : memref<1x1x32xf32, #tpu.memory_space<vmem>>, vector<1x1x32xf32>
    %266 = vector.shape_cast %265 : vector<1x1x32xf32> to vector<1x32xf32>
    %cst_195 = arith.constant dense<0.000000e+00> : vector<8xf32>
    %267 = vector.multi_reduction <add>, %262, %cst_195 [1] : vector<8x32xf32> to vector<8xf32>
    %268 = vector.shape_cast %267 : vector<8xf32> to vector<8x1xf32>
    %cst_196 = arith.constant 3.200000e+01 : f32
    %269 = vector.broadcast %cst_196 : f32 to vector<8x1xf32>
    %270 = arith.divf %268, %269 : vector<8x1xf32>
    %271 = vector.broadcast %270 : vector<8x1xf32> to vector<8x32xf32>
    %272 = arith.subf %262, %271 : vector<8x32xf32>
    %273 = arith.mulf %272, %272 : vector<8x32xf32>
    %cst_197 = arith.constant dense<0.000000e+00> : vector<8xf32>
    %274 = vector.multi_reduction <add>, %273, %cst_197 [1] : vector<8x32xf32> to vector<8xf32>
    %275 = vector.shape_cast %274 : vector<8xf32> to vector<8x1xf32>
    %cst_198 = arith.constant 3.200000e+01 : f32
    %276 = vector.broadcast %cst_198 : f32 to vector<8x1xf32>
    %277 = arith.divf %275, %276 : vector<8x1xf32>
    %cst_199 = arith.constant 9.99999974E-6 : f32
    %278 = vector.broadcast %cst_199 : f32 to vector<8x1xf32>
    %279 = arith.addf %277, %278 : vector<8x1xf32>
    %280 = math.rsqrt %279 : vector<8x1xf32>
    %281 = vector.broadcast %280 : vector<8x1xf32> to vector<8x32xf32>
    %282 = arith.mulf %272, %281 : vector<8x32xf32>
    %283 = vector.broadcast %264 : vector<1x32xf32> to vector<8x32xf32>
    %284 = arith.mulf %282, %283 : vector<8x32xf32>
    %285 = vector.broadcast %266 : vector<1x32xf32> to vector<8x32xf32>
    %286 = arith.addf %284, %285 : vector<8x32xf32>
    %c0_200 = arith.constant 0 : index
    %c0_201 = arith.constant 0 : index
    %287 = vector.load %arg29[%c0_200, %c0_201] : memref<8x32xf32, #tpu.memory_space<vmem>>, vector<8x32xf32>
    tpu.vector_store %arg29[%c0_200, %c0_201], %286 {strides = array<i32>} : memref<8x32xf32, #tpu.memory_space<vmem>>, vector<8x32xf32>,
    %c1_i32 = arith.constant 1 : i32
    %288 = arith.cmpi eq, %arg1, %c1_i32 : i32
    %289 = arith.extui %288 : i1 to i32
    %c0_i32_202 = arith.constant 0 : i32
    %290 = arith.cmpi ne, %289, %c0_i32_202 : i32
    scf.if %290 {
      %c0_203 = arith.constant 0 : index
      %c0_204 = arith.constant 0 : index
      %291 = vector.load %arg24[%c0_203, %c0_204] : memref<1x32xf32, #tpu.memory_space<vmem>>, vector<1x32xf32>
      %c0_205 = arith.constant 0 : index
      %c0_206 = arith.constant 0 : index
      %292 = vector.load %arg25[%c0_205, %c0_206] : memref<1x32xf32, #tpu.memory_space<vmem>>, vector<1x32xf32>
      %cst_207 = arith.constant dense<0.000000e+00> : vector<8xf32>
      %293 = vector.multi_reduction <add>, %286, %cst_207 [1] : vector<8x32xf32> to vector<8xf32>
      %294 = vector.shape_cast %293 : vector<8xf32> to vector<8x1xf32>
      %cst_208 = arith.constant 3.200000e+01 : f32
      %295 = vector.broadcast %cst_208 : f32 to vector<8x1xf32>
      %296 = arith.divf %294, %295 : vector<8x1xf32>
      %297 = vector.broadcast %296 : vector<8x1xf32> to vector<8x32xf32>
      %298 = arith.subf %286, %297 : vector<8x32xf32>
      %299 = arith.mulf %298, %298 : vector<8x32xf32>
      %cst_209 = arith.constant dense<0.000000e+00> : vector<8xf32>
      %300 = vector.multi_reduction <add>, %299, %cst_209 [1] : vector<8x32xf32> to vector<8xf32>
      %301 = vector.shape_cast %300 : vector<8xf32> to vector<8x1xf32>
      %cst_210 = arith.constant 3.200000e+01 : f32
      %302 = vector.broadcast %cst_210 : f32 to vector<8x1xf32>
      %303 = arith.divf %301, %302 : vector<8x1xf32>
      %cst_211 = arith.constant 9.99999974E-6 : f32
      %304 = vector.broadcast %cst_211 : f32 to vector<8x1xf32>
      %305 = arith.addf %303, %304 : vector<8x1xf32>
      %306 = math.rsqrt %305 : vector<8x1xf32>
      %307 = vector.broadcast %306 : vector<8x1xf32> to vector<8x32xf32>
      %308 = arith.mulf %298, %307 : vector<8x32xf32>
      %309 = vector.broadcast %291 : vector<1x32xf32> to vector<8x32xf32>
      %310 = arith.mulf %308, %309 : vector<8x32xf32>
      %311 = vector.broadcast %292 : vector<1x32xf32> to vector<8x32xf32>
      %312 = arith.addf %310, %311 : vector<8x32xf32>
      %c0_212 = arith.constant 0 : index
      %c0_213 = arith.constant 0 : index
      %313 = vector.load %arg26[%c0_212, %c0_213] : memref<32x128xf32, #tpu.memory_space<vmem>>, vector<32x128xf32>
      %cst_214 = arith.constant dense<0.000000e+00> : vector<8x128xf32>
      %314 = tpu.matmul %312, %313, %cst_214 {dimension_numbers = #tpu.dot_dimension_numbers<[1], [0], [0], [1], [0, 0, 1, 1], [], []>} : vector<8x32xf32>, vector<32x128xf32>, vector<8x128xf32> -> vector<8x128xf32>
      %c0_215 = arith.constant 0 : index
      %c0_216 = arith.constant 0 : index
      %315 = vector.load %arg27[%c0_215, %c0_216] : memref<1x128xf32, #tpu.memory_space<vmem>>, vector<1x128xf32>
      %316 = vector.broadcast %315 : vector<1x128xf32> to vector<8x128xf32>
      %317 = arith.addf %314, %316 : vector<8x128xf32>
      %c0_217 = arith.constant 0 : index
      %c0_218 = arith.constant 0 : index
      %c0_219 = arith.constant 0 : index
      %318 = vector.load %arg28[%c0_217, %c0_218, %c0_219] : memref<1x8x128xf32, #tpu.memory_space<vmem>>, vector<1x8x128xf32>
      %319 = vector.shape_cast %318 : vector<1x8x128xf32> to vector<8x128xf32>
      %320 = vector.shape_cast %317 : vector<8x128xf32> to vector<1x8x128xf32>
      tpu.vector_store %arg28[%c0_217, %c0_218, %c0_219], %320 {strides = array<i32>} : memref<1x8x128xf32, #tpu.memory_space<vmem>>, vector<1x8x128xf32>,
    } else {
    }
    return
  }
  func.func @transform_0(%arg0: i32, %arg1: i32) -> (i32, i32, i32) {
    %c0_i32 = arith.constant 0 : i32
    %c0_i32_0 = arith.constant 0 : i32
    %c0_i32_1 = arith.constant 0 : i32
    return %arg0, %c0_i32, %c0_i32_0 : i32, i32, i32
  }
  func.func @transform_1(%arg0: i32, %arg1: i32) -> (i32, i32, i32) {
    %c0_i32 = arith.constant 0 : i32
    %c0_i32_0 = arith.constant 0 : i32
    %c0_i32_1 = arith.constant 0 : i32
    return %arg0, %c0_i32, %c0_i32_0 : i32, i32, i32
  }
  func.func @transform_2(%arg0: i32, %arg1: i32) -> (i32, i32, i32) {
    %c0_i32 = arith.constant 0 : i32
    %c0_i32_0 = arith.constant 0 : i32
    %c0_i32_1 = arith.constant 0 : i32
    return %arg1, %c0_i32, %c0_i32_0 : i32, i32, i32
  }
  func.func @transform_3(%arg0: i32, %arg1: i32) -> (i32, i32, i32) {
    %c0_i32 = arith.constant 0 : i32
    %c0_i32_0 = arith.constant 0 : i32
    %c0_i32_1 = arith.constant 0 : i32
    return %arg1, %c0_i32, %c0_i32_0 : i32, i32, i32
  }
  func.func @transform_4(%arg0: i32, %arg1: i32) -> (i32, i32, i32) {
    %c0_i32 = arith.constant 0 : i32
    %c0_i32_0 = arith.constant 0 : i32
    %c0_i32_1 = arith.constant 0 : i32
    return %arg1, %c0_i32, %c0_i32_0 : i32, i32, i32
  }
  func.func @transform_5(%arg0: i32, %arg1: i32) -> (i32, i32, i32) {
    %c0_i32 = arith.constant 0 : i32
    %c0_i32_0 = arith.constant 0 : i32
    %c0_i32_1 = arith.constant 0 : i32
    return %arg1, %c0_i32, %c0_i32_0 : i32, i32, i32
  }
  func.func @transform_6(%arg0: i32, %arg1: i32) -> (i32, i32, i32) {
    %c0_i32 = arith.constant 0 : i32
    %c0_i32_0 = arith.constant 0 : i32
    %c0_i32_1 = arith.constant 0 : i32
    return %arg1, %c0_i32, %c0_i32_0 : i32, i32, i32
  }
  func.func @transform_7(%arg0: i32, %arg1: i32) -> (i32, i32, i32) {
    %c0_i32 = arith.constant 0 : i32
    %c0_i32_0 = arith.constant 0 : i32
    %c0_i32_1 = arith.constant 0 : i32
    return %arg1, %c0_i32, %c0_i32_0 : i32, i32, i32
  }
  func.func @transform_8(%arg0: i32, %arg1: i32) -> (i32, i32, i32) {
    %c0_i32 = arith.constant 0 : i32
    %c0_i32_0 = arith.constant 0 : i32
    %c0_i32_1 = arith.constant 0 : i32
    return %arg1, %c0_i32, %c0_i32_0 : i32, i32, i32
  }
  func.func @transform_9(%arg0: i32, %arg1: i32) -> (i32, i32, i32) {
    %c0_i32 = arith.constant 0 : i32
    %c0_i32_0 = arith.constant 0 : i32
    %c0_i32_1 = arith.constant 0 : i32
    return %arg1, %c0_i32, %c0_i32_0 : i32, i32, i32
  }
  func.func @transform_10(%arg0: i32, %arg1: i32) -> (i32, i32, i32) {
    %c0_i32 = arith.constant 0 : i32
    %c0_i32_0 = arith.constant 0 : i32
    %c0_i32_1 = arith.constant 0 : i32
    return %arg1, %c0_i32, %c0_i32_0 : i32, i32, i32
  }
  func.func @transform_11(%arg0: i32, %arg1: i32) -> (i32, i32, i32) {
    %c0_i32 = arith.constant 0 : i32
    %c0_i32_0 = arith.constant 0 : i32
    %c0_i32_1 = arith.constant 0 : i32
    return %arg1, %c0_i32, %c0_i32_0 : i32, i32, i32
  }
  func.func @transform_12(%arg0: i32, %arg1: i32) -> (i32, i32, i32) {
    %c0_i32 = arith.constant 0 : i32
    %c0_i32_0 = arith.constant 0 : i32
    %c0_i32_1 = arith.constant 0 : i32
    return %arg1, %c0_i32, %c0_i32_0 : i32, i32, i32
  }
  func.func @transform_13(%arg0: i32, %arg1: i32) -> (i32, i32, i32) {
    %c0_i32 = arith.constant 0 : i32
    %c0_i32_0 = arith.constant 0 : i32
    %c0_i32_1 = arith.constant 0 : i32
    return %arg1, %c0_i32, %c0_i32_0 : i32, i32, i32
  }
  func.func @transform_14(%arg0: i32, %arg1: i32) -> (i32, i32, i32) {
    %c0_i32 = arith.constant 0 : i32
    %c0_i32_0 = arith.constant 0 : i32
    %c0_i32_1 = arith.constant 0 : i32
    return %arg1, %c0_i32, %c0_i32_0 : i32, i32, i32
  }
  func.func @transform_15(%arg0: i32, %arg1: i32) -> (i32, i32, i32) {
    %c0_i32 = arith.constant 0 : i32
    %c0_i32_0 = arith.constant 0 : i32
    %c0_i32_1 = arith.constant 0 : i32
    return %arg1, %c0_i32, %c0_i32_0 : i32, i32, i32
  }
  func.func @transform_16(%arg0: i32, %arg1: i32) -> (i32, i32, i32) {
    %c0_i32 = arith.constant 0 : i32
    %c0_i32_0 = arith.constant 0 : i32
    %c0_i32_1 = arith.constant 0 : i32
    return %arg1, %c0_i32, %c0_i32_0 : i32, i32, i32
  }
  func.func @transform_17(%arg0: i32, %arg1: i32) -> (i32, i32, i32) {
    %c0_i32 = arith.constant 0 : i32
    %c0_i32_0 = arith.constant 0 : i32
    %c0_i32_1 = arith.constant 0 : i32
    return %arg1, %c0_i32, %c0_i32_0 : i32, i32, i32
  }
  func.func @transform_18(%arg0: i32, %arg1: i32) -> (i32, i32, i32) {
    %c0_i32 = arith.constant 0 : i32
    %c0_i32_0 = arith.constant 0 : i32
    %c0_i32_1 = arith.constant 0 : i32
    return %arg1, %c0_i32, %c0_i32_0 : i32, i32, i32
  }
  func.func @transform_19(%arg0: i32, %arg1: i32) -> (i32, i32, i32) {
    %c0_i32 = arith.constant 0 : i32
    %c0_i32_0 = arith.constant 0 : i32
    %c0_i32_1 = arith.constant 0 : i32
    return %arg1, %c0_i32, %c0_i32_0 : i32, i32, i32
  }
  func.func @transform_20(%arg0: i32, %arg1: i32) -> (i32, i32, i32) {
    %c0_i32 = arith.constant 0 : i32
    %c0_i32_0 = arith.constant 0 : i32
    %c0_i32_1 = arith.constant 0 : i32
    return %arg1, %c0_i32, %c0_i32_0 : i32, i32, i32
  }
  func.func @transform_21(%arg0: i32, %arg1: i32) -> (i32, i32, i32) {
    %c0_i32 = arith.constant 0 : i32
    %c0_i32_0 = arith.constant 0 : i32
    %c0_i32_1 = arith.constant 0 : i32
    return %arg1, %c0_i32, %c0_i32_0 : i32, i32, i32
  }
  func.func @transform_22(%arg0: i32, %arg1: i32) -> (i32, i32) {
    %c0_i32 = arith.constant 0 : i32
    %c0_i32_0 = arith.constant 0 : i32
    %c0_i32_1 = arith.constant 0 : i32
    return %c0_i32, %c0_i32_0 : i32, i32
  }
  func.func @transform_23(%arg0: i32, %arg1: i32) -> (i32, i32) {
    %c0_i32 = arith.constant 0 : i32
    %c0_i32_0 = arith.constant 0 : i32
    %c0_i32_1 = arith.constant 0 : i32
    return %c0_i32, %c0_i32_0 : i32, i32
  }
  func.func @transform_24(%arg0: i32, %arg1: i32) -> (i32, i32) {
    %c0_i32 = arith.constant 0 : i32
    %c0_i32_0 = arith.constant 0 : i32
    %c0_i32_1 = arith.constant 0 : i32
    return %c0_i32, %c0_i32_0 : i32, i32
  }
  func.func @transform_25(%arg0: i32, %arg1: i32) -> (i32, i32) {
    %c0_i32 = arith.constant 0 : i32
    %c0_i32_0 = arith.constant 0 : i32
    %c0_i32_1 = arith.constant 0 : i32
    return %c0_i32, %c0_i32_0 : i32, i32
  }
  func.func @transform_26(%arg0: i32, %arg1: i32) -> (i32, i32, i32) {
    %c0_i32 = arith.constant 0 : i32
    %c0_i32_0 = arith.constant 0 : i32
    %c0_i32_1 = arith.constant 0 : i32
    return %arg0, %c0_i32, %c0_i32_0 : i32, i32, i32
  }
}

</mosaic_0001>

<llo_original>
// kernel: pallas_decoder_forward.1
$region0: #{pallas_decoder_forward.1}
  #allocation0 [shape = 'u32[]', space=smem, size = 0x4, offset = 0x4, fixed_abs, tag = 'smem constant byte address 0x4 - core index']
  #allocation1 [shape = 'u32[144,128]{1,0:T(1,128)}', space=vmem, size = 0x12000, scoped, tag = 'internal scratch']
  #allocation2 [shape = 'f32[8,32]{1,0:T(8,128)}', space=vmem, size = 0x1000, scoped, tag = 'scratch operand']
  #allocation3 [shape = 'f32[8,32]{1,0:T(8,128)}', space=vmem, size = 0x1000, scoped, tag = 'scratch operand']
  #allocation4 [shape = 'f32[16,32]{1,0:T(8,128)}', space=vmem, size = 0x2000, scoped, tag = 'scratch operand']
  #allocation5 [shape = 'f32[16,32]{1,0:T(8,128)}', space=vmem, size = 0x2000, scoped, tag = 'scratch operand']
  #allocation6 [shape = 'f32[8,32]{1,0:T(8,128)}', space=vmem, size = 0x1000, scoped, tag = 'scratch operand']
  %s0 = inlined_call_operand.hbm [shape: f32[2,8,32], index: 0, kind: input, shape index: {}]
  %s1 = inlined_call_operand.vmem [shape: f32[2,16,32], index: 1, kind: input, shape index: {}]
  %s2 = inlined_call_operand.vmem [shape: f32[2,32,96], index: 2, kind: input, shape index: {}]
  %s3 = inlined_call_operand.hbm [shape: f32[2,1,96], index: 3, kind: input, shape index: {}]
  %s4 = inlined_call_operand.vmem [shape: f32[2,32,32], index: 4, kind: input, shape index: {}]
  %s5 = inlined_call_operand.hbm [shape: f32[2,1,32], index: 5, kind: input, shape index: {}]
  %s6 = inlined_call_operand.vmem [shape: f32[2,32,32], index: 6, kind: input, shape index: {}]
  %s7 = inlined_call_operand.hbm [shape: f32[2,1,32], index: 7, kind: input, shape index: {}]
  %s8 = inlined_call_operand.hbm [shape: f32[2,32,64], index: 8, kind: input, shape index: {}]
  %s9 = inlined_call_operand.hbm [shape: f32[2,1,64], index: 9, kind: input, shape index: {}]
  %s10 = inlined_call_operand.hbm [shape: f32[2,32,32], index: 10, kind: input, shape index: {}]
  %s11 = inlined_call_operand.hbm [shape: f32[2,1,32], index: 11, kind: input, shape index: {}]
  %s12 = inlined_call_operand.hbm [shape: f32[2,32,64], index: 12, kind: input, shape index: {}]
  %s13 = inlined_call_operand.hbm [shape: f32[2,1,64], index: 13, kind: input, shape index: {}]
  %s14 = inlined_call_operand.vmem [shape: f32[2,64,32], index: 14, kind: input, shape index: {}]
  %s15 = inlined_call_operand.hbm [shape: f32[2,1,32], index: 15, kind: input, shape index: {}]
  %s16 = inlined_call_operand.hbm [shape: f32[2,1,32], index: 16, kind: input, shape index: {}]
  %s17 = inlined_call_operand.hbm [shape: f32[2,1,32], index: 17, kind: input, shape index: {}]
  %s18 = inlined_call_operand.hbm [shape: f32[2,1,32], index: 18, kind: input, shape index: {}]
  %s19 = inlined_call_operand.hbm [shape: f32[2,1,32], index: 19, kind: input, shape index: {}]
  %s20 = inlined_call_operand.hbm [shape: f32[2,1,32], index: 20, kind: input, shape index: {}]
  %s21 = inlined_call_operand.hbm [shape: f32[2,1,32], index: 21, kind: input, shape index: {}]
  %s22 = inlined_call_operand.hbm [shape: f32[1,32], index: 22, kind: input, shape index: {}]
  %s23 = inlined_call_operand.hbm [shape: f32[1,32], index: 23, kind: input, shape index: {}]
  %s24 = inlined_call_operand.hbm [shape: f32[32,128], index: 24, kind: input, shape index: {}]
  %s25 = inlined_call_operand.hbm [shape: f32[1,128], index: 25, kind: input, shape index: {}]
  %s26 = inlined_call_operand.hbm [shape: f32[2,8,128], index: 26, kind: output, shape index: {}]
  %s27 = sld [smem:[#allocation0]]
  $region229: #{pallas_decoder_forward.1} parent=0
    _
  %s29 = ssub.s32 1, %s27
  %s30 = scalar_select 0, %s29, %s27
  $region1: #{pallas_decoder_forward.1} parent=0
    #allocation7 [shape = 'u8[8192]{0}', space=vmem, size = 0x2000, scoped, tag = 'input window, operand 0']
    #allocation8 [shape = 's32[2]{0}', space=sflag, size = 0x8, scoped, tag = 'scoped memory for pallas_decoder_forward.1']
    #allocation9 [shape = 's32[2]{0}', space=sflag, size = 0x8, scoped, tag = 'scoped memory for pallas_decoder_forward.1']
    #allocation10 [shape = 'u8[1024]{0}', space=vmem, size = 0x400, scoped, tag = 'input window, operand 3']
    #allocation11 [shape = 's32[2]{0}', space=sflag, size = 0x8, scoped, tag = 'scoped memory for pallas_decoder_forward.1']
    #allocation12 [shape = 'u8[1024]{0}', space=vmem, size = 0x400, scoped, tag = 'input window, operand 5']
    #allocation13 [shape = 'u8[1024]{0}', space=vmem, size = 0x400, scoped, tag = 'input window, operand 7']
    #allocation14 [shape = 's32[2]{0}', space=sflag, size = 0x8, scoped, tag = 'scoped memory for pallas_decoder_forward.1']
    #allocation15 [shape = 'u8[32768]{0}', space=vmem, size = 0x8000, scoped, tag = 'input window, operand 8']
    #allocation16 [shape = 'u8[1024]{0}', space=vmem, size = 0x400, scoped, tag = 'input window, operand 9']
    #allocation17 [shape = 's32[2]{0}', space=sflag, size = 0x8, scoped, tag = 'scoped memory for pallas_decoder_forward.1']
    #allocation18 [shape = 'u8[32768]{0}', space=vmem, size = 0x8000, scoped, tag = 'input window, operand 10']
    #allocation19 [shape = 'u8[1024]{0}', space=vmem, size = 0x400, scoped, tag = 'input window, operand 11']
    #allocation20 [shape = 's32[2]{0}', space=sflag, size = 0x8, scoped, tag = 'scoped memory for pallas_decoder_forward.1']
    #allocation21 [shape = 'u8[32768]{0}', space=vmem, size = 0x8000, scoped, tag = 'input window, operand 12']
    #allocation22 [shape = 'u8[1024]{0}', space=vmem, size = 0x400, scoped, tag = 'input window, operand 13']
    #allocation23 [shape = 's32[2]{0}', space=sflag, size = 0x8, scoped, tag = 'scoped memory for pallas_decoder_forward.1']
    #allocation24 [shape = 'u8[1024]{0}', space=vmem, size = 0x400, scoped, tag = 'input window, operand 15']
    #allocation25 [shape = 'u8[1024]{0}', space=vmem, size = 0x400, scoped, tag = 'input window, operand 16']
    #allocation26 [shape = 's32[2]{0}', space=sflag, size = 0x8, scoped, tag = 'scoped memory for pallas_decoder_forward.1']
    #allocation27 [shape = 'u8[1024]{0}', space=vmem, size = 0x400, scoped, tag = 'input window, operand 17']
    #allocation28 [shape = 'u8[1024]{0}', space=vmem, size = 0x400, scoped, tag = 'input window, operand 18']
    #allocation29 [shape = 's32[2]{0}', space=sflag, size = 0x8, scoped, tag = 'scoped memory for pallas_decoder_forward.1']
    #allocation30 [shape = 'u8[1024]{0}', space=vmem, size = 0x400, scoped, tag = 'input window, operand 19']
    #allocation31 [shape = 'u8[1024]{0}', space=vmem, size = 0x400, scoped, tag = 'input window, operand 20']
    #allocation32 [shape = 's32[2]{0}', space=sflag, size = 0x8, scoped, tag = 'scoped memory for pallas_decoder_forward.1']
    #allocation33 [shape = 'u8[1024]{0}', space=vmem, size = 0x400, scoped, tag = 'input window, operand 21']
    #allocation34 [shape = 'u8[512]{0}', space=vmem, size = 0x400, scoped, tag = 'input window, operand 22, single buffered']
    #allocation35 [shape = 's32[1]{0}', space=sflag, size = 0x4, scoped, tag = 'scoped memory for pallas_decoder_forward.1']
    #allocation36 [shape = 'u8[512]{0}', space=vmem, size = 0x400, scoped, tag = 'input window, operand 23, single buffered']
    #allocation37 [shape = 'u8[16384]{0}', space=vmem, size = 0x4000, scoped, tag = 'input window, operand 24, single buffered']
    #allocation38 [shape = 's32[1]{0}', space=sflag, size = 0x4, scoped, tag = 'scoped memory for pallas_decoder_forward.1']
    #allocation39 [shape = 'u8[512]{0}', space=vmem, size = 0x400, scoped, tag = 'input window, operand 25, single buffered']
    #allocation40 [shape = 'u8[8192]{0}', space=vmem, size = 0x2000, scoped, tag = 'output window, operand 0']
    %31 = vsyncpa [#allocation8], 0
    %s32 = scalar_lea.sflag [#allocation8], 1
    %33 = vsyncpa %s32, 0
    %34 = vsyncpa [#allocation11], 0
    %s35 = scalar_lea.sflag [#allocation11], 1
    %36 = vsyncpa %s35, 0
    %37 = vsyncpa [#allocation14], 0
    %s38 = scalar_lea.sflag [#allocation14], 1
    %39 = vsyncpa %s38, 0
    %40 = vsyncpa [#allocation17], 0
    %s41 = scalar_lea.sflag [#allocation17], 1
    %42 = vsyncpa %s41, 0
    %43 = vsyncpa [#allocation20], 0
    %s44 = scalar_lea.sflag [#allocation20], 1
    %45 = vsyncpa %s44, 0
    %46 = vsyncpa [#allocation23], 0
    %s47 = scalar_lea.sflag [#allocation23], 1
    %48 = vsyncpa %s47, 0
    %49 = vsyncpa [#allocation26], 0
    %s50 = scalar_lea.sflag [#allocation26], 1
    %51 = vsyncpa %s50, 0
    %52 = vsyncpa [#allocation29], 0
    %s53 = scalar_lea.sflag [#allocation29], 1
    %54 = vsyncpa %s53, 0
    %55 = vsyncpa [#allocation32], 0
    %s56 = scalar_lea.sflag [#allocation32], 1
    %57 = vsyncpa %s56, 0
    %58 = vsyncpa [#allocation35], 0
    %59 = vsyncpa [#allocation38], 0
    %60 = vsyncpa [#allocation9], 0
    %s61 = scalar_lea.sflag [#allocation9], 1
    %62 = vsyncpa %s61, 0
    loop: start=0, step=1, limit=6
    $region2: #{pallas_decoder_forward.1} parent=1 // loop_pre_header
      _
    $region3: #{pallas_decoder_forward.1} parent=1 // loop_header
      %s64 = sphi 0, %s68
      %p65 = scmp.ge.s32.totalorder %s64, 6
      %s71 = sphi 0, %s83
      %s72 = sphi 0, %s79
      %s73 = sphi 0, %s71
      %s74 = sphi 0, %s72
      %s75 = sphi 0, %s73
      %s76 = sphi 0, %s74
      %s86 = sphi 0, %s88
      %s89 = sphi 0, %s86
      %s90 = sphi 0, %s89
      %s106 = sphi 0, %s90
      %s112 = sphi 0, %s114
      %s115 = sphi 0, %s112
      %s116 = sphi 0, %s115
      %s132 = sphi 0, %s116
      %s138 = sphi 0, %s140
      %s141 = sphi 0, %s138
      %s142 = sphi 0, %s141
      %s158 = sphi 0, %s142
      %s164 = sphi 0, %s166
      %s167 = sphi 0, %s164
      %s168 = sphi 0, %s167
      %s184 = sphi 0, %s168
      %s190 = sphi 0, %s192
      %s193 = sphi 0, %s190
      %s194 = sphi 0, %s193
      %s210 = sphi 0, %s194
      %s216 = sphi 0, %s218
      %s219 = sphi 0, %s216
      %s220 = sphi 0, %s219
      %s236 = sphi 0, %s220
      %s242 = sphi 0, %s244
      %s245 = sphi 0, %s242
      %s246 = sphi 0, %s245
      %s262 = sphi 0, %s246
      %s268 = sphi 0, %s270
      %s271 = sphi 0, %s268
      %s272 = sphi 0, %s271
      %s288 = sphi 0, %s272
      %s294 = sphi 0, %s296
      %s297 = sphi 0, %s294
      %s298 = sphi 0, %s297
      %s314 = sphi 0, %s298
      %s320 = sphi 0, %s322
      %s323 = sphi 0, %s320
      %s324 = sphi 0, %s323
      %s340 = sphi 0, %s324
      %s346 = sphi 0, %s348
      %s349 = sphi 0, %s346
      %s350 = sphi 0, %s349
      %s366 = sphi 0, %s350
      %s372 = sphi 0, %s374
      %s375 = sphi 0, %s372
      %s376 = sphi 0, %s375
      %s392 = sphi 0, %s376
      %s398 = sphi 0, %s400
      %s401 = sphi 0, %s398
      %s402 = sphi 0, %s401
      %s418 = sphi 0, %s402
      %s424 = sphi 0, %s426
      %s427 = sphi 0, %s424
      %s428 = sphi 0, %s427
      %s444 = sphi 0, %s428
      %s450 = sphi 0, %s452
      %s453 = sphi 0, %s450
      %s454 = sphi 0, %s453
      %s470 = sphi 0, %s454
      %s476 = sphi 0, %s478
      %s479 = sphi 0, %s476
      %s480 = sphi 0, %s479
      %s496 = sphi 0, %s480
      %s502 = sphi 0, %s504
      %s505 = sphi 0, %s502
      %s506 = sphi 0, %s505
      %s522 = sphi 0, %s506
      %s528 = sphi 0, %s530
      %s531 = sphi 0, %s528
      %s532 = sphi 0, %s531
      %s548 = sphi 0, %s532
      %s554 = sphi 0, %s556
      %s557 = sphi 0, %s554
      %s558 = sphi 0, %s557
      %s574 = sphi 0, %s558
      %s580 = sphi 0, %s582
      %s583 = sphi 0, %s580
      %s584 = sphi 0, %s583
      %s600 = sphi 0, %s584
      %s606 = sphi 0, %s608
      %s609 = sphi 0, %s606
      %s610 = sphi 0, %s609
      %s626 = sphi 0, %s610
      %s632 = sphi 0, %s634
      %s635 = sphi 0, %s632
      %s636 = sphi 0, %s635
      %s652 = sphi 0, %s636
      %s656 = sphi 0, %s656
      %s658 = sphi 0, %s656
      %s659 = sphi 0, %s658
      %s673 = sphi 0, %s659
      %s677 = sphi 0, %s677
      %s679 = sphi 0, %s677
      %s680 = sphi 0, %s679
      %s694 = sphi 0, %s680
      %s698 = sphi 0, %s698
      %s700 = sphi 0, %s698
      %s701 = sphi 0, %s700
      %s715 = sphi 0, %s701
      %s719 = sphi 0, %s719
      %s721 = sphi 0, %s719
      %s722 = sphi 0, %s721
      %s736 = sphi 0, %s722
      %s742 = sphi 0, %s744
      %s745 = sphi 0, %s742
      %s746 = sphi 0, %s745
      %s762 = sphi 0, %s746
    $region4: #{pallas_decoder_forward.1} parent=1 // loop_header_branch
      %67 = sbr.rel (%p65) target = $region8
    $region5: #{pallas_decoder_forward.1} parent=1 // loop_body
      %s69 = ssub.s32 %s64, 1
      %s70 = ssub.s32 %s64, 2
      %s77 = sadd.s32 1, %s72
      %p78 = scmp.ge.s32.totalorder %s77, 2
      %s79 = scalar_select %p78, 0, %s77
      %s80 = sadd.s32 1, %s71
      %s81 = scalar_select %p78, %s80, %s71
      %p82 = scmp.ge.s32.totalorder %s81, 2
      %s83 = scalar_select %p82, 0, %s81
      %s84 = ssub.s32 %s71, %s83
      %p85 = scmp.eq.s32.totalorder %s84, 0
      %s87 = sadd.s32 %s86, 1
      %s88 = scalar_select %p85, %s86, %s87
      %p91 = pneg %p85
      %p92 = scmp.eq.s32.totalorder %s64, 3
      %p93 = por %p91, %p92
      %p94 = scmp.ne.s32.totalorder %s86, %s89
      %p95 = scmp.eq.s32.totalorder %s64, 0
      %p96 = por %p94, %p95
      %p97 = scmp.ne.s32.totalorder %s86, %s89
      %p98 = scmp.eq.s32.totalorder %s69, 3
      %p99 = por %p97, %p98
      %p100 = scmp.ne.s32.totalorder %s89, %s90
      %p101 = scmp.eq.s32.totalorder %s69, 0
      %p102 = por %p100, %p101
      %p103 = scmp.ne.s32.totalorder %s89, %s90
      %p104 = scmp.eq.s32.totalorder %s70, 3
      %p105 = por %p103, %p104
      %p107 = scmp.ne.s32.totalorder %s90, %s106
      %p108 = scmp.eq.s32.totalorder %s70, 0
      %p109 = por %p107, %p108
      %s110 = ssub.s32 %s71, %s83
      %p111 = scmp.eq.s32.totalorder %s110, 0
      %s113 = sadd.s32 %s112, 1
      %s114 = scalar_select %p111, %s112, %s113
      %p117 = pneg %p111
      %p118 = scmp.eq.s32.totalorder %s64, 3
      %p119 = por %p117, %p118
      %p120 = scmp.ne.s32.totalorder %s112, %s115
      %p121 = scmp.eq.s32.totalorder %s64, 0
      %p122 = por %p120, %p121
      %p123 = scmp.ne.s32.totalorder %s112, %s115
      %p124 = scmp.eq.s32.totalorder %s69, 3
      %p125 = por %p123, %p124
      %p126 = scmp.ne.s32.totalorder %s115, %s116
      %p127 = scmp.eq.s32.totalorder %s69, 0
      %p128 = por %p126, %p127
      %p129 = scmp.ne.s32.totalorder %s115, %s116
      %p130 = scmp.eq.s32.totalorder %s70, 3
      %p131 = por %p129, %p130
      %p133 = scmp.ne.s32.totalorder %s116, %s132
      %p134 = scmp.eq.s32.totalorder %s70, 0
      %p135 = por %p133, %p134
      %s136 = ssub.s32 %s72, %s79
      %p137 = scmp.eq.s32.totalorder %s136, 0
      %s139 = sadd.s32 %s138, 1
      %s140 = scalar_select %p137, %s138, %s139
      %p143 = pneg %p137
      %p144 = scmp.eq.s32.totalorder %s64, 3
      %p145 = por %p143, %p144
      %p146 = scmp.ne.s32.totalorder %s138, %s141
      %p147 = scmp.eq.s32.totalorder %s64, 0
      %p148 = por %p146, %p147
      %p149 = scmp.ne.s32.totalorder %s138, %s141
      %p150 = scmp.eq.s32.totalorder %s69, 3
      %p151 = por %p149, %p150
      %p152 = scmp.ne.s32.totalorder %s141, %s142
      %p153 = scmp.eq.s32.totalorder %s69, 0
      %p154 = por %p152, %p153
      %p155 = scmp.ne.s32.totalorder %s141, %s142
      %p156 = scmp.eq.s32.totalorder %s70, 3
      %p157 = por %p155, %p156
      %p159 = scmp.ne.s32.totalorder %s142, %s158
      %p160 = scmp.eq.s32.totalorder %s70, 0
      %p161 = por %p159, %p160
      %s162 = ssub.s32 %s72, %s79
      %p163 = scmp.eq.s32.totalorder %s162, 0
      %s165 = sadd.s32 %s164, 1
      %s166 = scalar_select %p163, %s164, %s165
      %p169 = pneg %p163
      %p170 = scmp.eq.s32.totalorder %s64, 3
      %p171 = por %p169, %p170
      %p172 = scmp.ne.s32.totalorder %s164, %s167
      %p173 = scmp.eq.s32.totalorder %s64, 0
      %p174 = por %p172, %p173
      %p175 = scmp.ne.s32.totalorder %s164, %s167
      %p176 = scmp.eq.s32.totalorder %s69, 3
      %p177 = por %p175, %p176
      %p178 = scmp.ne.s32.totalorder %s167, %s168
      %p179 = scmp.eq.s32.totalorder %s69, 0
      %p180 = por %p178, %p179
      %p181 = scmp.ne.s32.totalorder %s167, %s168
      %p182 = scmp.eq.s32.totalorder %s70, 3
      %p183 = por %p181, %p182
      %p185 = scmp.ne.s32.totalorder %s168, %s184
      %p186 = scmp.eq.s32.totalorder %s70, 0
      %p187 = por %p185, %p186
      %s188 = ssub.s32 %s72, %s79
      %p189 = scmp.eq.s32.totalorder %s188, 0
      %s191 = sadd.s32 %s190, 1
      %s192 = scalar_select %p189, %s190, %s191
      %p195 = pneg %p189
      %p196 = scmp.eq.s32.totalorder %s64, 3
      %p197 = por %p195, %p196
      %p198 = scmp.ne.s32.totalorder %s190, %s193
      %p199 = scmp.eq.s32.totalorder %s64, 0
      %p200 = por %p198, %p199
      %p201 = scmp.ne.s32.totalorder %s190, %s193
      %p202 = scmp.eq.s32.totalorder %s69, 3
      %p203 = por %p201, %p202
      %p204 = scmp.ne.s32.totalorder %s193, %s194
      %p205 = scmp.eq.s32.totalorder %s69, 0
      %p206 = por %p204, %p205
      %p207 = scmp.ne.s32.totalorder %s193, %s194
      %p208 = scmp.eq.s32.totalorder %s70, 3
      %p209 = por %p207, %p208
      %p211 = scmp.ne.s32.totalorder %s194, %s210
      %p212 = scmp.eq.s32.totalorder %s70, 0
      %p213 = por %p211, %p212
      %s214 = ssub.s32 %s72, %s79
      %p215 = scmp.eq.s32.totalorder %s214, 0
      %s217 = sadd.s32 %s216, 1
      %s218 = scalar_select %p215, %s216, %s217
      %p221 = pneg %p215
      %p222 = scmp.eq.s32.totalorder %s64, 3
      %p223 = por %p221, %p222
      %p224 = scmp.ne.s32.totalorder %s216, %s219
      %p225 = scmp.eq.s32.totalorder %s64, 0
      %p226 = por %p224, %p225
      %p227 = scmp.ne.s32.totalorder %s216, %s219
      %p228 = scmp.eq.s32.totalorder %s69, 3
      %p229 = por %p227, %p228
      %p230 = scmp.ne.s32.totalorder %s219, %s220
      %p231 = scmp.eq.s32.totalorder %s69, 0
      %p232 = por %p230, %p231
      %p233 = scmp.ne.s32.totalorder %s219, %s220
      %p234 = scmp.eq.s32.totalorder %s70, 3
      %p235 = por %p233, %p234
      %p237 = scmp.ne.s32.totalorder %s220, %s236
      %p238 = scmp.eq.s32.totalorder %s70, 0
      %p239 = por %p237, %p238
      %s240 = ssub.s32 %s72, %s79
      %p241 = scmp.eq.s32.totalorder %s240, 0
      %s243 = sadd.s32 %s242, 1
      %s244 = scalar_select %p241, %s242, %s243
      %p247 = pneg %p241
      %p248 = scmp.eq.s32.totalorder %s64, 3
      %p249 = por %p247, %p248
      %p250 = scmp.ne.s32.totalorder %s242, %s245
      %p251 = scmp.eq.s32.totalorder %s64, 0
      %p252 = por %p250, %p251
      %p253 = scmp.ne.s32.totalorder %s242, %s245
      %p254 = scmp.eq.s32.totalorder %s69, 3
      %p255 = por %p253, %p254
      %p256 = scmp.ne.s32.totalorder %s245, %s246
      %p257 = scmp.eq.s32.totalorder %s69, 0
      %p258 = por %p256, %p257
      %p259 = scmp.ne.s32.totalorder %s245, %s246
      %p260 = scmp.eq.s32.totalorder %s70, 3
      %p261 = por %p259, %p260
      %p263 = scmp.ne.s32.totalorder %s246, %s262
      %p264 = scmp.eq.s32.totalorder %s70, 0
      %p265 = por %p263, %p264
      %s266 = ssub.s32 %s72, %s79
      %p267 = scmp.eq.s32.totalorder %s266, 0
      %s269 = sadd.s32 %s268, 1
      %s270 = scalar_select %p267, %s268, %s269
      %p273 = pneg %p267
      %p274 = scmp.eq.s32.totalorder %s64, 3
      %p275 = por %p273, %p274
      %p276 = scmp.ne.s32.totalorder %s268, %s271
      %p277 = scmp.eq.s32.totalorder %s64, 0
      %p278 = por %p276, %p277
      %p279 = scmp.ne.s32.totalorder %s268, %s271
      %p280 = scmp.eq.s32.totalorder %s69, 3
      %p281 = por %p279, %p280
      %p282 = scmp.ne.s32.totalorder %s271, %s272
      %p283 = scmp.eq.s32.totalorder %s69, 0
      %p284 = por %p282, %p283
      %p285 = scmp.ne.s32.totalorder %s271, %s272
      %p286 = scmp.eq.s32.totalorder %s70, 3
      %p287 = por %p285, %p286
      %p289 = scmp.ne.s32.totalorder %s272, %s288
      %p290 = scmp.eq.s32.totalorder %s70, 0
      %p291 = por %p289, %p290
      %s292 = ssub.s32 %s72, %s79
      %p293 = scmp.eq.s32.totalorder %s292, 0
      %s295 = sadd.s32 %s294, 1
      %s296 = scalar_select %p293, %s294, %s295
      %p299 = pneg %p293
      %p300 = scmp.eq.s32.totalorder %s64, 3
      %p301 = por %p299, %p300
      %p302 = scmp.ne.s32.totalorder %s294, %s297
      %p303 = scmp.eq.s32.totalorder %s64, 0
      %p304 = por %p302, %p303
      %p305 = scmp.ne.s32.totalorder %s294, %s297
      %p306 = scmp.eq.s32.totalorder %s69, 3
      %p307 = por %p305, %p306
      %p308 = scmp.ne.s32.totalorder %s297, %s298
      %p309 = scmp.eq.s32.totalorder %s69, 0
      %p310 = por %p308, %p309
      %p311 = scmp.ne.s32.totalorder %s297, %s298
      %p312 = scmp.eq.s32.totalorder %s70, 3
      %p313 = por %p311, %p312
      %p315 = scmp.ne.s32.totalorder %s298, %s314
      %p316 = scmp.eq.s32.totalorder %s70, 0
      %p317 = por %p315, %p316
      %s318 = ssub.s32 %s72, %s79
      %p319 = scmp.eq.s32.totalorder %s318, 0
      %s321 = sadd.s32 %s320, 1
      %s322 = scalar_select %p319, %s320, %s321
      %p325 = pneg %p319
      %p326 = scmp.eq.s32.totalorder %s64, 3
      %p327 = por %p325, %p326
      %p328 = scmp.ne.s32.totalorder %s320, %s323
      %p329 = scmp.eq.s32.totalorder %s64, 0
      %p330 = por %p328, %p329
      %p331 = scmp.ne.s32.totalorder %s320, %s323
      %p332 = scmp.eq.s32.totalorder %s69, 3
      %p333 = por %p331, %p332
      %p334 = scmp.ne.s32.totalorder %s323, %s324
      %p335 = scmp.eq.s32.totalorder %s69, 0
      %p336 = por %p334, %p335
      %p337 = scmp.ne.s32.totalorder %s323, %s324
      %p338 = scmp.eq.s32.totalorder %s70, 3
      %p339 = por %p337, %p338
      %p341 = scmp.ne.s32.totalorder %s324, %s340
      %p342 = scmp.eq.s32.totalorder %s70, 0
      %p343 = por %p341, %p342
      %s344 = ssub.s32 %s72, %s79
      %p345 = scmp.eq.s32.totalorder %s344, 0
      %s347 = sadd.s32 %s346, 1
      %s348 = scalar_select %p345, %s346, %s347
      %p351 = pneg %p345
      %p352 = scmp.eq.s32.totalorder %s64, 3
      %p353 = por %p351, %p352
      %p354 = scmp.ne.s32.totalorder %s346, %s349
      %p355 = scmp.eq.s32.totalorder %s64, 0
      %p356 = por %p354, %p355
      %p357 = scmp.ne.s32.totalorder %s346, %s349
      %p358 = scmp.eq.s32.totalorder %s69, 3
      %p359 = por %p357, %p358
      %p360 = scmp.ne.s32.totalorder %s349, %s350
      %p361 = scmp.eq.s32.totalorder %s69, 0
      %p362 = por %p360, %p361
      %p363 = scmp.ne.s32.totalorder %s349, %s350
      %p364 = scmp.eq.s32.totalorder %s70, 3
      %p365 = por %p363, %p364
      %p367 = scmp.ne.s32.totalorder %s350, %s366
      %p368 = scmp.eq.s32.totalorder %s70, 0
      %p369 = por %p367, %p368
      %s370 = ssub.s32 %s72, %s79
      %p371 = scmp.eq.s32.totalorder %s370, 0
      %s373 = sadd.s32 %s372, 1
      %s374 = scalar_select %p371, %s372, %s373
      %p377 = pneg %p371
      %p378 = scmp.eq.s32.totalorder %s64, 3
      %p379 = por %p377, %p378
      %p380 = scmp.ne.s32.totalorder %s372, %s375
      %p381 = scmp.eq.s32.totalorder %s64, 0
      %p382 = por %p380, %p381
      %p383 = scmp.ne.s32.totalorder %s372, %s375
      %p384 = scmp.eq.s32.totalorder %s69, 3
      %p385 = por %p383, %p384
      %p386 = scmp.ne.s32.totalorder %s375, %s376
      %p387 = scmp.eq.s32.totalorder %s69, 0
      %p388 = por %p386, %p387
      %p389 = scmp.ne.s32.totalorder %s375, %s376
      %p390 = scmp.eq.s32.totalorder %s70, 3
      %p391 = por %p389, %p390
      %p393 = scmp.ne.s32.totalorder %s376, %s392
      %p394 = scmp.eq.s32.totalorder %s70, 0
      %p395 = por %p393, %p394
      %s396 = ssub.s32 %s72, %s79
      %p397 = scmp.eq.s32.totalorder %s396, 0
      %s399 = sadd.s32 %s398, 1
      %s400 = scalar_select %p397, %s398, %s399
      %p403 = pneg %p397
      %p404 = scmp.eq.s32.totalorder %s64, 3
      %p405 = por %p403, %p404
      %p406 = scmp.ne.s32.totalorder %s398, %s401
      %p407 = scmp.eq.s32.totalorder %s64, 0
      %p408 = por %p406, %p407
      %p409 = scmp.ne.s32.totalorder %s398, %s401
      %p410 = scmp.eq.s32.totalorder %s69, 3
      %p411 = por %p409, %p410
      %p412 = scmp.ne.s32.totalorder %s401, %s402
      %p413 = scmp.eq.s32.totalorder %s69, 0
      %p414 = por %p412, %p413
      %p415 = scmp.ne.s32.totalorder %s401, %s402
      %p416 = scmp.eq.s32.totalorder %s70, 3
      %p417 = por %p415, %p416
      %p419 = scmp.ne.s32.totalorder %s402, %s418
      %p420 = scmp.eq.s32.totalorder %s70, 0
      %p421 = por %p419, %p420
      %s422 = ssub.s32 %s72, %s79
      %p423 = scmp.eq.s32.totalorder %s422, 0
      %s425 = sadd.s32 %s424, 1
      %s426 = scalar_select %p423, %s424, %s425
      %p429 = pneg %p423
      %p430 = scmp.eq.s32.totalorder %s64, 3
      %p431 = por %p429, %p430
      %p432 = scmp.ne.s32.totalorder %s424, %s427
      %p433 = scmp.eq.s32.totalorder %s64, 0
      %p434 = por %p432, %p433
      %p435 = scmp.ne.s32.totalorder %s424, %s427
      %p436 = scmp.eq.s32.totalorder %s69, 3
      %p437 = por %p435, %p436
      %p438 = scmp.ne.s32.totalorder %s427, %s428
      %p439 = scmp.eq.s32.totalorder %s69, 0
      %p440 = por %p438, %p439
      %p441 = scmp.ne.s32.totalorder %s427, %s428
      %p442 = scmp.eq.s32.totalorder %s70, 3
      %p443 = por %p441, %p442
      %p445 = scmp.ne.s32.totalorder %s428, %s444
      %p446 = scmp.eq.s32.totalorder %s70, 0
      %p447 = por %p445, %p446
      %s448 = ssub.s32 %s72, %s79
      %p449 = scmp.eq.s32.totalorder %s448, 0
      %s451 = sadd.s32 %s450, 1
      %s452 = scalar_select %p449, %s450, %s451
      %p455 = pneg %p449
      %p456 = scmp.eq.s32.totalorder %s64, 3
      %p457 = por %p455, %p456
      %p458 = scmp.ne.s32.totalorder %s450, %s453
      %p459 = scmp.eq.s32.totalorder %s64, 0
      %p460 = por %p458, %p459
      %p461 = scmp.ne.s32.totalorder %s450, %s453
      %p462 = scmp.eq.s32.totalorder %s69, 3
      %p463 = por %p461, %p462
      %p464 = scmp.ne.s32.totalorder %s453, %s454
      %p465 = scmp.eq.s32.totalorder %s69, 0
      %p466 = por %p464, %p465
      %p467 = scmp.ne.s32.totalorder %s453, %s454
      %p468 = scmp.eq.s32.totalorder %s70, 3
      %p469 = por %p467, %p468
      %p471 = scmp.ne.s32.totalorder %s454, %s470
      %p472 = scmp.eq.s32.totalorder %s70, 0
      %p473 = por %p471, %p472
      %s474 = ssub.s32 %s72, %s79
      %p475 = scmp.eq.s32.totalorder %s474, 0
      %s477 = sadd.s32 %s476, 1
      %s478 = scalar_select %p475, %s476, %s477
      %p481 = pneg %p475
      %p482 = scmp.eq.s32.totalorder %s64, 3
      %p483 = por %p481, %p482
      %p484 = scmp.ne.s32.totalorder %s476, %s479
      %p485 = scmp.eq.s32.totalorder %s64, 0
      %p486 = por %p484, %p485
      %p487 = scmp.ne.s32.totalorder %s476, %s479
      %p488 = scmp.eq.s32.totalorder %s69, 3
      %p489 = por %p487, %p488
      %p490 = scmp.ne.s32.totalorder %s479, %s480
      %p491 = scmp.eq.s32.totalorder %s69, 0
      %p492 = por %p490, %p491
      %p493 = scmp.ne.s32.totalorder %s479, %s480
      %p494 = scmp.eq.s32.totalorder %s70, 3
      %p495 = por %p493, %p494
      %p497 = scmp.ne.s32.totalorder %s480, %s496
      %p498 = scmp.eq.s32.totalorder %s70, 0
      %p499 = por %p497, %p498
      %s500 = ssub.s32 %s72, %s79
      %p501 = scmp.eq.s32.totalorder %s500, 0
      %s503 = sadd.s32 %s502, 1
      %s504 = scalar_select %p501, %s502, %s503
      %p507 = pneg %p501
      %p508 = scmp.eq.s32.totalorder %s64, 3
      %p509 = por %p507, %p508
      %p510 = scmp.ne.s32.totalorder %s502, %s505
      %p511 = scmp.eq.s32.totalorder %s64, 0
      %p512 = por %p510, %p511
      %p513 = scmp.ne.s32.totalorder %s502, %s505
      %p514 = scmp.eq.s32.totalorder %s69, 3
      %p515 = por %p513, %p514
      %p516 = scmp.ne.s32.totalorder %s505, %s506
      %p517 = scmp.eq.s32.totalorder %s69, 0
      %p518 = por %p516, %p517
      %p519 = scmp.ne.s32.totalorder %s505, %s506
      %p520 = scmp.eq.s32.totalorder %s70, 3
      %p521 = por %p519, %p520
      %p523 = scmp.ne.s32.totalorder %s506, %s522
      %p524 = scmp.eq.s32.totalorder %s70, 0
      %p525 = por %p523, %p524
      %s526 = ssub.s32 %s72, %s79
      %p527 = scmp.eq.s32.totalorder %s526, 0
      %s529 = sadd.s32 %s528, 1
      %s530 = scalar_select %p527, %s528, %s529
      %p533 = pneg %p527
      %p534 = scmp.eq.s32.totalorder %s64, 3
      %p535 = por %p533, %p534
      %p536 = scmp.ne.s32.totalorder %s528, %s531
      %p537 = scmp.eq.s32.totalorder %s64, 0
      %p538 = por %p536, %p537
      %p539 = scmp.ne.s32.totalorder %s528, %s531
      %p540 = scmp.eq.s32.totalorder %s69, 3
      %p541 = por %p539, %p540
      %p542 = scmp.ne.s32.totalorder %s531, %s532
      %p543 = scmp.eq.s32.totalorder %s69, 0
      %p544 = por %p542, %p543
      %p545 = scmp.ne.s32.totalorder %s531, %s532
      %p546 = scmp.eq.s32.totalorder %s70, 3
      %p547 = por %p545, %p546
      %p549 = scmp.ne.s32.totalorder %s532, %s548
      %p550 = scmp.eq.s32.totalorder %s70, 0
      %p551 = por %p549, %p550
      %s552 = ssub.s32 %s72, %s79
      %p553 = scmp.eq.s32.totalorder %s552, 0
      %s555 = sadd.s32 %s554, 1
      %s556 = scalar_select %p553, %s554, %s555
      %p559 = pneg %p553
      %p560 = scmp.eq.s32.totalorder %s64, 3
      %p561 = por %p559, %p560
      %p562 = scmp.ne.s32.totalorder %s554, %s557
      %p563 = scmp.eq.s32.totalorder %s64, 0
      %p564 = por %p562, %p563
      %p565 = scmp.ne.s32.totalorder %s554, %s557
      %p566 = scmp.eq.s32.totalorder %s69, 3
      %p567 = por %p565, %p566
      %p568 = scmp.ne.s32.totalorder %s557, %s558
      %p569 = scmp.eq.s32.totalorder %s69, 0
      %p570 = por %p568, %p569
      %p571 = scmp.ne.s32.totalorder %s557, %s558
      %p572 = scmp.eq.s32.totalorder %s70, 3
      %p573 = por %p571, %p572
      %p575 = scmp.ne.s32.totalorder %s558, %s574
      %p576 = scmp.eq.s32.totalorder %s70, 0
      %p577 = por %p575, %p576
      %s578 = ssub.s32 %s72, %s79
      %p579 = scmp.eq.s32.totalorder %s578, 0
      %s581 = sadd.s32 %s580, 1
      %s582 = scalar_select %p579, %s580, %s581
      %p585 = pneg %p579
      %p586 = scmp.eq.s32.totalorder %s64, 3
      %p587 = por %p585, %p586
      %p588 = scmp.ne.s32.totalorder %s580, %s583
      %p589 = scmp.eq.s32.totalorder %s64, 0
      %p590 = por %p588, %p589
      %p591 = scmp.ne.s32.totalorder %s580, %s583
      %p592 = scmp.eq.s32.totalorder %s69, 3
      %p593 = por %p591, %p592
      %p594 = scmp.ne.s32.totalorder %s583, %s584
      %p595 = scmp.eq.s32.totalorder %s69, 0
      %p596 = por %p594, %p595
      %p597 = scmp.ne.s32.totalorder %s583, %s584
      %p598 = scmp.eq.s32.totalorder %s70, 3
      %p599 = por %p597, %p598
      %p601 = scmp.ne.s32.totalorder %s584, %s600
      %p602 = scmp.eq.s32.totalorder %s70, 0
      %p603 = por %p601, %p602
      %s604 = ssub.s32 %s72, %s79
      %p605 = scmp.eq.s32.totalorder %s604, 0
      %s607 = sadd.s32 %s606, 1
      %s608 = scalar_select %p605, %s606, %s607
      %p611 = pneg %p605
      %p612 = scmp.eq.s32.totalorder %s64, 3
      %p613 = por %p611, %p612
      %p614 = scmp.ne.s32.totalorder %s606, %s609
      %p615 = scmp.eq.s32.totalorder %s64, 0
      %p616 = por %p614, %p615
      %p617 = scmp.ne.s32.totalorder %s606, %s609
      %p618 = scmp.eq.s32.totalorder %s69, 3
      %p619 = por %p617, %p618
      %p620 = scmp.ne.s32.totalorder %s609, %s610
      %p621 = scmp.eq.s32.totalorder %s69, 0
      %p622 = por %p620, %p621
      %p623 = scmp.ne.s32.totalorder %s609, %s610
      %p624 = scmp.eq.s32.totalorder %s70, 3
      %p625 = por %p623, %p624
      %p627 = scmp.ne.s32.totalorder %s610, %s626
      %p628 = scmp.eq.s32.totalorder %s70, 0
      %p629 = por %p627, %p628
      %s630 = ssub.s32 %s72, %s79
      %p631 = scmp.eq.s32.totalorder %s630, 0
      %s633 = sadd.s32 %s632, 1
      %s634 = scalar_select %p631, %s632, %s633
      %p637 = pneg %p631
      %p638 = scmp.eq.s32.totalorder %s64, 3
      %p639 = por %p637, %p638
      %p640 = scmp.ne.s32.totalorder %s632, %s635
      %p641 = scmp.eq.s32.totalorder %s64, 0
      %p642 = por %p640, %p641
      %p643 = scmp.ne.s32.totalorder %s632, %s635
      %p644 = scmp.eq.s32.totalorder %s69, 3
      %p645 = por %p643, %p644
      %p646 = scmp.ne.s32.totalorder %s635, %s636
      %p647 = scmp.eq.s32.totalorder %s69, 0
      %p648 = por %p646, %p647
      %p649 = scmp.ne.s32.totalorder %s635, %s636
      %p650 = scmp.eq.s32.totalorder %s70, 3
      %p651 = por %p649, %p650
      %p653 = scmp.ne.s32.totalorder %s636, %s652
      %p654 = scmp.eq.s32.totalorder %s70, 0
      %p655 = por %p653, %p654
      %s657 = sadd.s32 %s656, 1
      %p660 = scmp.eq.s32.totalorder %s64, 3
      %p661 = scmp.ne.s32.totalorder %s656, %s658
      %p662 = scmp.eq.s32.totalorder %s64, 0
      %p663 = por %p661, %p662
      %p664 = scmp.ne.s32.totalorder %s656, %s658
      %p665 = scmp.eq.s32.totalorder %s69, 3
      %p666 = por %p664, %p665
      %p667 = scmp.ne.s32.totalorder %s658, %s659
      %p668 = scmp.eq.s32.totalorder %s69, 0
      %p669 = por %p667, %p668
      %p670 = scmp.ne.s32.totalorder %s658, %s659
      %p671 = scmp.eq.s32.totalorder %s70, 3
      %p672 = por %p670, %p671
      %p674 = scmp.ne.s32.totalorder %s659, %s673
      %p675 = scmp.eq.s32.totalorder %s70, 0
      %p676 = por %p674, %p675
      %s678 = sadd.s32 %s677, 1
      %p681 = scmp.eq.s32.totalorder %s64, 3
      %p682 = scmp.ne.s32.totalorder %s677, %s679
      %p683 = scmp.eq.s32.totalorder %s64, 0
      %p684 = por %p682, %p683
      %p685 = scmp.ne.s32.totalorder %s677, %s679
      %p686 = scmp.eq.s32.totalorder %s69, 3
      %p687 = por %p685, %p686
      %p688 = scmp.ne.s32.totalorder %s679, %s680
      %p689 = scmp.eq.s32.totalorder %s69, 0
      %p690 = por %p688, %p689
      %p691 = scmp.ne.s32.totalorder %s679, %s680
      %p692 = scmp.eq.s32.totalorder %s70, 3
      %p693 = por %p691, %p692
      %p695 = scmp.ne.s32.totalorder %s680, %s694
      %p696 = scmp.eq.s32.totalorder %s70, 0
      %p697 = por %p695, %p696
      %s699 = sadd.s32 %s698, 1
      %p702 = scmp.eq.s32.totalorder %s64, 3
      %p703 = scmp.ne.s32.totalorder %s698, %s700
      %p704 = scmp.eq.s32.totalorder %s64, 0
      %p705 = por %p703, %p704
      %p706 = scmp.ne.s32.totalorder %s698, %s700
      %p707 = scmp.eq.s32.totalorder %s69, 3
      %p708 = por %p706, %p707
      %p709 = scmp.ne.s32.totalorder %s700, %s701
      %p710 = scmp.eq.s32.totalorder %s69, 0
      %p711 = por %p709, %p710
      %p712 = scmp.ne.s32.totalorder %s700, %s701
      %p713 = scmp.eq.s32.totalorder %s70, 3
      %p714 = por %p712, %p713
      %p716 = scmp.ne.s32.totalorder %s701, %s715
      %p717 = scmp.eq.s32.totalorder %s70, 0
      %p718 = por %p716, %p717
      %s720 = sadd.s32 %s719, 1
      %p723 = scmp.eq.s32.totalorder %s64, 3
      %p724 = scmp.ne.s32.totalorder %s719, %s721
      %p725 = scmp.eq.s32.totalorder %s64, 0
      %p726 = por %p724, %p725
      %p727 = scmp.ne.s32.totalorder %s719, %s721
      %p728 = scmp.eq.s32.totalorder %s69, 3
      %p729 = por %p727, %p728
      %p730 = scmp.ne.s32.totalorder %s721, %s722
      %p731 = scmp.eq.s32.totalorder %s69, 0
      %p732 = por %p730, %p731
      %p733 = scmp.ne.s32.totalorder %s721, %s722
      %p734 = scmp.eq.s32.totalorder %s70, 3
      %p735 = por %p733, %p734
      %p737 = scmp.ne.s32.totalorder %s722, %s736
      %p738 = scmp.eq.s32.totalorder %s70, 0
      %p739 = por %p737, %p738
      %s740 = ssub.s32 %s71, %s83
      %p741 = scmp.eq.s32.totalorder %s740, 0
      %s743 = sadd.s32 %s742, 1
      %s744 = scalar_select %p741, %s742, %s743
      %p747 = pneg %p741
      %p748 = scmp.eq.s32.totalorder %s64, 3
      %p749 = por %p747, %p748
      %p750 = scmp.ne.s32.totalorder %s742, %s745
      %p751 = scmp.eq.s32.totalorder %s64, 0
      %p752 = por %p750, %p751
      %p753 = scmp.ne.s32.totalorder %s742, %s745
      %p754 = scmp.eq.s32.totalorder %s69, 3
      %p755 = por %p753, %p754
      %p756 = scmp.ne.s32.totalorder %s745, %s746
      %p757 = scmp.eq.s32.totalorder %s69, 0
      %p758 = por %p756, %p757
      %p759 = scmp.ne.s32.totalorder %s745, %s746
      %p760 = scmp.eq.s32.totalorder %s70, 3
      %p761 = por %p759, %p760
      %p763 = scmp.ne.s32.totalorder %s746, %s762
      %p764 = scmp.eq.s32.totalorder %s70, 0
      %p765 = por %p763, %p764
      %p766 = scmp.le.s32.totalorder 1, %s64
      %p767 = scmp.lt.s32.totalorder %s64, 5
      %p768 = pnand %p766, %p767
      %p769 = pneg %p768
      // Predicated region
      $region9: #{pallas_decoder_forward.1} parent=5 // pred_check
        _
      $region10: #{pallas_decoder_forward.1} parent=5 // pred_check_branch
        %771 = sbr.rel (%p768) target = $region12
      $region11: #{pallas_decoder_forward.1} parent=5 // pred_region
        %s772 = ssub.s32 %s64, 1
        // Predicated region
        $region13: #{pallas_decoder_forward.1} parent=11 // pred_check
          %p773 = pneg %p669
        $region14: #{pallas_decoder_forward.1} parent=11 // pred_check_branch
          %775 = sbr.rel (%p773) target = $region16
        $region15: #{pallas_decoder_forward.1} parent=11 // pred_region
          %s777 = ssub.s32 16, 16
          %778 = vsyncadd [#allocation35], %s777
          %s780 = sshll.u32 [#allocation34], 4
          %s781 = int_to_ptr.vmem [resolvable:$true] %s780
          %783 = dma.hbm_to_vmem [thread:$0]  %s22, 16, %s781, [#allocation35]
        $region16: #{pallas_decoder_forward.1} parent=11 // pred_fallthru
          _
        // Predicated region
        $region17: #{pallas_decoder_forward.1} parent=11 // pred_check
          %p784 = pneg %p690
        $region18: #{pallas_decoder_forward.1} parent=11 // pred_check_branch
          %786 = sbr.rel (%p784) target = $region20
        $region19: #{pallas_decoder_forward.1} parent=11 // pred_region
          %s788 = ssub.s32 16, 16
          %789 = vsyncadd [#allocation35], %s788
          %s791 = sshll.u32 [#allocation36], 4
          %s792 = int_to_ptr.vmem [resolvable:$true] %s791
          %794 = dma.hbm_to_vmem [thread:$0]  %s23, 16, %s792, [#allocation35]
        $region20: #{pallas_decoder_forward.1} parent=11 // pred_fallthru
          _
        // Predicated region
        $region21: #{pallas_decoder_forward.1} parent=11 // pred_check
          %p795 = pneg %p711
        $region22: #{pallas_decoder_forward.1} parent=11 // pred_check_branch
          %797 = sbr.rel (%p795) target = $region24
        $region23: #{pallas_decoder_forward.1} parent=11 // pred_region
          %s799 = ssub.s32 512, 512
          %800 = vsyncadd [#allocation38], %s799
          %s801 = sshll.u32 [#allocation37], 4
          %s802 = int_to_ptr.vmem [resolvable:$true] %s801
          %807 = dma.hbm_to_vmem [thread:$0]  %s24, 512, %s802, [#allocation38], 128, 128, 8
        $region24: #{pallas_decoder_forward.1} parent=11 // pred_fallthru
          _
        // Predicated region
        $region25: #{pallas_decoder_forward.1} parent=11 // pred_check
          %p808 = pneg %p732
        $region26: #{pallas_decoder_forward.1} parent=11 // pred_check_branch
          %810 = sbr.rel (%p808) target = $region28
        $region27: #{pallas_decoder_forward.1} parent=11 // pred_region
          %s812 = ssub.s32 16, 16
          %813 = vsyncadd [#allocation38], %s812
          %s815 = sshll.u32 [#allocation39], 4
          %s816 = int_to_ptr.vmem [resolvable:$true] %s815
          %818 = dma.hbm_to_vmem [thread:$0]  %s25, 16, %s816, [#allocation38]
        $region28: #{pallas_decoder_forward.1} parent=11 // pred_fallthru
          _
      $region12: #{pallas_decoder_forward.1} parent=5 // pred_fallthru
        _
      %p819 = scmp.lt.s32.totalorder %s64, 4
      // Predicated region
      $region29: #{pallas_decoder_forward.1} parent=5 // pred_check
        %p820 = pneg %p819
      $region30: #{pallas_decoder_forward.1} parent=5 // pred_check_branch
        %822 = sbr.rel (%p820) target = $region32
      $region31: #{pallas_decoder_forward.1} parent=5 // pred_region
        // Predicated region
        $region33: #{pallas_decoder_forward.1} parent=31 // pred_check
          %p823 = pneg %p96
        $region34: #{pallas_decoder_forward.1} parent=31 // pred_check_branch
          %825 = sbr.rel (%p823) target = $region36
        $region35: #{pallas_decoder_forward.1} parent=31 // pred_region
          %s826 = sand.u32 %s86, 1
          %s827 = scalar_lea.sflag [#allocation8], %s826
          %s828 = sand.u32 %s86, 1
          %s829 = smul.addr %s828, 8
          %s830 = scalar_lea.vmem [#allocation7], %s829
          %s832 = ssub.s32 128, 128
          %833 = vsyncadd %s827, %s832
          %s834 = smul.addr %s71, 128
          %s835 = scalar_lea.hbm %s0, %s834
          %s837 = sshll.u32 %s830, 4
          %s838 = int_to_ptr.vmem [resolvable:$true] %s837
          %840 = dma.hbm_to_vmem [thread:$0]  %s835, 128, %s838, %s827
        $region36: #{pallas_decoder_forward.1} parent=31 // pred_fallthru
          _
        // Predicated region
        $region37: #{pallas_decoder_forward.1} parent=31 // pred_check
          %p841 = pneg %p122
        $region38: #{pallas_decoder_forward.1} parent=31 // pred_check_branch
          %843 = sbr.rel (%p841) target = $region40
        $region39: #{pallas_decoder_forward.1} parent=31 // pred_region
          %p844 = scmp.lt.s32.totalorder %s71, 1
          %s845 = scalar_select %p844, %s71, 1
          %s846 = smul.addr %s845, 2
          %s847 = smul.addr %s846, 8
          %s848 = scalar_lea.vmem %s1, %s847
        $region40: #{pallas_decoder_forward.1} parent=31 // pred_fallthru
          _
        // Predicated region
        $region41: #{pallas_decoder_forward.1} parent=31 // pred_check
          %p849 = pneg %p148
        $region42: #{pallas_decoder_forward.1} parent=31 // pred_check_branch
          %851 = sbr.rel (%p849) target = $region44
        $region43: #{pallas_decoder_forward.1} parent=31 // pred_region
          %p852 = scmp.lt.s32.totalorder %s72, 1
          %s853 = scalar_select %p852, %s72, 1
          %s854 = smul.addr %s853, 4
          %s855 = smul.addr %s854, 8
          %s856 = scalar_lea.vmem %s2, %s855
        $region44: #{pallas_decoder_forward.1} parent=31 // pred_fallthru
          _
        // Predicated region
        $region45: #{pallas_decoder_forward.1} parent=31 // pred_check
          %p857 = pneg %p174
        $region46: #{pallas_decoder_forward.1} parent=31 // pred_check_branch
          %859 = sbr.rel (%p857) target = $region48
        $region47: #{pallas_decoder_forward.1} parent=31 // pred_region
          %s860 = sand.u32 %s64, 1
          %s861 = scalar_lea.sflag [#allocation11], %s860
          %s862 = sand.u32 %s164, 1
          %s863 = scalar_lea.vmem [#allocation10], %s862
          %s865 = ssub.s32 16, 16
          %866 = vsyncadd %s861, %s865
          %s867 = smul.addr %s72, 16
          %s868 = scalar_lea.hbm %s3, %s867
          %s870 = sshll.u32 %s863, 4
          %s871 = int_to_ptr.vmem [resolvable:$true] %s870
          %873 = dma.hbm_to_vmem [thread:$0]  %s868, 16, %s871, %s861
        $region48: #{pallas_decoder_forward.1} parent=31 // pred_fallthru
          _
        // Predicated region
        $region49: #{pallas_decoder_forward.1} parent=31 // pred_check
          %p874 = pneg %p200
        $region50: #{pallas_decoder_forward.1} parent=31 // pred_check_branch
          %876 = sbr.rel (%p874) target = $region52
        $region51: #{pallas_decoder_forward.1} parent=31 // pred_region
          %p877 = scmp.lt.s32.totalorder %s72, 1
          %s878 = scalar_select %p877, %s72, 1
          %s879 = smul.addr %s878, 4
          %s880 = smul.addr %s879, 8
          %s881 = scalar_lea.vmem %s4, %s880
        $region52: #{pallas_decoder_forward.1} parent=31 // pred_fallthru
          _
        // Predicated region
        $region53: #{pallas_decoder_forward.1} parent=31 // pred_check
          %p882 = pneg %p226
        $region54: #{pallas_decoder_forward.1} parent=31 // pred_check_branch
          %884 = sbr.rel (%p882) target = $region56
        $region55: #{pallas_decoder_forward.1} parent=31 // pred_region
          %s885 = sand.u32 %s64, 1
          %s886 = scalar_lea.sflag [#allocation11], %s885
          %s887 = sand.u32 %s216, 1
          %s888 = scalar_lea.vmem [#allocation12], %s887
          %s890 = ssub.s32 16, 16
          %891 = vsyncadd %s886, %s890
          %s892 = smul.addr %s72, 16
          %s893 = scalar_lea.hbm %s5, %s892
          %s895 = sshll.u32 %s888, 4
          %s896 = int_to_ptr.vmem [resolvable:$true] %s895
          %898 = dma.hbm_to_vmem [thread:$0]  %s893, 16, %s896, %s886
        $region56: #{pallas_decoder_forward.1} parent=31 // pred_fallthru
          _
        // Predicated region
        $region57: #{pallas_decoder_forward.1} parent=31 // pred_check
          %p899 = pneg %p252
        $region58: #{pallas_decoder_forward.1} parent=31 // pred_check_branch
          %901 = sbr.rel (%p899) target = $region60
        $region59: #{pallas_decoder_forward.1} parent=31 // pred_region
          %p902 = scmp.lt.s32.totalorder %s72, 1
          %s903 = scalar_select %p902, %s72, 1
          %s904 = smul.addr %s903, 4
          %s905 = smul.addr %s904, 8
          %s906 = scalar_lea.vmem %s6, %s905
        $region60: #{pallas_decoder_forward.1} parent=31 // pred_fallthru
          _
        // Predicated region
        $region61: #{pallas_decoder_forward.1} parent=31 // pred_check
          %p907 = pneg %p278
        $region62: #{pallas_decoder_forward.1} parent=31 // pred_check_branch
          %909 = sbr.rel (%p907) target = $region64
        $region63: #{pallas_decoder_forward.1} parent=31 // pred_region
          %s910 = sand.u32 %s64, 1
          %s911 = scalar_lea.sflag [#allocation14], %s910
          %s912 = sand.u32 %s268, 1
          %s913 = scalar_lea.vmem [#allocation13], %s912
          %s915 = ssub.s32 16, 16
          %916 = vsyncadd %s911, %s915
          %s917 = smul.addr %s72, 16
          %s918 = scalar_lea.hbm %s7, %s917
          %s920 = sshll.u32 %s913, 4
          %s921 = int_to_ptr.vmem [resolvable:$true] %s920
          %923 = dma.hbm_to_vmem [thread:$0]  %s918, 16, %s921, %s911
        $region64: #{pallas_decoder_forward.1} parent=31 // pred_fallthru
          _
        // Predicated region
        $region65: #{pallas_decoder_forward.1} parent=31 // pred_check
          %p924 = pneg %p304
        $region66: #{pallas_decoder_forward.1} parent=31 // pred_check_branch
          %926 = sbr.rel (%p924) target = $region68
        $region67: #{pallas_decoder_forward.1} parent=31 // pred_region
          %s927 = sand.u32 %s64, 1
          %s928 = scalar_lea.sflag [#allocation14], %s927
          %s929 = sand.u32 %s294, 1
          %s930 = smul.addr %s929, 32
          %s931 = scalar_lea.vmem [#allocation15], %s930
          %s933 = ssub.s32 512, 512
          %934 = vsyncadd %s928, %s933
          %s935 = smul.addr %s72, 4
          %s936 = smul.addr %s935, 128
          %s937 = scalar_lea.hbm %s8, %s936
          %s938 = sshll.u32 %s931, 4
          %s939 = int_to_ptr.vmem [resolvable:$true] %s938
          %944 = dma.hbm_to_vmem [thread:$0]  %s937, 512, %s939, %s928, 128, 128, 8
        $region68: #{pallas_decoder_forward.1} parent=31 // pred_fallthru
          _
        // Predicated region
        $region69: #{pallas_decoder_forward.1} parent=31 // pred_check
          %p945 = pneg %p330
        $region70: #{pallas_decoder_forward.1} parent=31 // pred_check_branch
          %947 = sbr.rel (%p945) target = $region72
        $region71: #{pallas_decoder_forward.1} parent=31 // pred_region
          %s948 = sand.u32 %s64, 1
          %s949 = scalar_lea.sflag [#allocation17], %s948
          %s950 = sand.u32 %s320, 1
          %s951 = scalar_lea.vmem [#allocation16], %s950
          %s953 = ssub.s32 16, 16
          %954 = vsyncadd %s949, %s953
          %s955 = smul.addr %s72, 16
          %s956 = scalar_lea.hbm %s9, %s955
          %s958 = sshll.u32 %s951, 4
          %s959 = int_to_ptr.vmem [resolvable:$true] %s958
          %961 = dma.hbm_to_vmem [thread:$0]  %s956, 16, %s959, %s949
        $region72: #{pallas_decoder_forward.1} parent=31 // pred_fallthru
          _
        // Predicated region
        $region73: #{pallas_decoder_forward.1} parent=31 // pred_check
          %p962 = pneg %p356
        $region74: #{pallas_decoder_forward.1} parent=31 // pred_check_branch
          %964 = sbr.rel (%p962) target = $region76
        $region75: #{pallas_decoder_forward.1} parent=31 // pred_region
          %s965 = sand.u32 %s64, 1
          %s966 = scalar_lea.sflag [#allocation17], %s965
          %s967 = sand.u32 %s346, 1
          %s968 = smul.addr %s967, 32
          %s969 = scalar_lea.vmem [#allocation18], %s968
          %s971 = ssub.s32 512, 512
          %972 = vsyncadd %s966, %s971
          %s973 = smul.addr %s72, 4
          %s974 = smul.addr %s973, 128
          %s975 = scalar_lea.hbm %s10, %s974
          %s976 = sshll.u32 %s969, 4
          %s977 = int_to_ptr.vmem [resolvable:$true] %s976
          %982 = dma.hbm_to_vmem [thread:$0]  %s975, 512, %s977, %s966, 128, 128, 8
        $region76: #{pallas_decoder_forward.1} parent=31 // pred_fallthru
          _
        // Predicated region
        $region77: #{pallas_decoder_forward.1} parent=31 // pred_check
          %p983 = pneg %p382
        $region78: #{pallas_decoder_forward.1} parent=31 // pred_check_branch
          %985 = sbr.rel (%p983) target = $region80
        $region79: #{pallas_decoder_forward.1} parent=31 // pred_region
          %s986 = sand.u32 %s64, 1
          %s987 = scalar_lea.sflag [#allocation20], %s986
          %s988 = sand.u32 %s372, 1
          %s989 = scalar_lea.vmem [#allocation19], %s988
          %s991 = ssub.s32 16, 16
          %992 = vsyncadd %s987, %s991
          %s993 = smul.addr %s72, 16
          %s994 = scalar_lea.hbm %s11, %s993
          %s996 = sshll.u32 %s989, 4
          %s997 = int_to_ptr.vmem [resolvable:$true] %s996
          %999 = dma.hbm_to_vmem [thread:$0]  %s994, 16, %s997, %s987
        $region80: #{pallas_decoder_forward.1} parent=31 // pred_fallthru
          _
        // Predicated region
        $region81: #{pallas_decoder_forward.1} parent=31 // pred_check
          %p1000 = pneg %p408
        $region82: #{pallas_decoder_forward.1} parent=31 // pred_check_branch
          %1002 = sbr.rel (%p1000) target = $region84
        $region83: #{pallas_decoder_forward.1} parent=31 // pred_region
          %s1003 = sand.u32 %s64, 1
          %s1004 = scalar_lea.sflag [#allocation20], %s1003
          %s1005 = sand.u32 %s398, 1
          %s1006 = smul.addr %s1005, 32
          %s1007 = scalar_lea.vmem [#allocation21], %s1006
          %s1009 = ssub.s32 512, 512
          %1010 = vsyncadd %s1004, %s1009
          %s1011 = smul.addr %s72, 4
          %s1012 = smul.addr %s1011, 128
          %s1013 = scalar_lea.hbm %s12, %s1012
          %s1014 = sshll.u32 %s1007, 4
          %s1015 = int_to_ptr.vmem [resolvable:$true] %s1014
          %1020 = dma.hbm_to_vmem [thread:$0]  %s1013, 512, %s1015, %s1004, 128, 128, 8
        $region84: #{pallas_decoder_forward.1} parent=31 // pred_fallthru
          _
        // Predicated region
        $region85: #{pallas_decoder_forward.1} parent=31 // pred_check
          %p1021 = pneg %p434
        $region86: #{pallas_decoder_forward.1} parent=31 // pred_check_branch
          %1023 = sbr.rel (%p1021) target = $region88
        $region87: #{pallas_decoder_forward.1} parent=31 // pred_region
          %s1024 = sand.u32 %s64, 1
          %s1025 = scalar_lea.sflag [#allocation23], %s1024
          %s1026 = sand.u32 %s424, 1
          %s1027 = scalar_lea.vmem [#allocation22], %s1026
          %s1029 = ssub.s32 16, 16
          %1030 = vsyncadd %s1025, %s1029
          %s1031 = smul.addr %s72, 16
          %s1032 = scalar_lea.hbm %s13, %s1031
          %s1034 = sshll.u32 %s1027, 4
          %s1035 = int_to_ptr.vmem [resolvable:$true] %s1034
          %1037 = dma.hbm_to_vmem [thread:$0]  %s1032, 16, %s1035, %s1025
        $region88: #{pallas_decoder_forward.1} parent=31 // pred_fallthru
          _
        // Predicated region
        $region89: #{pallas_decoder_forward.1} parent=31 // pred_check
          %p1038 = pneg %p460
        $region90: #{pallas_decoder_forward.1} parent=31 // pred_check_branch
          %1040 = sbr.rel (%p1038) target = $region92
        $region91: #{pallas_decoder_forward.1} parent=31 // pred_region
          %p1041 = scmp.lt.s32.totalorder %s72, 1
          %s1042 = scalar_select %p1041, %s72, 1
          %s1043 = smul.addr %s1042, 8
          %s1044 = smul.addr %s1043, 8
          %s1045 = scalar_lea.vmem %s14, %s1044
        $region92: #{pallas_decoder_forward.1} parent=31 // pred_fallthru
          _
        // Predicated region
        $region93: #{pallas_decoder_forward.1} parent=31 // pred_check
          %p1046 = pneg %p486
        $region94: #{pallas_decoder_forward.1} parent=31 // pred_check_branch
          %1048 = sbr.rel (%p1046) target = $region96
        $region95: #{pallas_decoder_forward.1} parent=31 // pred_region
          %s1049 = sand.u32 %s64, 1
          %s1050 = scalar_lea.sflag [#allocation23], %s1049
          %s1051 = sand.u32 %s476, 1
          %s1052 = scalar_lea.vmem [#allocation24], %s1051
          %s1054 = ssub.s32 16, 16
          %1055 = vsyncadd %s1050, %s1054
          %s1056 = smul.addr %s72, 16
          %s1057 = scalar_lea.hbm %s15, %s1056
          %s1059 = sshll.u32 %s1052, 4
          %s1060 = int_to_ptr.vmem [resolvable:$true] %s1059
          %1062 = dma.hbm_to_vmem [thread:$0]  %s1057, 16, %s1060, %s1050
        $region96: #{pallas_decoder_forward.1} parent=31 // pred_fallthru
          _
        // Predicated region
        $region97: #{pallas_decoder_forward.1} parent=31 // pred_check
          %p1063 = pneg %p512
        $region98: #{pallas_decoder_forward.1} parent=31 // pred_check_branch
          %1065 = sbr.rel (%p1063) target = $region100
        $region99: #{pallas_decoder_forward.1} parent=31 // pred_region
          %s1066 = sand.u32 %s64, 1
          %s1067 = scalar_lea.sflag [#allocation26], %s1066
          %s1068 = sand.u32 %s502, 1
          %s1069 = scalar_lea.vmem [#allocation25], %s1068
          %s1071 = ssub.s32 16, 16
          %1072 = vsyncadd %s1067, %s1071
          %s1073 = smul.addr %s72, 16
          %s1074 = scalar_lea.hbm %s16, %s1073
          %s1076 = sshll.u32 %s1069, 4
          %s1077 = int_to_ptr.vmem [resolvable:$true] %s1076
          %1079 = dma.hbm_to_vmem [thread:$0]  %s1074, 16, %s1077, %s1067
        $region100: #{pallas_decoder_forward.1} parent=31 // pred_fallthru
          _
        // Predicated region
        $region101: #{pallas_decoder_forward.1} parent=31 // pred_check
          %p1080 = pneg %p538
        $region102: #{pallas_decoder_forward.1} parent=31 // pred_check_branch
          %1082 = sbr.rel (%p1080) target = $region104
        $region103: #{pallas_decoder_forward.1} parent=31 // pred_region
          %s1083 = sand.u32 %s64, 1
          %s1084 = scalar_lea.sflag [#allocation26], %s1083
          %s1085 = sand.u32 %s528, 1
          %s1086 = scalar_lea.vmem [#allocation27], %s1085
          %s1088 = ssub.s32 16, 16
          %1089 = vsyncadd %s1084, %s1088
          %s1090 = smul.addr %s72, 16
          %s1091 = scalar_lea.hbm %s17, %s1090
          %s1093 = sshll.u32 %s1086, 4
          %s1094 = int_to_ptr.vmem [resolvable:$true] %s1093
          %1096 = dma.hbm_to_vmem [thread:$0]  %s1091, 16, %s1094, %s1084
        $region104: #{pallas_decoder_forward.1} parent=31 // pred_fallthru
          _
        // Predicated region
        $region105: #{pallas_decoder_forward.1} parent=31 // pred_check
          %p1097 = pneg %p564
        $region106: #{pallas_decoder_forward.1} parent=31 // pred_check_branch
          %1099 = sbr.rel (%p1097) target = $region108
        $region107: #{pallas_decoder_forward.1} parent=31 // pred_region
          %s1100 = sand.u32 %s64, 1
          %s1101 = scalar_lea.sflag [#allocation29], %s1100
          %s1102 = sand.u32 %s554, 1
          %s1103 = scalar_lea.vmem [#allocation28], %s1102
          %s1105 = ssub.s32 16, 16
          %1106 = vsyncadd %s1101, %s1105
          %s1107 = smul.addr %s72, 16
          %s1108 = scalar_lea.hbm %s18, %s1107
          %s1110 = sshll.u32 %s1103, 4
          %s1111 = int_to_ptr.vmem [resolvable:$true] %s1110
          %1113 = dma.hbm_to_vmem [thread:$0]  %s1108, 16, %s1111, %s1101
        $region108: #{pallas_decoder_forward.1} parent=31 // pred_fallthru
          _
        // Predicated region
        $region109: #{pallas_decoder_forward.1} parent=31 // pred_check
          %p1114 = pneg %p590
        $region110: #{pallas_decoder_forward.1} parent=31 // pred_check_branch
          %1116 = sbr.rel (%p1114) target = $region112
        $region111: #{pallas_decoder_forward.1} parent=31 // pred_region
          %s1117 = sand.u32 %s64, 1
          %s1118 = scalar_lea.sflag [#allocation29], %s1117
          %s1119 = sand.u32 %s580, 1
          %s1120 = scalar_lea.vmem [#allocation30], %s1119
          %s1122 = ssub.s32 16, 16
          %1123 = vsyncadd %s1118, %s1122
          %s1124 = smul.addr %s72, 16
          %s1125 = scalar_lea.hbm %s19, %s1124
          %s1127 = sshll.u32 %s1120, 4
          %s1128 = int_to_ptr.vmem [resolvable:$true] %s1127
          %1130 = dma.hbm_to_vmem [thread:$0]  %s1125, 16, %s1128, %s1118
        $region112: #{pallas_decoder_forward.1} parent=31 // pred_fallthru
          _
        // Predicated region
        $region113: #{pallas_decoder_forward.1} parent=31 // pred_check
          %p1131 = pneg %p616
        $region114: #{pallas_decoder_forward.1} parent=31 // pred_check_branch
          %1133 = sbr.rel (%p1131) target = $region116
        $region115: #{pallas_decoder_forward.1} parent=31 // pred_region
          %s1134 = sand.u32 %s64, 1
          %s1135 = scalar_lea.sflag [#allocation32], %s1134
          %s1136 = sand.u32 %s606, 1
          %s1137 = scalar_lea.vmem [#allocation31], %s1136
          %s1139 = ssub.s32 16, 16
          %1140 = vsyncadd %s1135, %s1139
          %s1141 = smul.addr %s72, 16
          %s1142 = scalar_lea.hbm %s20, %s1141
          %s1144 = sshll.u32 %s1137, 4
          %s1145 = int_to_ptr.vmem [resolvable:$true] %s1144
          %1147 = dma.hbm_to_vmem [thread:$0]  %s1142, 16, %s1145, %s1135
        $region116: #{pallas_decoder_forward.1} parent=31 // pred_fallthru
          _
        // Predicated region
        $region117: #{pallas_decoder_forward.1} parent=31 // pred_check
          %p1148 = pneg %p642
        $region118: #{pallas_decoder_forward.1} parent=31 // pred_check_branch
          %1150 = sbr.rel (%p1148) target = $region120
        $region119: #{pallas_decoder_forward.1} parent=31 // pred_region
          %s1151 = sand.u32 %s64, 1
          %s1152 = scalar_lea.sflag [#allocation32], %s1151
          %s1153 = sand.u32 %s632, 1
          %s1154 = scalar_lea.vmem [#allocation33], %s1153
          %s1156 = ssub.s32 16, 16
          %1157 = vsyncadd %s1152, %s1156
          %s1158 = smul.addr %s72, 16
          %s1159 = scalar_lea.hbm %s21, %s1158
          %s1161 = sshll.u32 %s1154, 4
          %s1162 = int_to_ptr.vmem [resolvable:$true] %s1161
          %1164 = dma.hbm_to_vmem [thread:$0]  %s1159, 16, %s1162, %s1152
        $region120: #{pallas_decoder_forward.1} parent=31 // pred_fallthru
          _
      $region32: #{pallas_decoder_forward.1} parent=5 // pred_fallthru
        _
      %p1165 = scmp.le.s32.totalorder 1, %s64
      %p1166 = scmp.lt.s32.totalorder %s64, 5
      %p1167 = pnand %p1165, %p1166
      %p1168 = pneg %p1167
      // Predicated region
      $region121: #{pallas_decoder_forward.1} parent=5 // pred_check
        _
      $region122: #{pallas_decoder_forward.1} parent=5 // pred_check_branch
        %1170 = sbr.rel (%p1167) target = $region124
      $region123: #{pallas_decoder_forward.1} parent=5 // pred_region
        %s1171 = ssub.s32 %s64, 1
        %s1172 = sand.u32 %s89, 1
        %s1173 = scalar_lea.sflag [#allocation8], %s1172
        %s1174 = sand.u32 %s89, 1
        %s1175 = smul.addr %s1174, 8
        %s1176 = scalar_lea.vmem [#allocation7], %s1175
        // Predicated region
        $region125: #{pallas_decoder_forward.1} parent=123 // pred_check
          %p1177 = pneg %p102
        $region126: #{pallas_decoder_forward.1} parent=123 // pred_check_branch
          %1179 = sbr.rel (%p1177) target = $region128
        $region127: #{pallas_decoder_forward.1} parent=123 // pred_region
          %1180 = dma.done %s1173, 128
        $region128: #{pallas_decoder_forward.1} parent=123 // pred_fallthru
          _
        %s1181 = sand.u32 %s69, 1
        %s1182 = scalar_lea.sflag [#allocation11], %s1181
        %s1183 = sand.u32 %s167, 1
        %s1184 = scalar_lea.vmem [#allocation10], %s1183
        // Predicated region
        $region129: #{pallas_decoder_forward.1} parent=123 // pred_check
          %p1185 = pneg %p180
        $region130: #{pallas_decoder_forward.1} parent=123 // pred_check_branch
          %1187 = sbr.rel (%p1185) target = $region132
        $region131: #{pallas_decoder_forward.1} parent=123 // pred_region
          %1188 = dma.done %s1182, 16
        $region132: #{pallas_decoder_forward.1} parent=123 // pred_fallthru
          _
        %s1189 = sand.u32 %s69, 1
        %s1190 = scalar_lea.sflag [#allocation11], %s1189
        %s1191 = sand.u32 %s219, 1
        %s1192 = scalar_lea.vmem [#allocation12], %s1191
        // Predicated region
        $region133: #{pallas_decoder_forward.1} parent=123 // pred_check
          %p1193 = pneg %p232
        $region134: #{pallas_decoder_forward.1} parent=123 // pred_check_branch
          %1195 = sbr.rel (%p1193) target = $region136
        $region135: #{pallas_decoder_forward.1} parent=123 // pred_region
          %1196 = dma.done %s1190, 16
        $region136: #{pallas_decoder_forward.1} parent=123 // pred_fallthru
          _
        %s1197 = sand.u32 %s69, 1
        %s1198 = scalar_lea.sflag [#allocation14], %s1197
        %s1199 = sand.u32 %s271, 1
        %s1200 = scalar_lea.vmem [#allocation13], %s1199
        // Predicated region
        $region137: #{pallas_decoder_forward.1} parent=123 // pred_check
          %p1201 = pneg %p284
        $region138: #{pallas_decoder_forward.1} parent=123 // pred_check_branch
          %1203 = sbr.rel (%p1201) target = $region140
        $region139: #{pallas_decoder_forward.1} parent=123 // pred_region
          %1204 = dma.done %s1198, 16
        $region140: #{pallas_decoder_forward.1} parent=123 // pred_fallthru
          _
        %s1205 = sand.u32 %s69, 1
        %s1206 = scalar_lea.sflag [#allocation14], %s1205
        %s1207 = sand.u32 %s297, 1
        %s1208 = smul.addr %s1207, 32
        %s1209 = scalar_lea.vmem [#allocation15], %s1208
        // Predicated region
        $region141: #{pallas_decoder_forward.1} parent=123 // pred_check
          %p1210 = pneg %p310
        $region142: #{pallas_decoder_forward.1} parent=123 // pred_check_branch
          %1212 = sbr.rel (%p1210) target = $region144
        $region143: #{pallas_decoder_forward.1} parent=123 // pred_region
          %1213 = dma.done %s1206, 512
        $region144: #{pallas_decoder_forward.1} parent=123 // pred_fallthru
          _
        %s1214 = sand.u32 %s69, 1
        %s1215 = scalar_lea.sflag [#allocation17], %s1214
        %s1216 = sand.u32 %s323, 1
        %s1217 = scalar_lea.vmem [#allocation16], %s1216
        // Predicated region
        $region145: #{pallas_decoder_forward.1} parent=123 // pred_check
          %p1218 = pneg %p336
        $region146: #{pallas_decoder_forward.1} parent=123 // pred_check_branch
          %1220 = sbr.rel (%p1218) target = $region148
        $region147: #{pallas_decoder_forward.1} parent=123 // pred_region
          %1221 = dma.done %s1215, 16
        $region148: #{pallas_decoder_forward.1} parent=123 // pred_fallthru
          _
        %s1222 = sand.u32 %s69, 1
        %s1223 = scalar_lea.sflag [#allocation17], %s1222
        %s1224 = sand.u32 %s349, 1
        %s1225 = smul.addr %s1224, 32
        %s1226 = scalar_lea.vmem [#allocation18], %s1225
        // Predicated region
        $region149: #{pallas_decoder_forward.1} parent=123 // pred_check
          %p1227 = pneg %p362
        $region150: #{pallas_decoder_forward.1} parent=123 // pred_check_branch
          %1229 = sbr.rel (%p1227) target = $region152
        $region151: #{pallas_decoder_forward.1} parent=123 // pred_region
          %1230 = dma.done %s1223, 512
        $region152: #{pallas_decoder_forward.1} parent=123 // pred_fallthru
          _
        %s1231 = sand.u32 %s69, 1
        %s1232 = scalar_lea.sflag [#allocation20], %s1231
        %s1233 = sand.u32 %s375, 1
        %s1234 = scalar_lea.vmem [#allocation19], %s1233
        // Predicated region
        $region153: #{pallas_decoder_forward.1} parent=123 // pred_check
          %p1235 = pneg %p388
        $region154: #{pallas_decoder_forward.1} parent=123 // pred_check_branch
          %1237 = sbr.rel (%p1235) target = $region156
        $region155: #{pallas_decoder_forward.1} parent=123 // pred_region
          %1238 = dma.done %s1232, 16
        $region156: #{pallas_decoder_forward.1} parent=123 // pred_fallthru
          _
        %s1239 = sand.u32 %s69, 1
        %s1240 = scalar_lea.sflag [#allocation20], %s1239
        %s1241 = sand.u32 %s401, 1
        %s1242 = smul.addr %s1241, 32
        %s1243 = scalar_lea.vmem [#allocation21], %s1242
        // Predicated region
        $region157: #{pallas_decoder_forward.1} parent=123 // pred_check
          %p1244 = pneg %p414
        $region158: #{pallas_decoder_forward.1} parent=123 // pred_check_branch
          %1246 = sbr.rel (%p1244) target = $region160
        $region159: #{pallas_decoder_forward.1} parent=123 // pred_region
          %1247 = dma.done %s1240, 512
        $region160: #{pallas_decoder_forward.1} parent=123 // pred_fallthru
          _
        %s1248 = sand.u32 %s69, 1
        %s1249 = scalar_lea.sflag [#allocation23], %s1248
        %s1250 = sand.u32 %s427, 1
        %s1251 = scalar_lea.vmem [#allocation22], %s1250
        // Predicated region
        $region161: #{pallas_decoder_forward.1} parent=123 // pred_check
          %p1252 = pneg %p440
        $region162: #{pallas_decoder_forward.1} parent=123 // pred_check_branch
          %1254 = sbr.rel (%p1252) target = $region164
        $region163: #{pallas_decoder_forward.1} parent=123 // pred_region
          %1255 = dma.done %s1249, 16
        $region164: #{pallas_decoder_forward.1} parent=123 // pred_fallthru
          _
        %s1256 = sand.u32 %s69, 1
        %s1257 = scalar_lea.sflag [#allocation23], %s1256
        %s1258 = sand.u32 %s479, 1
        %s1259 = scalar_lea.vmem [#allocation24], %s1258
        // Predicated region
        $region165: #{pallas_decoder_forward.1} parent=123 // pred_check
          %p1260 = pneg %p492
        $region166: #{pallas_decoder_forward.1} parent=123 // pred_check_branch
          %1262 = sbr.rel (%p1260) target = $region168
        $region167: #{pallas_decoder_forward.1} parent=123 // pred_region
          %1263 = dma.done %s1257, 16
        $region168: #{pallas_decoder_forward.1} parent=123 // pred_fallthru
          _
        %s1264 = sand.u32 %s69, 1
        %s1265 = scalar_lea.sflag [#allocation26], %s1264
        %s1266 = sand.u32 %s505, 1
        %s1267 = scalar_lea.vmem [#allocation25], %s1266
        // Predicated region
        $region169: #{pallas_decoder_forward.1} parent=123 // pred_check
          %p1268 = pneg %p518
        $region170: #{pallas_decoder_forward.1} parent=123 // pred_check_branch
          %1270 = sbr.rel (%p1268) target = $region172
        $region171: #{pallas_decoder_forward.1} parent=123 // pred_region
          %1271 = dma.done %s1265, 16
        $region172: #{pallas_decoder_forward.1} parent=123 // pred_fallthru
          _
        %s1272 = sand.u32 %s69, 1
        %s1273 = scalar_lea.sflag [#allocation26], %s1272
        %s1274 = sand.u32 %s531, 1
        %s1275 = scalar_lea.vmem [#allocation27], %s1274
        // Predicated region
        $region173: #{pallas_decoder_forward.1} parent=123 // pred_check
          %p1276 = pneg %p544
        $region174: #{pallas_decoder_forward.1} parent=123 // pred_check_branch
          %1278 = sbr.rel (%p1276) target = $region176
        $region175: #{pallas_decoder_forward.1} parent=123 // pred_region
          %1279 = dma.done %s1273, 16
        $region176: #{pallas_decoder_forward.1} parent=123 // pred_fallthru
          _
        %s1280 = sand.u32 %s69, 1
        %s1281 = scalar_lea.sflag [#allocation29], %s1280
        %s1282 = sand.u32 %s557, 1
        %s1283 = scalar_lea.vmem [#allocation28], %s1282
        // Predicated region
        $region177: #{pallas_decoder_forward.1} parent=123 // pred_check
          %p1284 = pneg %p570
        $region178: #{pallas_decoder_forward.1} parent=123 // pred_check_branch
          %1286 = sbr.rel (%p1284) target = $region180
        $region179: #{pallas_decoder_forward.1} parent=123 // pred_region
          %1287 = dma.done %s1281, 16
        $region180: #{pallas_decoder_forward.1} parent=123 // pred_fallthru
          _
        %s1288 = sand.u32 %s69, 1
        %s1289 = scalar_lea.sflag [#allocation29], %s1288
        %s1290 = sand.u32 %s583, 1
        %s1291 = scalar_lea.vmem [#allocation30], %s1290
        // Predicated region
        $region181: #{pallas_decoder_forward.1} parent=123 // pred_check
          %p1292 = pneg %p596
        $region182: #{pallas_decoder_forward.1} parent=123 // pred_check_branch
          %1294 = sbr.rel (%p1292) target = $region184
        $region183: #{pallas_decoder_forward.1} parent=123 // pred_region
          %1295 = dma.done %s1289, 16
        $region184: #{pallas_decoder_forward.1} parent=123 // pred_fallthru
          _
        %s1296 = sand.u32 %s69, 1
        %s1297 = scalar_lea.sflag [#allocation32], %s1296
        %s1298 = sand.u32 %s609, 1
        %s1299 = scalar_lea.vmem [#allocation31], %s1298
        // Predicated region
        $region185: #{pallas_decoder_forward.1} parent=123 // pred_check
          %p1300 = pneg %p622
        $region186: #{pallas_decoder_forward.1} parent=123 // pred_check_branch
          %1302 = sbr.rel (%p1300) target = $region188
        $region187: #{pallas_decoder_forward.1} parent=123 // pred_region
          %1303 = dma.done %s1297, 16
        $region188: #{pallas_decoder_forward.1} parent=123 // pred_fallthru
          _
        %s1304 = sand.u32 %s69, 1
        %s1305 = scalar_lea.sflag [#allocation32], %s1304
        %s1306 = sand.u32 %s635, 1
        %s1307 = scalar_lea.vmem [#allocation33], %s1306
        // Predicated region
        $region189: #{pallas_decoder_forward.1} parent=123 // pred_check
          %p1308 = pneg %p648
        $region190: #{pallas_decoder_forward.1} parent=123 // pred_check_branch
          %1310 = sbr.rel (%p1308) target = $region192
        $region191: #{pallas_decoder_forward.1} parent=123 // pred_region
          %1311 = dma.done %s1305, 16
        $region192: #{pallas_decoder_forward.1} parent=123 // pred_fallthru
          _
        // Predicated region
        $region193: #{pallas_decoder_forward.1} parent=123 // pred_check
          %p1312 = pneg %p669
        $region194: #{pallas_decoder_forward.1} parent=123 // pred_check_branch
          %1314 = sbr.rel (%p1312) target = $region196
        $region195: #{pallas_decoder_forward.1} parent=123 // pred_region
          %1315 = dma.done [#allocation35], 16
        $region196: #{pallas_decoder_forward.1} parent=123 // pred_fallthru
          _
        // Predicated region
        $region197: #{pallas_decoder_forward.1} parent=123 // pred_check
          %p1316 = pneg %p690
        $region198: #{pallas_decoder_forward.1} parent=123 // pred_check_branch
          %1318 = sbr.rel (%p1316) target = $region200
        $region199: #{pallas_decoder_forward.1} parent=123 // pred_region
          %1319 = dma.done [#allocation35], 16
        $region200: #{pallas_decoder_forward.1} parent=123 // pred_fallthru
          _
        // Predicated region
        $region201: #{pallas_decoder_forward.1} parent=123 // pred_check
          %p1320 = pneg %p711
        $region202: #{pallas_decoder_forward.1} parent=123 // pred_check_branch
          %1322 = sbr.rel (%p1320) target = $region204
        $region203: #{pallas_decoder_forward.1} parent=123 // pred_region
          %1323 = dma.done [#allocation38], 512
        $region204: #{pallas_decoder_forward.1} parent=123 // pred_fallthru
          _
        // Predicated region
        $region205: #{pallas_decoder_forward.1} parent=123 // pred_check
          %p1324 = pneg %p732
        $region206: #{pallas_decoder_forward.1} parent=123 // pred_check_branch
          %1326 = sbr.rel (%p1324) target = $region208
        $region207: #{pallas_decoder_forward.1} parent=123 // pred_region
          %1327 = dma.done [#allocation38], 16
        $region208: #{pallas_decoder_forward.1} parent=123 // pred_fallthru
          _
        %s1328 = sand.u32 %s89, 1
        %s1329 = scalar_lea.sflag [#allocation8], %s1328
        %s1330 = sand.u32 %s89, 1
        %s1331 = smul.addr %s1330, 8
        %s1332 = scalar_lea.vmem [#allocation7], %s1331
        %p1333 = pneg %p102
        %p1334 = pneg %p99
        %p1335 = scmp.lt.s32.totalorder %s73, 1
        %s1336 = scalar_select %p1335, %s73, 1
        %s1337 = smul.addr %s1336, 2
        %s1338 = smul.addr %s1337, 8
        %s1339 = scalar_lea.vmem %s1, %s1338
        %p1340 = pneg %p128
        %p1341 = pneg %p125
        %p1342 = scmp.lt.s32.totalorder %s74, 1
        %s1343 = scalar_select %p1342, %s74, 1
        %s1344 = smul.addr %s1343, 4
        %s1345 = smul.addr %s1344, 8
        %s1346 = scalar_lea.vmem %s2, %s1345
        %p1347 = pneg %p154
        %p1348 = pneg %p151
        %s1349 = sand.u32 %s69, 1
        %s1350 = scalar_lea.sflag [#allocation11], %s1349
        %s1351 = sand.u32 %s167, 1
        %s1352 = scalar_lea.vmem [#allocation10], %s1351
        %p1353 = pneg %p180
        %p1354 = pneg %p177
        %p1355 = scmp.lt.s32.totalorder %s74, 1
        %s1356 = scalar_select %p1355, %s74, 1
        %s1357 = smul.addr %s1356, 4
        %s1358 = smul.addr %s1357, 8
        %s1359 = scalar_lea.vmem %s4, %s1358
        %p1360 = pneg %p206
        %p1361 = pneg %p203
        %s1362 = sand.u32 %s69, 1
        %s1363 = scalar_lea.sflag [#allocation11], %s1362
        %s1364 = sand.u32 %s219, 1
        %s1365 = scalar_lea.vmem [#allocation12], %s1364
        %p1366 = pneg %p232
        %p1367 = pneg %p229
        %p1368 = scmp.lt.s32.totalorder %s74, 1
        %s1369 = scalar_select %p1368, %s74, 1
        %s1370 = smul.addr %s1369, 4
        %s1371 = smul.addr %s1370, 8
        %s1372 = scalar_lea.vmem %s6, %s1371
        %p1373 = pneg %p258
        %p1374 = pneg %p255
        %s1375 = sand.u32 %s69, 1
        %s1376 = scalar_lea.sflag [#allocation14], %s1375
        %s1377 = sand.u32 %s271, 1
        %s1378 = scalar_lea.vmem [#allocation13], %s1377
        %p1379 = pneg %p284
        %p1380 = pneg %p281
        %s1381 = sand.u32 %s69, 1
        %s1382 = scalar_lea.sflag [#allocation14], %s1381
        %s1383 = sand.u32 %s297, 1
        %s1384 = smul.addr %s1383, 32
        %s1385 = scalar_lea.vmem [#allocation15], %s1384
        %p1386 = pneg %p310
        %p1387 = pneg %p307
        %s1388 = sand.u32 %s69, 1
        %s1389 = scalar_lea.sflag [#allocation17], %s1388
        %s1390 = sand.u32 %s323, 1
        %s1391 = scalar_lea.vmem [#allocation16], %s1390
        %p1392 = pneg %p336
        %p1393 = pneg %p333
        %s1394 = sand.u32 %s69, 1
        %s1395 = scalar_lea.sflag [#allocation17], %s1394
        %s1396 = sand.u32 %s349, 1
        %s1397 = smul.addr %s1396, 32
        %s1398 = scalar_lea.vmem [#allocation18], %s1397
        %p1399 = pneg %p362
        %p1400 = pneg %p359
        %s1401 = sand.u32 %s69, 1
        %s1402 = scalar_lea.sflag [#allocation20], %s1401
        %s1403 = sand.u32 %s375, 1
        %s1404 = scalar_lea.vmem [#allocation19], %s1403
        %p1405 = pneg %p388
        %p1406 = pneg %p385
        %s1407 = sand.u32 %s69, 1
        %s1408 = scalar_lea.sflag [#allocation20], %s1407
        %s1409 = sand.u32 %s401, 1
        %s1410 = smul.addr %s1409, 32
        %s1411 = scalar_lea.vmem [#allocation21], %s1410
        %p1412 = pneg %p414
        %p1413 = pneg %p411
        %s1414 = sand.u32 %s69, 1
        %s1415 = scalar_lea.sflag [#allocation23], %s1414
        %s1416 = sand.u32 %s427, 1
        %s1417 = scalar_lea.vmem [#allocation22], %s1416
        %p1418 = pneg %p440
        %p1419 = pneg %p437
        %p1420 = scmp.lt.s32.totalorder %s74, 1
        %s1421 = scalar_select %p1420, %s74, 1
        %s1422 = smul.addr %s1421, 8
        %s1423 = smul.addr %s1422, 8
        %s1424 = scalar_lea.vmem %s14, %s1423
        %p1425 = pneg %p466
        %p1426 = pneg %p463
        %s1427 = sand.u32 %s69, 1
        %s1428 = scalar_lea.sflag [#allocation23], %s1427
        %s1429 = sand.u32 %s479, 1
        %s1430 = scalar_lea.vmem [#allocation24], %s1429
        %p1431 = pneg %p492
        %p1432 = pneg %p489
        %s1433 = sand.u32 %s69, 1
        %s1434 = scalar_lea.sflag [#allocation26], %s1433
        %s1435 = sand.u32 %s505, 1
        %s1436 = scalar_lea.vmem [#allocation25], %s1435
        %p1437 = pneg %p518
        %p1438 = pneg %p515
        %s1439 = sand.u32 %s69, 1
        %s1440 = scalar_lea.sflag [#allocation26], %s1439
        %s1441 = sand.u32 %s531, 1
        %s1442 = scalar_lea.vmem [#allocation27], %s1441
        %p1443 = pneg %p544
        %p1444 = pneg %p541
        %s1445 = sand.u32 %s69, 1
        %s1446 = scalar_lea.sflag [#allocation29], %s1445
        %s1447 = sand.u32 %s557, 1
        %s1448 = scalar_lea.vmem [#allocation28], %s1447
        %p1449 = pneg %p570
        %p1450 = pneg %p567
        %s1451 = sand.u32 %s69, 1
        %s1452 = scalar_lea.sflag [#allocation29], %s1451
        %s1453 = sand.u32 %s583, 1
        %s1454 = scalar_lea.vmem [#allocation30], %s1453
        %p1455 = pneg %p596
        %p1456 = pneg %p593
        %s1457 = sand.u32 %s69, 1
        %s1458 = scalar_lea.sflag [#allocation32], %s1457
        %s1459 = sand.u32 %s609, 1
        %s1460 = scalar_lea.vmem [#allocation31], %s1459
        %p1461 = pneg %p622
        %p1462 = pneg %p619
        %s1463 = sand.u32 %s69, 1
        %s1464 = scalar_lea.sflag [#allocation32], %s1463
        %s1465 = sand.u32 %s635, 1
        %s1466 = scalar_lea.vmem [#allocation33], %s1465
        %p1467 = pneg %p648
        %p1468 = pneg %p645
        %p1469 = pneg %p669
        %p1470 = pneg %p666
        %p1471 = pneg %p690
        %p1472 = pneg %p687
        %p1473 = pneg %p711
        %p1474 = pneg %p708
        %p1475 = pneg %p732
        %p1476 = pneg %p729
        %p1477 = pneg %p758
        %p1478 = pneg %p755
        %s1479 = sand.u32 %s745, 1
        %s1480 = scalar_lea.sflag [#allocation9], %s1479
        %s1481 = sand.u32 %s745, 1
        %s1482 = smul.addr %s1481, 8
        %s1483 = scalar_lea.vmem [#allocation40], %s1482
        %p1484 = scmp.lt.s32.totalorder %s73, 1
        %s1485 = scalar_select %p1484, %s73, 1
        %s1486 = smul.addr %s1485, 2
        %s1487 = smul.addr %s1486, 8
        %s1488 = scalar_lea.vmem %s1, %s1487
        %p1489 = scmp.lt.s32.totalorder %s74, 1
        %s1490 = scalar_select %p1489, %s74, 1
        %s1491 = smul.addr %s1490, 4
        %s1492 = smul.addr %s1491, 8
        %s1493 = scalar_lea.vmem %s2, %s1492
        %p1494 = scmp.lt.s32.totalorder %s74, 1
        %s1495 = scalar_select %p1494, %s74, 1
        %s1496 = smul.addr %s1495, 4
        %s1497 = smul.addr %s1496, 8
        %s1498 = scalar_lea.vmem %s4, %s1497
        %p1499 = scmp.lt.s32.totalorder %s74, 1
        %s1500 = scalar_select %p1499, %s74, 1
        %s1501 = smul.addr %s1500, 4
        %s1502 = smul.addr %s1501, 8
        %s1503 = scalar_lea.vmem %s6, %s1502
        %p1504 = scmp.lt.s32.totalorder %s74, 1
        %s1505 = scalar_select %p1504, %s74, 1
        %s1506 = smul.addr %s1505, 8
        %s1507 = smul.addr %s1506, 8
        %s1508 = scalar_lea.vmem %s14, %s1507
        %p1509 = scmp.eq.s32.totalorder %s74, 0
        // Predicated region
        $region209: #{pallas_decoder_forward.1} parent=123 // pred_check
          %p1510 = pneg %p1509
        $region210: #{pallas_decoder_forward.1} parent=123 // pred_check_branch
          %1512 = sbr.rel (%p1510) target = $region212
        $region211: #{pallas_decoder_forward.1} parent=123 // pred_region
          %v1513 = vld [vmem:[%s1176] sm:$0xff]
          %vm1514 = vcmask 261120
          %1515 = vst.msk [vmem:[#allocation2] sm:$0xff] %vm1514, %v1513
        $region212: #{pallas_decoder_forward.1} parent=123 // pred_fallthru
          _
        %v1516 = vld [vmem:[#allocation2] sm:$0xff]
        %v1517 = vld [vmem:[%s1488] sm:$0xff]
        %v1518 = vld [vmem:[%s1488 + $0x8] sm:$0xff]
        %v1519 = vld [vmem:[%s1493] sm:$0xff]
        %v1520 = vld [vmem:[%s1493 + $0x8] sm:$0xff]
        %v1521 = vld [vmem:[%s1493 + $0x10] sm:$0xff]
        %v1522 = vld [vmem:[%s1493 + $0x18] sm:$0xff]
        %v1523 = vld [vmem:[%s1184] sm:$0x1]
        %v1525 = vlaneseq
        %v1526 = vshrl.u32 %v1525, 7
        %v1527 = vsub.s32 0, %v1526
        %v1528 = vrot.slane %v1523, %v1527
        %vm1530 = vcmask 261120
        %v1532 = vsel %vm1530, %v1516, 0
        %1534 = vmatprep.subr.mxu0 0.0
        %1535 = vmatpush1.msra.mxu0 0.0
        %1536 = vmatprep.subr.mxu0 0.0
        %1537 = vmatpush1.msra.mxu0 0.0
        %1538 = vmatprep.subr.mxu0 0.0
        %1539 = vmatpush1.msra.mxu0 0.0
        %1540 = vmatprep.subr.mxu0 0.0
        %1541 = vmatpush1.msra.mxu0 0.0
        %1542 = vmatprep.subr.mxu0 0.0
        %1543 = vmatpush1.msra.mxu0 0.0
        %1544 = vmatprep.subr.mxu0 0.0
        %1545 = vmatpush1.msra.mxu0 0.0
        %1546 = vmatprep.subr.mxu0 0.0
        %1547 = vmatpush1.msra.mxu0 0.0
        %1548 = vmatprep.subr.mxu0 0.0
        %1549 = vmatpush1.msra.mxu0 0.0
        %1550 = vmatprep.subr.mxu0 0.0
        %1551 = vmatpush1.msra.mxu0 0.0
        %1552 = vmatprep.subr.mxu0 0.0
        %1553 = vmatpush1.msra.mxu0 0.0
        %1554 = vmatprep.subr.mxu0 0.0
        %1555 = vmatpush1.msra.mxu0 0.0
        %1556 = vmatprep.subr.mxu0 0.0
        %1557 = vmatpush1.msra.mxu0 0.0
        %1558 = vmatprep.subr.mxu0 0.0
        %1559 = vmatpush1.msra.mxu0 %v1522
        %1560 = vmatprep.subr.mxu0 0.0
        %1561 = vmatpush1.msra.mxu0 %v1521
        %1562 = vmatprep.subr.mxu0 0.0
        %1563 = vmatpush1.msra.mxu0 %v1520
        %1564 = vmatprep.subr.mxu0 0.0
        %1565 = vmatpush1.msra.mxu0 %v1519
        %1566 = vmatprep.subr.mxu0 0.0
        %1567 = vmatpush2.msra.mxu0 0.0
        %1568 = vmatprep.subr.mxu0 0.0
        %1569 = vmatpush2.msra.mxu0 0.0
        %1570 = vmatprep.subr.mxu0 0.0
        %1571 = vmatpush2.msra.mxu0 0.0
        %1572 = vmatprep.subr.mxu0 0.0
        %1573 = vmatpush2.msra.mxu0 0.0
        %1574 = vmatprep.subr.mxu0 0.0
        %1575 = vmatpush2.msra.mxu0 0.0
        %1576 = vmatprep.subr.mxu0 0.0
        %1577 = vmatpush2.msra.mxu0 0.0
        %1578 = vmatprep.subr.mxu0 0.0
        %1579 = vmatpush2.msra.mxu0 0.0
        %1580 = vmatprep.subr.mxu0 0.0
        %1581 = vmatpush2.msra.mxu0 0.0
        %1582 = vmatprep.subr.mxu0 0.0
        %1583 = vmatpush2.msra.mxu0 0.0
        %1584 = vmatprep.subr.mxu0 0.0
        %1585 = vmatpush2.msra.mxu0 0.0
        %1586 = vmatprep.subr.mxu0 0.0
        %1587 = vmatpush2.msra.mxu0 0.0
        %1588 = vmatprep.subr.mxu0 0.0
        %1589 = vmatpush2.msra.mxu0 0.0
        %1590 = vmatprep.subr.mxu0 0.0
        %1591 = vmatpush2.msra.mxu0 0.0
        %1592 = vmatprep.subr.mxu0 0.0
        %1593 = vmatpush2.msra.mxu0 0.0
        %1594 = vmatprep.subr.mxu0 0.0
        %1595 = vmatpush2.msra.mxu0 0.0
        %1596 = vmatprep.subr.mxu0 0.0
        %1597 = vmatpush2.msra.mxu0 0.0
        %1598 = vmatprep.mubr.f32.mxu0 0.0
        %1599 = vmatmul.mubr.f32.gmra.mxu0 %v1532
        %v1600 = vpop.f32.mrf.mxu0
        %v1601 = vadd.f32 %v1528, %v1600
        %v1602 = vpop.f32.mrf.mxu0
        %1603 = vdwg.mxu0
        %v1604 = vmul.f32 %v1601, 0.35355338
        %1605 = vst.msk [vmem:[#allocation3] sm:$0xff] %vm1530, %v1604
        %1607 = vrot.lane.b32.xlu0 %v1601, 96
        %v1608 = vpop.permute.xlu0 %1607
        %1610 = vst.msk [vmem:[#allocation4] sm:$0xff] %vm1530, %v1608
        %1611 = vrot.lane.b32.xlu0 %v1601, 64
        %v1612 = vpop.permute.xlu0 %1611
        %1614 = vst.msk [vmem:[#allocation5] sm:$0xff] %vm1530, %v1612
        %v1615 = vlaneseq
        %v1616 = vshrl.u32 %v1615, 7
        %v1617 = vlaneseq
        %v1618 = vand.u32 %v1617, 127
        %vm1619 = vcmp.le.s32.totalorder %v1618, %v1616
        %v1620 = vsel %vm1619, 0.0, -1e+30
        %v1621 = vld [vmem:[#allocation3] sm:$0xff]
        %v1622 = vld [vmem:[#allocation4] sm:$0xff]
        %vm1623 = vcmask 64512
        %v1625 = vsel %vm1623, %v1621, 0
        %v1628 = vsel %vm1623, %v1622, 0
        %1630 = vmatprep.subr.mxu0 0.0
        %1631 = vmatpush1.xpose.msra.mxu0 0.0
        %1632 = vmatprep.subr.mxu0 0.0
        %1633 = vmatpush1.xpose.msra.mxu0 0.0
        %1634 = vmatprep.subr.mxu0 0.0
        %1635 = vmatpush1.xpose.msra.mxu0 0.0
        %1636 = vmatprep.subr.mxu0 0.0
        %1637 = vmatpush1.xpose.msra.mxu0 0.0
        %1638 = vmatprep.subr.mxu0 0.0
        %1639 = vmatpush1.xpose.msra.mxu0 0.0
        %1640 = vmatprep.subr.mxu0 0.0
        %1641 = vmatpush1.xpose.msra.mxu0 0.0
        %1642 = vmatprep.subr.mxu0 0.0
        %1643 = vmatpush1.xpose.msra.mxu0 0.0
        %1644 = vmatprep.subr.mxu0 0.0
        %1645 = vmatpush1.xpose.msra.mxu0 0.0
        %1646 = vmatprep.subr.mxu0 0.0
        %1647 = vmatpush1.xpose.msra.mxu0 0.0
        %1648 = vmatprep.subr.mxu0 0.0
        %1649 = vmatpush1.xpose.msra.mxu0 0.0
        %1650 = vmatprep.subr.mxu0 0.0
        %1651 = vmatpush1.xpose.msra.mxu0 0.0
        %1652 = vmatprep.subr.mxu0 0.0
        %1653 = vmatpush1.xpose.msra.mxu0 0.0
        %1654 = vmatprep.subr.mxu0 0.0
        %1655 = vmatpush1.xpose.msra.mxu0 0.0
        %1656 = vmatprep.subr.mxu0 0.0
        %1657 = vmatpush1.xpose.msra.mxu0 0.0
        %1658 = vmatprep.subr.mxu0 0.0
        %1659 = vmatpush1.xpose.msra.mxu0 0.0
        %1660 = vmatprep.subr.mxu0 0.0
        %1661 = vmatpush1.xpose.msra.mxu0 %v1628
        %1662 = vmatprep.subr.mxu0 0.0
        %1663 = vmatpush2.xpose.msra.mxu0 0.0
        %1664 = vmatprep.subr.mxu0 0.0
        %1665 = vmatpush2.xpose.msra.mxu0 0.0
        %1666 = vmatprep.subr.mxu0 0.0
        %1667 = vmatpush2.xpose.msra.mxu0 0.0
        %1668 = vmatprep.subr.mxu0 0.0
        %1669 = vmatpush2.xpose.msra.mxu0 0.0
        %1670 = vmatprep.subr.mxu0 0.0
        %1671 = vmatpush2.xpose.msra.mxu0 0.0
        %1672 = vmatprep.subr.mxu0 0.0
        %1673 = vmatpush2.xpose.msra.mxu0 0.0
        %1674 = vmatprep.subr.mxu0 0.0
        %1675 = vmatpush2.xpose.msra.mxu0 0.0
        %1676 = vmatprep.subr.mxu0 0.0
        %1677 = vmatpush2.xpose.msra.mxu0 0.0
        %1678 = vmatprep.subr.mxu0 0.0
        %1679 = vmatpush2.xpose.msra.mxu0 0.0
        %1680 = vmatprep.subr.mxu0 0.0
        %1681 = vmatpush2.xpose.msra.mxu0 0.0
        %1682 = vmatprep.subr.mxu0 0.0
        %1683 = vmatpush2.xpose.msra.mxu0 0.0
        %1684 = vmatprep.subr.mxu0 0.0
        %1685 = vmatpush2.xpose.msra.mxu0 0.0
        %1686 = vmatprep.subr.mxu0 0.0
        %1687 = vmatpush2.xpose.msra.mxu0 0.0
        %1688 = vmatprep.subr.mxu0 0.0
        %1689 = vmatpush2.xpose.msra.mxu0 0.0
        %1690 = vmatprep.subr.mxu0 0.0
        %1691 = vmatpush2.xpose.msra.mxu0 0.0
        %1692 = vmatprep.subr.mxu0 0.0
        %1693 = vmatpush2.xpose.msra.mxu0 0.0
        %1694 = vmatprep.mubr.f32.mxu0 0.0
        %1695 = vmatmul.mubr.f32.gmra.mxu0 %v1625
        %v1696 = vpop.f32.mrf.mxu0
        %v1697 = vadd.f32 %v1620, %v1696
        %v1698 = vpop.f32.mrf.mxu0
        %1699 = vdwg.mxu0
        %v1700 = vsel %vm1623, %v1697, -inf
        %1701 = vmax.xlane.f32.xlu0 %v1700
        %v1702 = vpop.xlane.xlu0 %1701
        %v1703 = vsub.f32 %v1697, %v1702
        %v1704 = vmul.f32 %v1703, 1.442695
        %v1705 = vpow.pop %v1704
        %v1706 = vsel %vm1623, %v1705, 0.0
        %1707 = vadd.xlane.f32.xlu0 %v1706
        %v1708 = vpop.xlane.xlu0 %1707
        %v1709 = vrcp.pop %v1708
        %v1710 = vmul.f32 %v1705, %v1709
        %v1711 = vld [vmem:[#allocation5] sm:$0xff]
        %v1713 = vsel %vm1623, %v1710, 0
        %1715 = vmatprep.subr.mxu0 0.0
        %1716 = vmatpush1.msra.mxu0 0.0
        %1717 = vmatprep.subr.mxu0 0.0
        %1718 = vmatpush1.msra.mxu0 0.0
        %1719 = vmatprep.subr.mxu0 0.0
        %1720 = vmatpush1.msra.mxu0 0.0
        %1721 = vmatprep.subr.mxu0 0.0
        %1722 = vmatpush1.msra.mxu0 0.0
        %1723 = vmatprep.subr.mxu0 0.0
        %1724 = vmatpush1.msra.mxu0 0.0
        %1725 = vmatprep.subr.mxu0 0.0
        %1726 = vmatpush1.msra.mxu0 0.0
        %1727 = vmatprep.subr.mxu0 0.0
        %1728 = vmatpush1.msra.mxu0 0.0
        %1729 = vmatprep.subr.mxu0 0.0
        %1730 = vmatpush1.msra.mxu0 0.0
        %1731 = vmatprep.subr.mxu0 0.0
        %1732 = vmatpush1.msra.mxu0 0.0
        %1733 = vmatprep.subr.mxu0 0.0
        %1734 = vmatpush1.msra.mxu0 0.0
        %1735 = vmatprep.subr.mxu0 0.0
        %1736 = vmatpush1.msra.mxu0 0.0
        %1737 = vmatprep.subr.mxu0 0.0
        %1738 = vmatpush1.msra.mxu0 0.0
        %1739 = vmatprep.subr.mxu0 0.0
        %1740 = vmatpush1.msra.mxu0 0.0
        %1741 = vmatprep.subr.mxu0 0.0
        %1742 = vmatpush1.msra.mxu0 0.0
        %1743 = vmatprep.subr.mxu0 0.0
        %1744 = vmatpush1.msra.mxu0 0.0
        %1745 = vmatprep.subr.mxu0 0.0
        %1746 = vmatpush1.msra.mxu0 %v1711
        %1747 = vmatprep.subr.mxu0 0.0
        %1748 = vmatpush2.msra.mxu0 0.0
        %1749 = vmatprep.subr.mxu0 0.0
        %1750 = vmatpush2.msra.mxu0 0.0
        %1751 = vmatprep.subr.mxu0 0.0
        %1752 = vmatpush2.msra.mxu0 0.0
        %1753 = vmatprep.subr.mxu0 0.0
        %1754 = vmatpush2.msra.mxu0 0.0
        %1755 = vmatprep.subr.mxu0 0.0
        %1756 = vmatpush2.msra.mxu0 0.0
        %1757 = vmatprep.subr.mxu0 0.0
        %1758 = vmatpush2.msra.mxu0 0.0
        %1759 = vmatprep.subr.mxu0 0.0
        %1760 = vmatpush2.msra.mxu0 0.0
        %1761 = vmatprep.subr.mxu0 0.0
        %1762 = vmatpush2.msra.mxu0 0.0
        %1763 = vmatprep.subr.mxu0 0.0
        %1764 = vmatpush2.msra.mxu0 0.0
        %1765 = vmatprep.subr.mxu0 0.0
        %1766 = vmatpush2.msra.mxu0 0.0
        %1767 = vmatprep.subr.mxu0 0.0
        %1768 = vmatpush2.msra.mxu0 0.0
        %1769 = vmatprep.subr.mxu0 0.0
        %1770 = vmatpush2.msra.mxu0 0.0
        %1771 = vmatprep.subr.mxu0 0.0
        %1772 = vmatpush2.msra.mxu0 0.0
        %1773 = vmatprep.subr.mxu0 0.0
        %1774 = vmatpush2.msra.mxu0 0.0
        %1775 = vmatprep.subr.mxu0 0.0
        %1776 = vmatpush2.msra.mxu0 0.0
        %1777 = vmatprep.subr.mxu0 0.0
        %1778 = vmatpush2.msra.mxu0 0.0
        %1779 = vmatprep.mubr.f32.mxu0 0.0
        %1780 = vmatmul.mubr.f32.gmra.mxu0 %v1713
        %v1781 = vpop.f32.mrf.mxu0
        %v1782 = vadd.f32 0.0, %v1781
        %v1783 = vpop.f32.mrf.mxu0
        %1784 = vdwg.mxu0
        %1785 = vst.msk [vmem:[#allocation6] sm:$0xff] %vm1623, %v1782
        %v1786 = vld [vmem:[#allocation3] sm:$0xff]
        %v1787 = vld [vmem:[#allocation4] sm:$0xff]
        %1789 = vrot.lane.b32.xlu0 %v1786, 120
        %v1790 = vpop.permute.xlu0 %1789
        %1792 = vrot.lane.b32.xlu0 %v1787, 120
        %v1793 = vpop.permute.xlu0 %1792
        %v1794 = vsel %vm1623, %v1790, 0
        %v1796 = vsel %vm1623, %v1793, 0
        %1798 = vmatprep.subr.mxu0 0.0
        %1799 = vmatpush1.xpose.msra.mxu0 0.0
        %1800 = vmatprep.subr.mxu0 0.0
        %1801 = vmatpush1.xpose.msra.mxu0 0.0
        %1802 = vmatprep.subr.mxu0 0.0
        %1803 = vmatpush1.xpose.msra.mxu0 0.0
        %1804 = vmatprep.subr.mxu0 0.0
        %1805 = vmatpush1.xpose.msra.mxu0 0.0
        %1806 = vmatprep.subr.mxu0 0.0
        %1807 = vmatpush1.xpose.msra.mxu0 0.0
        %1808 = vmatprep.subr.mxu0 0.0
        %1809 = vmatpush1.xpose.msra.mxu0 0.0
        %1810 = vmatprep.subr.mxu0 0.0
        %1811 = vmatpush1.xpose.msra.mxu0 0.0
        %1812 = vmatprep.subr.mxu0 0.0
        %1813 = vmatpush1.xpose.msra.mxu0 0.0
        %1814 = vmatprep.subr.mxu0 0.0
        %1815 = vmatpush1.xpose.msra.mxu0 0.0
        %1816 = vmatprep.subr.mxu0 0.0
        %1817 = vmatpush1.xpose.msra.mxu0 0.0
        %1818 = vmatprep.subr.mxu0 0.0
        %1819 = vmatpush1.xpose.msra.mxu0 0.0
        %1820 = vmatprep.subr.mxu0 0.0
        %1821 = vmatpush1.xpose.msra.mxu0 0.0
        %1822 = vmatprep.subr.mxu0 0.0
        %1823 = vmatpush1.xpose.msra.mxu0 0.0
        %1824 = vmatprep.subr.mxu0 0.0
        %1825 = vmatpush1.xpose.msra.mxu0 0.0
        %1826 = vmatprep.subr.mxu0 0.0
        %1827 = vmatpush1.xpose.msra.mxu0 0.0
        %1828 = vmatprep.subr.mxu0 0.0
        %1829 = vmatpush1.xpose.msra.mxu0 %v1796
        %1830 = vmatprep.subr.mxu0 0.0
        %1831 = vmatpush2.xpose.msra.mxu0 0.0
        %1832 = vmatprep.subr.mxu0 0.0
        %1833 = vmatpush2.xpose.msra.mxu0 0.0
        %1834 = vmatprep.subr.mxu0 0.0
        %1835 = vmatpush2.xpose.msra.mxu0 0.0
        %1836 = vmatprep.subr.mxu0 0.0
        %1837 = vmatpush2.xpose.msra.mxu0 0.0
        %1838 = vmatprep.subr.mxu0 0.0
        %1839 = vmatpush2.xpose.msra.mxu0 0.0
        %1840 = vmatprep.subr.mxu0 0.0
        %1841 = vmatpush2.xpose.msra.mxu0 0.0
        %1842 = vmatprep.subr.mxu0 0.0
        %1843 = vmatpush2.xpose.msra.mxu0 0.0
        %1844 = vmatprep.subr.mxu0 0.0
        %1845 = vmatpush2.xpose.msra.mxu0 0.0
        %1846 = vmatprep.subr.mxu0 0.0
        %1847 = vmatpush2.xpose.msra.mxu0 0.0
        %1848 = vmatprep.subr.mxu0 0.0
        %1849 = vmatpush2.xpose.msra.mxu0 0.0
        %1850 = vmatprep.subr.mxu0 0.0
        %1851 = vmatpush2.xpose.msra.mxu0 0.0
        %1852 = vmatprep.subr.mxu0 0.0
        %1853 = vmatpush2.xpose.msra.mxu0 0.0
        %1854 = vmatprep.subr.mxu0 0.0
        %1855 = vmatpush2.xpose.msra.mxu0 0.0
        %1856 = vmatprep.subr.mxu0 0.0
        %1857 = vmatpush2.xpose.msra.mxu0 0.0
        %1858 = vmatprep.subr.mxu0 0.0
        %1859 = vmatpush2.xpose.msra.mxu0 0.0
        %1860 = vmatprep.subr.mxu0 0.0
        %1861 = vmatpush2.xpose.msra.mxu0 0.0
        %1862 = vmatprep.mubr.f32.mxu0 0.0
        %1863 = vmatmul.mubr.f32.gmra.mxu0 %v1794
        %v1864 = vpop.f32.mrf.mxu0
        %v1865 = vadd.f32 %v1620, %v1864
        %v1866 = vpop.f32.mrf.mxu0
        %1867 = vdwg.mxu0
        %v1868 = vsel %vm1623, %v1865, -inf
        %1869 = vmax.xlane.f32.xlu0 %v1868
        %v1870 = vpop.xlane.xlu0 %1869
        %v1871 = vsub.f32 %v1865, %v1870
        %v1872 = vmul.f32 %v1871, 1.442695
        %v1873 = vpow.pop %v1872
        %v1874 = vsel %vm1623, %v1873, 0.0
        %1875 = vadd.xlane.f32.xlu0 %v1874
        %v1876 = vpop.xlane.xlu0 %1875
        %v1877 = vrcp.pop %v1876
        %v1878 = vmul.f32 %v1873, %v1877
        %v1879 = vld [vmem:[#allocation5] sm:$0xff]
        %1881 = vrot.lane.b32.xlu0 %v1879, 120
        %v1882 = vpop.permute.xlu0 %1881
        %v1885 = vsel %vm1623, %v1878, 0
        %1887 = vmatprep.subr.mxu0 0.0
        %1888 = vmatpush1.msra.mxu0 0.0
        %1889 = vmatprep.subr.mxu0 0.0
        %1890 = vmatpush1.msra.mxu0 0.0
        %1891 = vmatprep.subr.mxu0 0.0
        %1892 = vmatpush1.msra.mxu0 0.0
        %1893 = vmatprep.subr.mxu0 0.0
        %1894 = vmatpush1.msra.mxu0 0.0
        %1895 = vmatprep.subr.mxu0 0.0
        %1896 = vmatpush1.msra.mxu0 0.0
        %1897 = vmatprep.subr.mxu0 0.0
        %1898 = vmatpush1.msra.mxu0 0.0
        %1899 = vmatprep.subr.mxu0 0.0
        %1900 = vmatpush1.msra.mxu0 0.0
        %1901 = vmatprep.subr.mxu0 0.0
        %1902 = vmatpush1.msra.mxu0 0.0
        %1903 = vmatprep.subr.mxu0 0.0
        %1904 = vmatpush1.msra.mxu0 0.0
        %1905 = vmatprep.subr.mxu0 0.0
        %1906 = vmatpush1.msra.mxu0 0.0
        %1907 = vmatprep.subr.mxu0 0.0
        %1908 = vmatpush1.msra.mxu0 0.0
        %1909 = vmatprep.subr.mxu0 0.0
        %1910 = vmatpush1.msra.mxu0 0.0
        %1911 = vmatprep.subr.mxu0 0.0
        %1912 = vmatpush1.msra.mxu0 0.0
        %1913 = vmatprep.subr.mxu0 0.0
        %1914 = vmatpush1.msra.mxu0 0.0
        %1915 = vmatprep.subr.mxu0 0.0
        %1916 = vmatpush1.msra.mxu0 0.0
        %1917 = vmatprep.subr.mxu0 0.0
        %1918 = vmatpush1.msra.mxu0 %v1882
        %1919 = vmatprep.subr.mxu0 0.0
        %1920 = vmatpush2.msra.mxu0 0.0
        %1921 = vmatprep.subr.mxu0 0.0
        %1922 = vmatpush2.msra.mxu0 0.0
        %1923 = vmatprep.subr.mxu0 0.0
        %1924 = vmatpush2.msra.mxu0 0.0
        %1925 = vmatprep.subr.mxu0 0.0
        %1926 = vmatpush2.msra.mxu0 0.0
        %1927 = vmatprep.subr.mxu0 0.0
        %1928 = vmatpush2.msra.mxu0 0.0
        %1929 = vmatprep.subr.mxu0 0.0
        %1930 = vmatpush2.msra.mxu0 0.0
        %1931 = vmatprep.subr.mxu0 0.0
        %1932 = vmatpush2.msra.mxu0 0.0
        %1933 = vmatprep.subr.mxu0 0.0
        %1934 = vmatpush2.msra.mxu0 0.0
        %1935 = vmatprep.subr.mxu0 0.0
        %1936 = vmatpush2.msra.mxu0 0.0
        %1937 = vmatprep.subr.mxu0 0.0
        %1938 = vmatpush2.msra.mxu0 0.0
        %1939 = vmatprep.subr.mxu0 0.0
        %1940 = vmatpush2.msra.mxu0 0.0
        %1941 = vmatprep.subr.mxu0 0.0
        %1942 = vmatpush2.msra.mxu0 0.0
        %1943 = vmatprep.subr.mxu0 0.0
        %1944 = vmatpush2.msra.mxu0 0.0
        %1945 = vmatprep.subr.mxu0 0.0
        %1946 = vmatpush2.msra.mxu0 0.0
        %1947 = vmatprep.subr.mxu0 0.0
        %1948 = vmatpush2.msra.mxu0 0.0
        %1949 = vmatprep.subr.mxu0 0.0
        %1950 = vmatpush2.msra.mxu0 0.0
        %1951 = vmatprep.mubr.f32.mxu0 0.0
        %1952 = vmatmul.mubr.f32.gmra.mxu0 %v1885
        %v1953 = vpop.f32.mrf.mxu0
        %v1954 = vadd.f32 0.0, %v1953
        %v1955 = vpop.f32.mrf.mxu0
        %1956 = vdwg.mxu0
        %1958 = vrot.lane.b32.xlu0 %v1954, 8
        %v1959 = vpop.permute.xlu0 %1958
        %vm1961 = vcmask 130112
        %1962 = vst.msk [vmem:[#allocation6] sm:$0xff] %vm1961, %v1959
        %v1963 = vld [vmem:[#allocation3] sm:$0xff]
        %v1964 = vld [vmem:[#allocation4] sm:$0xff]
        %1966 = vrot.lane.b32.xlu0 %v1963, 112
        %v1967 = vpop.permute.xlu0 %1966
        %1969 = vrot.lane.b32.xlu0 %v1964, 112
        %v1970 = vpop.permute.xlu0 %1969
        %v1971 = vsel %vm1623, %v1967, 0
        %v1973 = vsel %vm1623, %v1970, 0
        %1975 = vmatprep.subr.mxu0 0.0
        %1976 = vmatpush1.xpose.msra.mxu0 0.0
        %1977 = vmatprep.subr.mxu0 0.0
        %1978 = vmatpush1.xpose.msra.mxu0 0.0
        %1979 = vmatprep.subr.mxu0 0.0
        %1980 = vmatpush1.xpose.msra.mxu0 0.0
        %1981 = vmatprep.subr.mxu0 0.0
        %1982 = vmatpush1.xpose.msra.mxu0 0.0
        %1983 = vmatprep.subr.mxu0 0.0
        %1984 = vmatpush1.xpose.msra.mxu0 0.0
        %1985 = vmatprep.subr.mxu0 0.0
        %1986 = vmatpush1.xpose.msra.mxu0 0.0
        %1987 = vmatprep.subr.mxu0 0.0
        %1988 = vmatpush1.xpose.msra.mxu0 0.0
        %1989 = vmatprep.subr.mxu0 0.0
        %1990 = vmatpush1.xpose.msra.mxu0 0.0
        %1991 = vmatprep.subr.mxu0 0.0
        %1992 = vmatpush1.xpose.msra.mxu0 0.0
        %1993 = vmatprep.subr.mxu0 0.0
        %1994 = vmatpush1.xpose.msra.mxu0 0.0
        %1995 = vmatprep.subr.mxu0 0.0
        %1996 = vmatpush1.xpose.msra.mxu0 0.0
        %1997 = vmatprep.subr.mxu0 0.0
        %1998 = vmatpush1.xpose.msra.mxu0 0.0
        %1999 = vmatprep.subr.mxu0 0.0
        %2000 = vmatpush1.xpose.msra.mxu0 0.0
        %2001 = vmatprep.subr.mxu0 0.0
        %2002 = vmatpush1.xpose.msra.mxu0 0.0
        %2003 = vmatprep.subr.mxu0 0.0
        %2004 = vmatpush1.xpose.msra.mxu0 0.0
        %2005 = vmatprep.subr.mxu0 0.0
        %2006 = vmatpush1.xpose.msra.mxu0 %v1973
        %2007 = vmatprep.subr.mxu0 0.0
        %2008 = vmatpush2.xpose.msra.mxu0 0.0
        %2009 = vmatprep.subr.mxu0 0.0
        %2010 = vmatpush2.xpose.msra.mxu0 0.0
        %2011 = vmatprep.subr.mxu0 0.0
        %2012 = vmatpush2.xpose.msra.mxu0 0.0
        %2013 = vmatprep.subr.mxu0 0.0
        %2014 = vmatpush2.xpose.msra.mxu0 0.0
        %2015 = vmatprep.subr.mxu0 0.0
        %2016 = vmatpush2.xpose.msra.mxu0 0.0
        %2017 = vmatprep.subr.mxu0 0.0
        %2018 = vmatpush2.xpose.msra.mxu0 0.0
        %2019 = vmatprep.subr.mxu0 0.0
        %2020 = vmatpush2.xpose.msra.mxu0 0.0
        %2021 = vmatprep.subr.mxu0 0.0
        %2022 = vmatpush2.xpose.msra.mxu0 0.0
        %2023 = vmatprep.subr.mxu0 0.0
        %2024 = vmatpush2.xpose.msra.mxu0 0.0
        %2025 = vmatprep.subr.mxu0 0.0
        %2026 = vmatpush2.xpose.msra.mxu0 0.0
        %2027 = vmatprep.subr.mxu0 0.0
        %2028 = vmatpush2.xpose.msra.mxu0 0.0
        %2029 = vmatprep.subr.mxu0 0.0
        %2030 = vmatpush2.xpose.msra.mxu0 0.0
        %2031 = vmatprep.subr.mxu0 0.0
        %2032 = vmatpush2.xpose.msra.mxu0 0.0
        %2033 = vmatprep.subr.mxu0 0.0
        %2034 = vmatpush2.xpose.msra.mxu0 0.0
        %2035 = vmatprep.subr.mxu0 0.0
        %2036 = vmatpush2.xpose.msra.mxu0 0.0
        %2037 = vmatprep.subr.mxu0 0.0
        %2038 = vmatpush2.xpose.msra.mxu0 0.0
        %2039 = vmatprep.mubr.f32.mxu0 0.0
        %2040 = vmatmul.mubr.f32.gmra.mxu0 %v1971
        %v2041 = vpop.f32.mrf.mxu0
        %v2042 = vadd.f32 %v1620, %v2041
        %v2043 = vpop.f32.mrf.mxu0
        %2044 = vdwg.mxu0
        %v2045 = vsel %vm1623, %v2042, -inf
        %2046 = vmax.xlane.f32.xlu0 %v2045
        %v2047 = vpop.xlane.xlu0 %2046
        %v2048 = vsub.f32 %v2042, %v2047
        %v2049 = vmul.f32 %v2048, 1.442695
        %v2050 = vpow.pop %v2049
        %v2051 = vsel %vm1623, %v2050, 0.0
        %2052 = vadd.xlane.f32.xlu0 %v2051
        %v2053 = vpop.xlane.xlu0 %2052
        %v2054 = vrcp.pop %v2053
        %v2055 = vmul.f32 %v2050, %v2054
        %v2056 = vld [vmem:[#allocation5] sm:$0xff]
        %2058 = vrot.lane.b32.xlu0 %v2056, 112
        %v2059 = vpop.permute.xlu0 %2058
        %v2062 = vsel %vm1623, %v2055, 0
        %2064 = vmatprep.subr.mxu0 0.0
        %2065 = vmatpush1.msra.mxu0 0.0
        %2066 = vmatprep.subr.mxu0 0.0
        %2067 = vmatpush1.msra.mxu0 0.0
        %2068 = vmatprep.subr.mxu0 0.0
        %2069 = vmatpush1.msra.mxu0 0.0
        %2070 = vmatprep.subr.mxu0 0.0
        %2071 = vmatpush1.msra.mxu0 0.0
        %2072 = vmatprep.subr.mxu0 0.0
        %2073 = vmatpush1.msra.mxu0 0.0
        %2074 = vmatprep.subr.mxu0 0.0
        %2075 = vmatpush1.msra.mxu0 0.0
        %2076 = vmatprep.subr.mxu0 0.0
        %2077 = vmatpush1.msra.mxu0 0.0
        %2078 = vmatprep.subr.mxu0 0.0
        %2079 = vmatpush1.msra.mxu0 0.0
        %2080 = vmatprep.subr.mxu0 0.0
        %2081 = vmatpush1.msra.mxu0 0.0
        %2082 = vmatprep.subr.mxu0 0.0
        %2083 = vmatpush1.msra.mxu0 0.0
        %2084 = vmatprep.subr.mxu0 0.0
        %2085 = vmatpush1.msra.mxu0 0.0
        %2086 = vmatprep.subr.mxu0 0.0
        %2087 = vmatpush1.msra.mxu0 0.0
        %2088 = vmatprep.subr.mxu0 0.0
        %2089 = vmatpush1.msra.mxu0 0.0
        %2090 = vmatprep.subr.mxu0 0.0
        %2091 = vmatpush1.msra.mxu0 0.0
        %2092 = vmatprep.subr.mxu0 0.0
        %2093 = vmatpush1.msra.mxu0 0.0
        %2094 = vmatprep.subr.mxu0 0.0
        %2095 = vmatpush1.msra.mxu0 %v2059
        %2096 = vmatprep.subr.mxu0 0.0
        %2097 = vmatpush2.msra.mxu0 0.0
        %2098 = vmatprep.subr.mxu0 0.0
        %2099 = vmatpush2.msra.mxu0 0.0
        %2100 = vmatprep.subr.mxu0 0.0
        %2101 = vmatpush2.msra.mxu0 0.0
        %2102 = vmatprep.subr.mxu0 0.0
        %2103 = vmatpush2.msra.mxu0 0.0
        %2104 = vmatprep.subr.mxu0 0.0
        %2105 = vmatpush2.msra.mxu0 0.0
        %2106 = vmatprep.subr.mxu0 0.0
        %2107 = vmatpush2.msra.mxu0 0.0
        %2108 = vmatprep.subr.mxu0 0.0
        %2109 = vmatpush2.msra.mxu0 0.0
        %2110 = vmatprep.subr.mxu0 0.0
        %2111 = vmatpush2.msra.mxu0 0.0
        %2112 = vmatprep.subr.mxu0 0.0
        %2113 = vmatpush2.msra.mxu0 0.0
        %2114 = vmatprep.subr.mxu0 0.0
        %2115 = vmatpush2.msra.mxu0 0.0
        %2116 = vmatprep.subr.mxu0 0.0
        %2117 = vmatpush2.msra.mxu0 0.0
        %2118 = vmatprep.subr.mxu0 0.0
        %2119 = vmatpush2.msra.mxu0 0.0
        %2120 = vmatprep.subr.mxu0 0.0
        %2121 = vmatpush2.msra.mxu0 0.0
        %2122 = vmatprep.subr.mxu0 0.0
        %2123 = vmatpush2.msra.mxu0 0.0
        %2124 = vmatprep.subr.mxu0 0.0
        %2125 = vmatpush2.msra.mxu0 0.0
        %2126 = vmatprep.subr.mxu0 0.0
        %2127 = vmatpush2.msra.mxu0 0.0
        %2128 = vmatprep.mubr.f32.mxu0 0.0
        %2129 = vmatmul.mubr.f32.gmra.mxu0 %v2062
        %v2130 = vpop.f32.mrf.mxu0
        %v2131 = vadd.f32 0.0, %v2130
        %v2132 = vpop.f32.mrf.mxu0
        %2133 = vdwg.mxu0
        %2135 = vrot.lane.b32.xlu0 %v2131, 16
        %v2136 = vpop.permute.xlu0 %2135
        %vm2138 = vcmask 195712
        %2139 = vst.msk [vmem:[#allocation6] sm:$0xff] %vm2138, %v2136
        %v2140 = vld [vmem:[#allocation3] sm:$0xff]
        %v2141 = vld [vmem:[#allocation4] sm:$0xff]
        %2143 = vrot.lane.b32.xlu0 %v2140, 104
        %v2144 = vpop.permute.xlu0 %2143
        %2146 = vrot.lane.b32.xlu0 %v2141, 104
        %v2147 = vpop.permute.xlu0 %2146
        %v2148 = vsel %vm1623, %v2144, 0
        %v2150 = vsel %vm1623, %v2147, 0
        %2152 = vmatprep.subr.mxu0 0.0
        %2153 = vmatpush1.xpose.msra.mxu0 0.0
        %2154 = vmatprep.subr.mxu0 0.0
        %2155 = vmatpush1.xpose.msra.mxu0 0.0
        %2156 = vmatprep.subr.mxu0 0.0
        %2157 = vmatpush1.xpose.msra.mxu0 0.0
        %2158 = vmatprep.subr.mxu0 0.0
        %2159 = vmatpush1.xpose.msra.mxu0 0.0
        %2160 = vmatprep.subr.mxu0 0.0
        %2161 = vmatpush1.xpose.msra.mxu0 0.0
        %2162 = vmatprep.subr.mxu0 0.0
        %2163 = vmatpush1.xpose.msra.mxu0 0.0
        %2164 = vmatprep.subr.mxu0 0.0
        %2165 = vmatpush1.xpose.msra.mxu0 0.0
        %2166 = vmatprep.subr.mxu0 0.0
        %2167 = vmatpush1.xpose.msra.mxu0 0.0
        %2168 = vmatprep.subr.mxu0 0.0
        %2169 = vmatpush1.xpose.msra.mxu0 0.0
        %2170 = vmatprep.subr.mxu0 0.0
        %2171 = vmatpush1.xpose.msra.mxu0 0.0
        %2172 = vmatprep.subr.mxu0 0.0
        %2173 = vmatpush1.xpose.msra.mxu0 0.0
        %2174 = vmatprep.subr.mxu0 0.0
        %2175 = vmatpush1.xpose.msra.mxu0 0.0
        %2176 = vmatprep.subr.mxu0 0.0
        %2177 = vmatpush1.xpose.msra.mxu0 0.0
        %2178 = vmatprep.subr.mxu0 0.0
        %2179 = vmatpush1.xpose.msra.mxu0 0.0
        %2180 = vmatprep.subr.mxu0 0.0
        %2181 = vmatpush1.xpose.msra.mxu0 0.0
        %2182 = vmatprep.subr.mxu0 0.0
        %2183 = vmatpush1.xpose.msra.mxu0 %v2150
        %2184 = vmatprep.subr.mxu0 0.0
        %2185 = vmatpush2.xpose.msra.mxu0 0.0
        %2186 = vmatprep.subr.mxu0 0.0
        %2187 = vmatpush2.xpose.msra.mxu0 0.0
        %2188 = vmatprep.subr.mxu0 0.0
        %2189 = vmatpush2.xpose.msra.mxu0 0.0
        %2190 = vmatprep.subr.mxu0 0.0
        %2191 = vmatpush2.xpose.msra.mxu0 0.0
        %2192 = vmatprep.subr.mxu0 0.0
        %2193 = vmatpush2.xpose.msra.mxu0 0.0
        %2194 = vmatprep.subr.mxu0 0.0
        %2195 = vmatpush2.xpose.msra.mxu0 0.0
        %2196 = vmatprep.subr.mxu0 0.0
        %2197 = vmatpush2.xpose.msra.mxu0 0.0
        %2198 = vmatprep.subr.mxu0 0.0
        %2199 = vmatpush2.xpose.msra.mxu0 0.0
        %2200 = vmatprep.subr.mxu0 0.0
        %2201 = vmatpush2.xpose.msra.mxu0 0.0
        %2202 = vmatprep.subr.mxu0 0.0
        %2203 = vmatpush2.xpose.msra.mxu0 0.0
        %2204 = vmatprep.subr.mxu0 0.0
        %2205 = vmatpush2.xpose.msra.mxu0 0.0
        %2206 = vmatprep.subr.mxu0 0.0
        %2207 = vmatpush2.xpose.msra.mxu0 0.0
        %2208 = vmatprep.subr.mxu0 0.0
        %2209 = vmatpush2.xpose.msra.mxu0 0.0
        %2210 = vmatprep.subr.mxu0 0.0
        %2211 = vmatpush2.xpose.msra.mxu0 0.0
        %2212 = vmatprep.subr.mxu0 0.0
        %2213 = vmatpush2.xpose.msra.mxu0 0.0
        %2214 = vmatprep.subr.mxu0 0.0
        %2215 = vmatpush2.xpose.msra.mxu0 0.0
        %2216 = vmatprep.mubr.f32.mxu0 0.0
        %2217 = vmatmul.mubr.f32.gmra.mxu0 %v2148
        %v2218 = vpop.f32.mrf.mxu0
        %v2219 = vadd.f32 %v1620, %v2218
        %v2220 = vpop.f32.mrf.mxu0
        %2221 = vdwg.mxu0
        %v2222 = vsel %vm1623, %v2219, -inf
        %2223 = vmax.xlane.f32.xlu0 %v2222
        %v2224 = vpop.xlane.xlu0 %2223
        %v2225 = vsub.f32 %v2219, %v2224
        %v2226 = vmul.f32 %v2225, 1.442695
        %v2227 = vpow.pop %v2226
        %v2228 = vsel %vm1623, %v2227, 0.0
        %2229 = vadd.xlane.f32.xlu0 %v2228
        %v2230 = vpop.xlane.xlu0 %2229
        %v2231 = vrcp.pop %v2230
        %v2232 = vmul.f32 %v2227, %v2231
        %v2233 = vld [vmem:[#allocation5] sm:$0xff]
        %2235 = vrot.lane.b32.xlu0 %v2233, 104
        %v2236 = vpop.permute.xlu0 %2235
        %v2239 = vsel %vm1623, %v2232, 0
        %2241 = vmatprep.subr.mxu0 0.0
        %2242 = vmatpush1.msra.mxu0 0.0
        %2243 = vmatprep.subr.mxu0 0.0
        %2244 = vmatpush1.msra.mxu0 0.0
        %2245 = vmatprep.subr.mxu0 0.0
        %2246 = vmatpush1.msra.mxu0 0.0
        %2247 = vmatprep.subr.mxu0 0.0
        %2248 = vmatpush1.msra.mxu0 0.0
        %2249 = vmatprep.subr.mxu0 0.0
        %2250 = vmatpush1.msra.mxu0 0.0
        %2251 = vmatprep.subr.mxu0 0.0
        %2252 = vmatpush1.msra.mxu0 0.0
        %2253 = vmatprep.subr.mxu0 0.0
        %2254 = vmatpush1.msra.mxu0 0.0
        %2255 = vmatprep.subr.mxu0 0.0
        %2256 = vmatpush1.msra.mxu0 0.0
        %2257 = vmatprep.subr.mxu0 0.0
        %2258 = vmatpush1.msra.mxu0 0.0
        %2259 = vmatprep.subr.mxu0 0.0
        %2260 = vmatpush1.msra.mxu0 0.0
        %2261 = vmatprep.subr.mxu0 0.0
        %2262 = vmatpush1.msra.mxu0 0.0
        %2263 = vmatprep.subr.mxu0 0.0
        %2264 = vmatpush1.msra.mxu0 0.0
        %2265 = vmatprep.subr.mxu0 0.0
        %2266 = vmatpush1.msra.mxu0 0.0
        %2267 = vmatprep.subr.mxu0 0.0
        %2268 = vmatpush1.msra.mxu0 0.0
        %2269 = vmatprep.subr.mxu0 0.0
        %2270 = vmatpush1.msra.mxu0 0.0
        %2271 = vmatprep.subr.mxu0 0.0
        %2272 = vmatpush1.msra.mxu0 %v2236
        %2273 = vmatprep.subr.mxu0 0.0
        %2274 = vmatpush2.msra.mxu0 0.0
        %2275 = vmatprep.subr.mxu0 0.0
        %2276 = vmatpush2.msra.mxu0 0.0
        %2277 = vmatprep.subr.mxu0 0.0
        %2278 = vmatpush2.msra.mxu0 0.0
        %2279 = vmatprep.subr.mxu0 0.0
        %2280 = vmatpush2.msra.mxu0 0.0
        %2281 = vmatprep.subr.mxu0 0.0
        %2282 = vmatpush2.msra.mxu0 0.0
        %2283 = vmatprep.subr.mxu0 0.0
        %2284 = vmatpush2.msra.mxu0 0.0
        %2285 = vmatprep.subr.mxu0 0.0
        %2286 = vmatpush2.msra.mxu0 0.0
        %2287 = vmatprep.subr.mxu0 0.0
        %2288 = vmatpush2.msra.mxu0 0.0
        %2289 = vmatprep.subr.mxu0 0.0
        %2290 = vmatpush2.msra.mxu0 0.0
        %2291 = vmatprep.subr.mxu0 0.0
        %2292 = vmatpush2.msra.mxu0 0.0
        %2293 = vmatprep.subr.mxu0 0.0
        %2294 = vmatpush2.msra.mxu0 0.0
        %2295 = vmatprep.subr.mxu0 0.0
        %2296 = vmatpush2.msra.mxu0 0.0
        %2297 = vmatprep.subr.mxu0 0.0
        %2298 = vmatpush2.msra.mxu0 0.0
        %2299 = vmatprep.subr.mxu0 0.0
        %2300 = vmatpush2.msra.mxu0 0.0
        %2301 = vmatprep.subr.mxu0 0.0
        %2302 = vmatpush2.msra.mxu0 0.0
        %2303 = vmatprep.subr.mxu0 0.0
        %2304 = vmatpush2.msra.mxu0 0.0
        %2305 = vmatprep.mubr.f32.mxu0 0.0
        %2306 = vmatmul.mubr.f32.gmra.mxu0 %v2239
        %v2307 = vpop.f32.mrf.mxu0
        %v2308 = vadd.f32 0.0, %v2307
        %v2309 = vpop.f32.mrf.mxu0
        %2310 = vdwg.mxu0
        %2312 = vrot.lane.b32.xlu0 %v2308, 24
        %v2313 = vpop.permute.xlu0 %2312
        %vm2315 = vcmask 261312
        %2316 = vst.msk [vmem:[#allocation6] sm:$0xff] %vm2315, %v2313
        %v2317 = vld [vmem:[#allocation6] sm:$0xff]
        %v2318 = vld [vmem:[%s1498] sm:$0xff]
        %v2319 = vld [vmem:[%s1498 + $0x8] sm:$0xff]
        %v2320 = vld [vmem:[%s1498 + $0x10] sm:$0xff]
        %v2321 = vld [vmem:[%s1498 + $0x18] sm:$0xff]
        %v2322 = vld [vmem:[%s1192] sm:$0x1]
        %v2324 = vlaneseq
        %v2325 = vshrl.u32 %v2324, 7
        %v2326 = vsub.s32 0, %v2325
        %v2327 = vrot.slane %v2322, %v2326
        %v2330 = vsel %vm1530, %v2317, 0
        %2332 = vmatprep.subr.mxu0 0.0
        %2333 = vmatpush1.msra.mxu0 0.0
        %2334 = vmatprep.subr.mxu0 0.0
        %2335 = vmatpush1.msra.mxu0 0.0
        %2336 = vmatprep.subr.mxu0 0.0
        %2337 = vmatpush1.msra.mxu0 0.0
        %2338 = vmatprep.subr.mxu0 0.0
        %2339 = vmatpush1.msra.mxu0 0.0
        %2340 = vmatprep.subr.mxu0 0.0
        %2341 = vmatpush1.msra.mxu0 0.0
        %2342 = vmatprep.subr.mxu0 0.0
        %2343 = vmatpush1.msra.mxu0 0.0
        %2344 = vmatprep.subr.mxu0 0.0
        %2345 = vmatpush1.msra.mxu0 0.0
        %2346 = vmatprep.subr.mxu0 0.0
        %2347 = vmatpush1.msra.mxu0 0.0
        %2348 = vmatprep.subr.mxu0 0.0
        %2349 = vmatpush1.msra.mxu0 0.0
        %2350 = vmatprep.subr.mxu0 0.0
        %2351 = vmatpush1.msra.mxu0 0.0
        %2352 = vmatprep.subr.mxu0 0.0
        %2353 = vmatpush1.msra.mxu0 0.0
        %2354 = vmatprep.subr.mxu0 0.0
        %2355 = vmatpush1.msra.mxu0 0.0
        %2356 = vmatprep.subr.mxu0 0.0
        %2357 = vmatpush1.msra.mxu0 %v2321
        %2358 = vmatprep.subr.mxu0 0.0
        %2359 = vmatpush1.msra.mxu0 %v2320
        %2360 = vmatprep.subr.mxu0 0.0
        %2361 = vmatpush1.msra.mxu0 %v2319
        %2362 = vmatprep.subr.mxu0 0.0
        %2363 = vmatpush1.msra.mxu0 %v2318
        %2364 = vmatprep.subr.mxu0 0.0
        %2365 = vmatpush2.msra.mxu0 0.0
        %2366 = vmatprep.subr.mxu0 0.0
        %2367 = vmatpush2.msra.mxu0 0.0
        %2368 = vmatprep.subr.mxu0 0.0
        %2369 = vmatpush2.msra.mxu0 0.0
        %2370 = vmatprep.subr.mxu0 0.0
        %2371 = vmatpush2.msra.mxu0 0.0
        %2372 = vmatprep.subr.mxu0 0.0
        %2373 = vmatpush2.msra.mxu0 0.0
        %2374 = vmatprep.subr.mxu0 0.0
        %2375 = vmatpush2.msra.mxu0 0.0
        %2376 = vmatprep.subr.mxu0 0.0
        %2377 = vmatpush2.msra.mxu0 0.0
        %2378 = vmatprep.subr.mxu0 0.0
        %2379 = vmatpush2.msra.mxu0 0.0
        %2380 = vmatprep.subr.mxu0 0.0
        %2381 = vmatpush2.msra.mxu0 0.0
        %2382 = vmatprep.subr.mxu0 0.0
        %2383 = vmatpush2.msra.mxu0 0.0
        %2384 = vmatprep.subr.mxu0 0.0
        %2385 = vmatpush2.msra.mxu0 0.0
        %2386 = vmatprep.subr.mxu0 0.0
        %2387 = vmatpush2.msra.mxu0 0.0
        %2388 = vmatprep.subr.mxu0 0.0
        %2389 = vmatpush2.msra.mxu0 0.0
        %2390 = vmatprep.subr.mxu0 0.0
        %2391 = vmatpush2.msra.mxu0 0.0
        %2392 = vmatprep.subr.mxu0 0.0
        %2393 = vmatpush2.msra.mxu0 0.0
        %2394 = vmatprep.subr.mxu0 0.0
        %2395 = vmatpush2.msra.mxu0 0.0
        %2396 = vmatprep.mubr.f32.mxu0 0.0
        %2397 = vmatmul.mubr.f32.gmra.mxu0 %v2330
        %v2398 = vpop.f32.mrf.mxu0
        %v2399 = vadd.f32 %v2327, %v2398
        %v2400 = vpop.f32.mrf.mxu0
        %2401 = vdwg.mxu0
        %v2402 = vadd.f32 %v1516, %v2399
        %v2403 = vld [vmem:[%s1267] sm:$0x1]
        %v2404 = vld [vmem:[%s1275] sm:$0x1]
        %v2405 = vsel %vm1530, %v2402, 0.0
        %2406 = vadd.xlane.f32.xlu0 %v2405
        %v2407 = vpop.xlane.xlu0 %2406
        %v2408 = vrcp.pop 32.0
        %v2409 = vmul.f32 %v2407, %v2408
        %v2410 = vsub.f32 %v2402, %v2409
        %v2411 = vmul.f32 %v2410, %v2410
        %v2412 = vsel %vm1530, %v2411, 0.0
        %2413 = vadd.xlane.f32.xlu0 %v2412
        %v2414 = vpop.xlane.xlu0 %2413
        %v2415 = vmul.f32 %v2414, %v2408
        %v2416 = vadd.f32 %v2415, 1e-05
        %v2417 = vrsqrt.pop %v2416
        %v2418 = vmul.f32 %v2410, %v2417
        %v2420 = vlaneseq
        %v2421 = vshrl.u32 %v2420, 7
        %v2422 = vsub.s32 0, %v2421
        %v2423 = vrot.slane %v2403, %v2422
        %v2425 = vmul.f32 %v2418, %v2423
        %v2427 = vlaneseq
        %v2428 = vshrl.u32 %v2427, 7
        %v2429 = vsub.s32 0, %v2428
        %v2430 = vrot.slane %v2404, %v2429
        %v2432 = vadd.f32 %v2425, %v2430
        %v2433 = vld [vmem:[%s1503] sm:$0xff]
        %v2434 = vld [vmem:[%s1503 + $0x8] sm:$0xff]
        %v2435 = vld [vmem:[%s1503 + $0x10] sm:$0xff]
        %v2436 = vld [vmem:[%s1503 + $0x18] sm:$0xff]
        %v2437 = vld [vmem:[%s1200] sm:$0x1]
        %v2439 = vlaneseq
        %v2440 = vshrl.u32 %v2439, 7
        %v2441 = vsub.s32 0, %v2440
        %v2442 = vrot.slane %v2437, %v2441
        %v2445 = vsel %vm1530, %v2432, 0
        %2447 = vmatprep.subr.mxu0 0.0
        %2448 = vmatpush1.msra.mxu0 0.0
        %2449 = vmatprep.subr.mxu0 0.0
        %2450 = vmatpush1.msra.mxu0 0.0
        %2451 = vmatprep.subr.mxu0 0.0
        %2452 = vmatpush1.msra.mxu0 0.0
        %2453 = vmatprep.subr.mxu0 0.0
        %2454 = vmatpush1.msra.mxu0 0.0
        %2455 = vmatprep.subr.mxu0 0.0
        %2456 = vmatpush1.msra.mxu0 0.0
        %2457 = vmatprep.subr.mxu0 0.0
        %2458 = vmatpush1.msra.mxu0 0.0
        %2459 = vmatprep.subr.mxu0 0.0
        %2460 = vmatpush1.msra.mxu0 0.0
        %2461 = vmatprep.subr.mxu0 0.0
        %2462 = vmatpush1.msra.mxu0 0.0
        %2463 = vmatprep.subr.mxu0 0.0
        %2464 = vmatpush1.msra.mxu0 0.0
        %2465 = vmatprep.subr.mxu0 0.0
        %2466 = vmatpush1.msra.mxu0 0.0
        %2467 = vmatprep.subr.mxu0 0.0
        %2468 = vmatpush1.msra.mxu0 0.0
        %2469 = vmatprep.subr.mxu0 0.0
        %2470 = vmatpush1.msra.mxu0 0.0
        %2471 = vmatprep.subr.mxu0 0.0
        %2472 = vmatpush1.msra.mxu0 %v2436
        %2473 = vmatprep.subr.mxu0 0.0
        %2474 = vmatpush1.msra.mxu0 %v2435
        %2475 = vmatprep.subr.mxu0 0.0
        %2476 = vmatpush1.msra.mxu0 %v2434
        %2477 = vmatprep.subr.mxu0 0.0
        %2478 = vmatpush1.msra.mxu0 %v2433
        %2479 = vmatprep.subr.mxu0 0.0
        %2480 = vmatpush2.msra.mxu0 0.0
        %2481 = vmatprep.subr.mxu0 0.0
        %2482 = vmatpush2.msra.mxu0 0.0
        %2483 = vmatprep.subr.mxu0 0.0
        %2484 = vmatpush2.msra.mxu0 0.0
        %2485 = vmatprep.subr.mxu0 0.0
        %2486 = vmatpush2.msra.mxu0 0.0
        %2487 = vmatprep.subr.mxu0 0.0
        %2488 = vmatpush2.msra.mxu0 0.0
        %2489 = vmatprep.subr.mxu0 0.0
        %2490 = vmatpush2.msra.mxu0 0.0
        %2491 = vmatprep.subr.mxu0 0.0
        %2492 = vmatpush2.msra.mxu0 0.0
        %2493 = vmatprep.subr.mxu0 0.0
        %2494 = vmatpush2.msra.mxu0 0.0
        %2495 = vmatprep.subr.mxu0 0.0
        %2496 = vmatpush2.msra.mxu0 0.0
        %2497 = vmatprep.subr.mxu0 0.0
        %2498 = vmatpush2.msra.mxu0 0.0
        %2499 = vmatprep.subr.mxu0 0.0
        %2500 = vmatpush2.msra.mxu0 0.0
        %2501 = vmatprep.subr.mxu0 0.0
        %2502 = vmatpush2.msra.mxu0 0.0
        %2503 = vmatprep.subr.mxu0 0.0
        %2504 = vmatpush2.msra.mxu0 0.0
        %2505 = vmatprep.subr.mxu0 0.0
        %2506 = vmatpush2.msra.mxu0 0.0
        %2507 = vmatprep.subr.mxu0 0.0
        %2508 = vmatpush2.msra.mxu0 0.0
        %2509 = vmatprep.subr.mxu0 0.0
        %2510 = vmatpush2.msra.mxu0 0.0
        %2511 = vmatprep.mubr.f32.mxu0 0.0
        %2512 = vmatmul.mubr.f32.gmra.mxu0 %v2445
        %v2513 = vpop.f32.mrf.mxu0
        %v2514 = vadd.f32 %v2442, %v2513
        %v2515 = vpop.f32.mrf.mxu0
        %2516 = vdwg.mxu0
        %v2517 = vld [vmem:[%s1209] sm:$0xff]
        %v2518 = vld [vmem:[%s1209 + $0x8] sm:$0xff]
        %v2519 = vld [vmem:[%s1209 + $0x10] sm:$0xff]
        %v2520 = vld [vmem:[%s1209 + $0x18] sm:$0xff]
        %v2521 = vld [vmem:[%s1217] sm:$0x1]
        %v2523 = vlaneseq
        %v2524 = vshrl.u32 %v2523, 7
        %v2525 = vsub.s32 0, %v2524
        %v2526 = vrot.slane %v2521, %v2525
        %v2529 = vsel %vm1530, %v1517, 0
        %v2532 = vsel %vm1530, %v1518, 0
        %2534 = vmatprep.subr.mxu0 0.0
        %2535 = vmatpush1.msra.mxu0 0.0
        %2536 = vmatprep.subr.mxu0 0.0
        %2537 = vmatpush1.msra.mxu0 0.0
        %2538 = vmatprep.subr.mxu0 0.0
        %2539 = vmatpush1.msra.mxu0 0.0
        %2540 = vmatprep.subr.mxu0 0.0
        %2541 = vmatpush1.msra.mxu0 0.0
        %2542 = vmatprep.subr.mxu0 0.0
        %2543 = vmatpush1.msra.mxu0 0.0
        %2544 = vmatprep.subr.mxu0 0.0
        %2545 = vmatpush1.msra.mxu0 0.0
        %2546 = vmatprep.subr.mxu0 0.0
        %2547 = vmatpush1.msra.mxu0 0.0
        %2548 = vmatprep.subr.mxu0 0.0
        %2549 = vmatpush1.msra.mxu0 0.0
        %2550 = vmatprep.subr.mxu0 0.0
        %2551 = vmatpush1.msra.mxu0 0.0
        %2552 = vmatprep.subr.mxu0 0.0
        %2553 = vmatpush1.msra.mxu0 0.0
        %2554 = vmatprep.subr.mxu0 0.0
        %2555 = vmatpush1.msra.mxu0 0.0
        %2556 = vmatprep.subr.mxu0 0.0
        %2557 = vmatpush1.msra.mxu0 0.0
        %2558 = vmatprep.subr.mxu0 0.0
        %2559 = vmatpush1.msra.mxu0 %v2520
        %2560 = vmatprep.subr.mxu0 0.0
        %2561 = vmatpush1.msra.mxu0 %v2519
        %2562 = vmatprep.subr.mxu0 0.0
        %2563 = vmatpush1.msra.mxu0 %v2518
        %2564 = vmatprep.subr.mxu0 0.0
        %2565 = vmatpush1.msra.mxu0 %v2517
        %2566 = vmatprep.subr.mxu0 0.0
        %2567 = vmatpush2.msra.mxu0 0.0
        %2568 = vmatprep.subr.mxu0 0.0
        %2569 = vmatpush2.msra.mxu0 0.0
        %2570 = vmatprep.subr.mxu0 0.0
        %2571 = vmatpush2.msra.mxu0 0.0
        %2572 = vmatprep.subr.mxu0 0.0
        %2573 = vmatpush2.msra.mxu0 0.0
        %2574 = vmatprep.subr.mxu0 0.0
        %2575 = vmatpush2.msra.mxu0 0.0
        %2576 = vmatprep.subr.mxu0 0.0
        %2577 = vmatpush2.msra.mxu0 0.0
        %2578 = vmatprep.subr.mxu0 0.0
        %2579 = vmatpush2.msra.mxu0 0.0
        %2580 = vmatprep.subr.mxu0 0.0
        %2581 = vmatpush2.msra.mxu0 0.0
        %2582 = vmatprep.subr.mxu0 0.0
        %2583 = vmatpush2.msra.mxu0 0.0
        %2584 = vmatprep.subr.mxu0 0.0
        %2585 = vmatpush2.msra.mxu0 0.0
        %2586 = vmatprep.subr.mxu0 0.0
        %2587 = vmatpush2.msra.mxu0 0.0
        %2588 = vmatprep.subr.mxu0 0.0
        %2589 = vmatpush2.msra.mxu0 0.0
        %2590 = vmatprep.subr.mxu0 0.0
        %2591 = vmatpush2.msra.mxu0 0.0
        %2592 = vmatprep.subr.mxu0 0.0
        %2593 = vmatpush2.msra.mxu0 0.0
        %2594 = vmatprep.subr.mxu0 0.0
        %2595 = vmatpush2.msra.mxu0 0.0
        %2596 = vmatprep.subr.mxu0 0.0
        %2597 = vmatpush2.msra.mxu0 0.0
        %2598 = vmatprep.mubr.f32.mxu0 0.0
        %2599 = vmatmul.mubr.f32.gmra.mxu0 %v2529
        %v2600 = vpop.f32.mrf.mxu0
        %v2601 = vadd.f32 %v2526, %v2600
        %v2602 = vpop.f32.mrf.mxu0
        %2603 = vmatprep.mubr.f32.mxu0 0.0
        %2604 = vmatmul.mubr.f32.gmra.mxu0 %v2532
        %v2605 = vpop.f32.mrf.mxu0
        %v2606 = vadd.f32 %v2526, %v2605
        %v2607 = vpop.f32.mrf.mxu0
        %2608 = vdwg.mxu0
        %v2609 = vmul.f32 %v2514, 0.35355338
        %2610 = vst.msk [vmem:[#allocation3] sm:$0xff] %vm1530, %v2609
        %2611 = vst.msk [vmem:[#allocation4] sm:$0xff] %vm1530, %v2601
        %2612 = vst.msk [vmem:[#allocation4 + $0x8] sm:$0xff] %vm1530, %v2606
        %2615 = vrot.lane.b32.xlu0 %v2601, 96
        %v2616 = vpop.permute.xlu0 %2615
        %2617 = vrot.lane.b32.xlu0 %v2606, 96
        %v2618 = vpop.permute.xlu0 %2617
        %2621 = vst.msk [vmem:[#allocation5] sm:$0xff] %vm1530, %v2616
        %2622 = vst.msk [vmem:[#allocation5 + $0x8] sm:$0xff] %vm1530, %v2618
        %v2623 = vld [vmem:[#allocation3] sm:$0xff]
        %v2624 = vld [vmem:[#allocation4] sm:$0xff]
        %v2625 = vld [vmem:[#allocation4 + $0x8] sm:$0xff]
        %v2627 = vsel %vm1623, %v2623, 0
        %v2630 = vsel %vm1623, %v2624, 0
        %v2633 = vsel %vm1623, %v2625, 0
        %2635 = vmatprep.subr.mxu0 0.0
        %2636 = vmatpush1.xpose.msra.mxu0 0.0
        %2637 = vmatprep.subr.mxu0 0.0
        %2638 = vmatpush1.xpose.msra.mxu0 0.0
        %2639 = vmatprep.subr.mxu0 0.0
        %2640 = vmatpush1.xpose.msra.mxu0 0.0
        %2641 = vmatprep.subr.mxu0 0.0
        %2642 = vmatpush1.xpose.msra.mxu0 0.0
        %2643 = vmatprep.subr.mxu0 0.0
        %2644 = vmatpush1.xpose.msra.mxu0 0.0
        %2645 = vmatprep.subr.mxu0 0.0
        %2646 = vmatpush1.xpose.msra.mxu0 0.0
        %2647 = vmatprep.subr.mxu0 0.0
        %2648 = vmatpush1.xpose.msra.mxu0 0.0
        %2649 = vmatprep.subr.mxu0 0.0
        %2650 = vmatpush1.xpose.msra.mxu0 0.0
        %2651 = vmatprep.subr.mxu0 0.0
        %2652 = vmatpush1.xpose.msra.mxu0 0.0
        %2653 = vmatprep.subr.mxu0 0.0
        %2654 = vmatpush1.xpose.msra.mxu0 0.0
        %2655 = vmatprep.subr.mxu0 0.0
        %2656 = vmatpush1.xpose.msra.mxu0 0.0
        %2657 = vmatprep.subr.mxu0 0.0
        %2658 = vmatpush1.xpose.msra.mxu0 0.0
        %2659 = vmatprep.subr.mxu0 0.0
        %2660 = vmatpush1.xpose.msra.mxu0 0.0
        %2661 = vmatprep.subr.mxu0 0.0
        %2662 = vmatpush1.xpose.msra.mxu0 0.0
        %2663 = vmatprep.subr.mxu0 0.0
        %2664 = vmatpush1.xpose.msra.mxu0 %v2633
        %2665 = vmatprep.subr.mxu0 0.0
        %2666 = vmatpush1.xpose.msra.mxu0 %v2630
        %2667 = vmatprep.subr.mxu0 0.0
        %2668 = vmatpush2.xpose.msra.mxu0 0.0
        %2669 = vmatprep.subr.mxu0 0.0
        %2670 = vmatpush2.xpose.msra.mxu0 0.0
        %2671 = vmatprep.subr.mxu0 0.0
        %2672 = vmatpush2.xpose.msra.mxu0 0.0
        %2673 = vmatprep.subr.mxu0 0.0
        %2674 = vmatpush2.xpose.msra.mxu0 0.0
        %2675 = vmatprep.subr.mxu0 0.0
        %2676 = vmatpush2.xpose.msra.mxu0 0.0
        %2677 = vmatprep.subr.mxu0 0.0
        %2678 = vmatpush2.xpose.msra.mxu0 0.0
        %2679 = vmatprep.subr.mxu0 0.0
        %2680 = vmatpush2.xpose.msra.mxu0 0.0
        %2681 = vmatprep.subr.mxu0 0.0
        %2682 = vmatpush2.xpose.msra.mxu0 0.0
        %2683 = vmatprep.subr.mxu0 0.0
        %2684 = vmatpush2.xpose.msra.mxu0 0.0
        %2685 = vmatprep.subr.mxu0 0.0
        %2686 = vmatpush2.xpose.msra.mxu0 0.0
        %2687 = vmatprep.subr.mxu0 0.0
        %2688 = vmatpush2.xpose.msra.mxu0 0.0
        %2689 = vmatprep.subr.mxu0 0.0
        %2690 = vmatpush2.xpose.msra.mxu0 0.0
        %2691 = vmatprep.subr.mxu0 0.0
        %2692 = vmatpush2.xpose.msra.mxu0 0.0
        %2693 = vmatprep.subr.mxu0 0.0
        %2694 = vmatpush2.xpose.msra.mxu0 0.0
        %2695 = vmatprep.subr.mxu0 0.0
        %2696 = vmatpush2.xpose.msra.mxu0 0.0
        %2697 = vmatprep.subr.mxu0 0.0
        %2698 = vmatpush2.xpose.msra.mxu0 0.0
        %2699 = vmatprep.mubr.f32.mxu0 0.0
        %2700 = vmatmul.mubr.f32.gmra.mxu0 %v2627
        %v2701 = vpop.f32.mrf.mxu0
        %v2702 = vadd.f32 0.0, %v2701
        %v2703 = vpop.f32.mrf.mxu0
        %2704 = vdwg.mxu0
        %vm2705 = vcmask 130048
        %v2706 = vsel %vm2705, %v2702, -inf
        %2707 = vmax.xlane.f32.xlu0 %v2706
        %v2708 = vpop.xlane.xlu0 %2707
        %v2709 = vsub.f32 %v2702, %v2708
        %v2710 = vmul.f32 %v2709, 1.442695
        %v2711 = vpow.pop %v2710
        %v2712 = vsel %vm2705, %v2711, 0.0
        %2713 = vadd.xlane.f32.xlu0 %v2712
        %v2714 = vpop.xlane.xlu0 %2713
        %v2715 = vrcp.pop %v2714
        %v2716 = vmul.f32 %v2711, %v2715
        %v2717 = vld [vmem:[#allocation5] sm:$0xff]
        %v2718 = vld [vmem:[#allocation5 + $0x8] sm:$0xff]
        %v2720 = vsel %vm2705, %v2716, 0
        %2722 = vmatprep.subr.mxu0 0.0
        %2723 = vmatpush1.msra.mxu0 0.0
        %2724 = vmatprep.subr.mxu0 0.0
        %2725 = vmatpush1.msra.mxu0 0.0
        %2726 = vmatprep.subr.mxu0 0.0
        %2727 = vmatpush1.msra.mxu0 0.0
        %2728 = vmatprep.subr.mxu0 0.0
        %2729 = vmatpush1.msra.mxu0 0.0
        %2730 = vmatprep.subr.mxu0 0.0
        %2731 = vmatpush1.msra.mxu0 0.0
        %2732 = vmatprep.subr.mxu0 0.0
        %2733 = vmatpush1.msra.mxu0 0.0
        %2734 = vmatprep.subr.mxu0 0.0
        %2735 = vmatpush1.msra.mxu0 0.0
        %2736 = vmatprep.subr.mxu0 0.0
        %2737 = vmatpush1.msra.mxu0 0.0
        %2738 = vmatprep.subr.mxu0 0.0
        %2739 = vmatpush1.msra.mxu0 0.0
        %2740 = vmatprep.subr.mxu0 0.0
        %2741 = vmatpush1.msra.mxu0 0.0
        %2742 = vmatprep.subr.mxu0 0.0
        %2743 = vmatpush1.msra.mxu0 0.0
        %2744 = vmatprep.subr.mxu0 0.0
        %2745 = vmatpush1.msra.mxu0 0.0
        %2746 = vmatprep.subr.mxu0 0.0
        %2747 = vmatpush1.msra.mxu0 0.0
        %2748 = vmatprep.subr.mxu0 0.0
        %2749 = vmatpush1.msra.mxu0 0.0
        %2750 = vmatprep.subr.mxu0 0.0
        %2751 = vmatpush1.msra.mxu0 %v2718
        %2752 = vmatprep.subr.mxu0 0.0
        %2753 = vmatpush1.msra.mxu0 %v2717
        %2754 = vmatprep.subr.mxu0 0.0
        %2755 = vmatpush2.msra.mxu0 0.0
        %2756 = vmatprep.subr.mxu0 0.0
        %2757 = vmatpush2.msra.mxu0 0.0
        %2758 = vmatprep.subr.mxu0 0.0
        %2759 = vmatpush2.msra.mxu0 0.0
        %2760 = vmatprep.subr.mxu0 0.0
        %2761 = vmatpush2.msra.mxu0 0.0
        %2762 = vmatprep.subr.mxu0 0.0
        %2763 = vmatpush2.msra.mxu0 0.0
        %2764 = vmatprep.subr.mxu0 0.0
        %2765 = vmatpush2.msra.mxu0 0.0
        %2766 = vmatprep.subr.mxu0 0.0
        %2767 = vmatpush2.msra.mxu0 0.0
        %2768 = vmatprep.subr.mxu0 0.0
        %2769 = vmatpush2.msra.mxu0 0.0
        %2770 = vmatprep.subr.mxu0 0.0
        %2771 = vmatpush2.msra.mxu0 0.0
        %2772 = vmatprep.subr.mxu0 0.0
        %2773 = vmatpush2.msra.mxu0 0.0
        %2774 = vmatprep.subr.mxu0 0.0
        %2775 = vmatpush2.msra.mxu0 0.0
        %2776 = vmatprep.subr.mxu0 0.0
        %2777 = vmatpush2.msra.mxu0 0.0
        %2778 = vmatprep.subr.mxu0 0.0
        %2779 = vmatpush2.msra.mxu0 0.0
        %2780 = vmatprep.subr.mxu0 0.0
        %2781 = vmatpush2.msra.mxu0 0.0
        %2782 = vmatprep.subr.mxu0 0.0
        %2783 = vmatpush2.msra.mxu0 0.0
        %2784 = vmatprep.subr.mxu0 0.0
        %2785 = vmatpush2.msra.mxu0 0.0
        %2786 = vmatprep.mubr.f32.mxu0 0.0
        %2787 = vmatmul.mubr.f32.gmra.mxu0 %v2720
        %v2788 = vpop.f32.mrf.mxu0
        %v2789 = vadd.f32 0.0, %v2788
        %v2790 = vpop.f32.mrf.mxu0
        %2791 = vdwg.mxu0
        %2792 = vst.msk [vmem:[#allocation6] sm:$0xff] %vm1623, %v2789
        %v2793 = vld [vmem:[#allocation3] sm:$0xff]
        %v2794 = vld [vmem:[#allocation4] sm:$0xff]
        %v2795 = vld [vmem:[#allocation4 + $0x8] sm:$0xff]
        %2797 = vrot.lane.b32.xlu0 %v2793, 120
        %v2798 = vpop.permute.xlu0 %2797
        %2801 = vrot.lane.b32.xlu0 %v2794, 120
        %v2802 = vpop.permute.xlu0 %2801
        %2803 = vrot.lane.b32.xlu0 %v2795, 120
        %v2804 = vpop.permute.xlu0 %2803
        %v2805 = vsel %vm1623, %v2798, 0
        %v2807 = vsel %vm1623, %v2802, 0
        %v2809 = vsel %vm1623, %v2804, 0
        %2811 = vmatprep.subr.mxu0 0.0
        %2812 = vmatpush1.xpose.msra.mxu0 0.0
        %2813 = vmatprep.subr.mxu0 0.0
        %2814 = vmatpush1.xpose.msra.mxu0 0.0
        %2815 = vmatprep.subr.mxu0 0.0
        %2816 = vmatpush1.xpose.msra.mxu0 0.0
        %2817 = vmatprep.subr.mxu0 0.0
        %2818 = vmatpush1.xpose.msra.mxu0 0.0
        %2819 = vmatprep.subr.mxu0 0.0
        %2820 = vmatpush1.xpose.msra.mxu0 0.0
        %2821 = vmatprep.subr.mxu0 0.0
        %2822 = vmatpush1.xpose.msra.mxu0 0.0
        %2823 = vmatprep.subr.mxu0 0.0
        %2824 = vmatpush1.xpose.msra.mxu0 0.0
        %2825 = vmatprep.subr.mxu0 0.0
        %2826 = vmatpush1.xpose.msra.mxu0 0.0
        %2827 = vmatprep.subr.mxu0 0.0
        %2828 = vmatpush1.xpose.msra.mxu0 0.0
        %2829 = vmatprep.subr.mxu0 0.0
        %2830 = vmatpush1.xpose.msra.mxu0 0.0
        %2831 = vmatprep.subr.mxu0 0.0
        %2832 = vmatpush1.xpose.msra.mxu0 0.0
        %2833 = vmatprep.subr.mxu0 0.0
        %2834 = vmatpush1.xpose.msra.mxu0 0.0
        %2835 = vmatprep.subr.mxu0 0.0
        %2836 = vmatpush1.xpose.msra.mxu0 0.0
        %2837 = vmatprep.subr.mxu0 0.0
        %2838 = vmatpush1.xpose.msra.mxu0 0.0
        %2839 = vmatprep.subr.mxu0 0.0
        %2840 = vmatpush1.xpose.msra.mxu0 %v2809
        %2841 = vmatprep.subr.mxu0 0.0
        %2842 = vmatpush1.xpose.msra.mxu0 %v2807
        %2843 = vmatprep.subr.mxu0 0.0
        %2844 = vmatpush2.xpose.msra.mxu0 0.0
        %2845 = vmatprep.subr.mxu0 0.0
        %2846 = vmatpush2.xpose.msra.mxu0 0.0
        %2847 = vmatprep.subr.mxu0 0.0
        %2848 = vmatpush2.xpose.msra.mxu0 0.0
        %2849 = vmatprep.subr.mxu0 0.0
        %2850 = vmatpush2.xpose.msra.mxu0 0.0
        %2851 = vmatprep.subr.mxu0 0.0
        %2852 = vmatpush2.xpose.msra.mxu0 0.0
        %2853 = vmatprep.subr.mxu0 0.0
        %2854 = vmatpush2.xpose.msra.mxu0 0.0
        %2855 = vmatprep.subr.mxu0 0.0
        %2856 = vmatpush2.xpose.msra.mxu0 0.0
        %2857 = vmatprep.subr.mxu0 0.0
        %2858 = vmatpush2.xpose.msra.mxu0 0.0
        %2859 = vmatprep.subr.mxu0 0.0
        %2860 = vmatpush2.xpose.msra.mxu0 0.0
        %2861 = vmatprep.subr.mxu0 0.0
        %2862 = vmatpush2.xpose.msra.mxu0 0.0
        %2863 = vmatprep.subr.mxu0 0.0
        %2864 = vmatpush2.xpose.msra.mxu0 0.0
        %2865 = vmatprep.subr.mxu0 0.0
        %2866 = vmatpush2.xpose.msra.mxu0 0.0
        %2867 = vmatprep.subr.mxu0 0.0
        %2868 = vmatpush2.xpose.msra.mxu0 0.0
        %2869 = vmatprep.subr.mxu0 0.0
        %2870 = vmatpush2.xpose.msra.mxu0 0.0
        %2871 = vmatprep.subr.mxu0 0.0
        %2872 = vmatpush2.xpose.msra.mxu0 0.0
        %2873 = vmatprep.subr.mxu0 0.0
        %2874 = vmatpush2.xpose.msra.mxu0 0.0
        %2875 = vmatprep.mubr.f32.mxu0 0.0
        %2876 = vmatmul.mubr.f32.gmra.mxu0 %v2805
        %v2877 = vpop.f32.mrf.mxu0
        %v2878 = vadd.f32 0.0, %v2877
        %v2879 = vpop.f32.mrf.mxu0
        %2880 = vdwg.mxu0
        %v2881 = vsel %vm2705, %v2878, -inf
        %2882 = vmax.xlane.f32.xlu0 %v2881
        %v2883 = vpop.xlane.xlu0 %2882
        %v2884 = vsub.f32 %v2878, %v2883
        %v2885 = vmul.f32 %v2884, 1.442695
        %v2886 = vpow.pop %v2885
        %v2887 = vsel %vm2705, %v2886, 0.0
        %2888 = vadd.xlane.f32.xlu0 %v2887
        %v2889 = vpop.xlane.xlu0 %2888
        %v2890 = vrcp.pop %v2889
        %v2891 = vmul.f32 %v2886, %v2890
        %v2892 = vld [vmem:[#allocation5] sm:$0xff]
        %v2893 = vld [vmem:[#allocation5 + $0x8] sm:$0xff]
        %2896 = vrot.lane.b32.xlu0 %v2892, 120
        %v2897 = vpop.permute.xlu0 %2896
        %2898 = vrot.lane.b32.xlu0 %v2893, 120
        %v2899 = vpop.permute.xlu0 %2898
        %v2903 = vsel %vm2705, %v2891, 0
        %2905 = vmatprep.subr.mxu0 0.0
        %2906 = vmatpush1.msra.mxu0 0.0
        %2907 = vmatprep.subr.mxu0 0.0
        %2908 = vmatpush1.msra.mxu0 0.0
        %2909 = vmatprep.subr.mxu0 0.0
        %2910 = vmatpush1.msra.mxu0 0.0
        %2911 = vmatprep.subr.mxu0 0.0
        %2912 = vmatpush1.msra.mxu0 0.0
        %2913 = vmatprep.subr.mxu0 0.0
        %2914 = vmatpush1.msra.mxu0 0.0
        %2915 = vmatprep.subr.mxu0 0.0
        %2916 = vmatpush1.msra.mxu0 0.0
        %2917 = vmatprep.subr.mxu0 0.0
        %2918 = vmatpush1.msra.mxu0 0.0
        %2919 = vmatprep.subr.mxu0 0.0
        %2920 = vmatpush1.msra.mxu0 0.0
        %2921 = vmatprep.subr.mxu0 0.0
        %2922 = vmatpush1.msra.mxu0 0.0
        %2923 = vmatprep.subr.mxu0 0.0
        %2924 = vmatpush1.msra.mxu0 0.0
        %2925 = vmatprep.subr.mxu0 0.0
        %2926 = vmatpush1.msra.mxu0 0.0
        %2927 = vmatprep.subr.mxu0 0.0
        %2928 = vmatpush1.msra.mxu0 0.0
        %2929 = vmatprep.subr.mxu0 0.0
        %2930 = vmatpush1.msra.mxu0 0.0
        %2931 = vmatprep.subr.mxu0 0.0
        %2932 = vmatpush1.msra.mxu0 0.0
        %2933 = vmatprep.subr.mxu0 0.0
        %2934 = vmatpush1.msra.mxu0 %v2899
        %2935 = vmatprep.subr.mxu0 0.0
        %2936 = vmatpush1.msra.mxu0 %v2897
        %2937 = vmatprep.subr.mxu0 0.0
        %2938 = vmatpush2.msra.mxu0 0.0
        %2939 = vmatprep.subr.mxu0 0.0
        %2940 = vmatpush2.msra.mxu0 0.0
        %2941 = vmatprep.subr.mxu0 0.0
        %2942 = vmatpush2.msra.mxu0 0.0
        %2943 = vmatprep.subr.mxu0 0.0
        %2944 = vmatpush2.msra.mxu0 0.0
        %2945 = vmatprep.subr.mxu0 0.0
        %2946 = vmatpush2.msra.mxu0 0.0
        %2947 = vmatprep.subr.mxu0 0.0
        %2948 = vmatpush2.msra.mxu0 0.0
        %2949 = vmatprep.subr.mxu0 0.0
        %2950 = vmatpush2.msra.mxu0 0.0
        %2951 = vmatprep.subr.mxu0 0.0
        %2952 = vmatpush2.msra.mxu0 0.0
        %2953 = vmatprep.subr.mxu0 0.0
        %2954 = vmatpush2.msra.mxu0 0.0
        %2955 = vmatprep.subr.mxu0 0.0
        %2956 = vmatpush2.msra.mxu0 0.0
        %2957 = vmatprep.subr.mxu0 0.0
        %2958 = vmatpush2.msra.mxu0 0.0
        %2959 = vmatprep.subr.mxu0 0.0
        %2960 = vmatpush2.msra.mxu0 0.0
        %2961 = vmatprep.subr.mxu0 0.0
        %2962 = vmatpush2.msra.mxu0 0.0
        %2963 = vmatprep.subr.mxu0 0.0
        %2964 = vmatpush2.msra.mxu0 0.0
        %2965 = vmatprep.subr.mxu0 0.0
        %2966 = vmatpush2.msra.mxu0 0.0
        %2967 = vmatprep.subr.mxu0 0.0
        %2968 = vmatpush2.msra.mxu0 0.0
        %2969 = vmatprep.mubr.f32.mxu0 0.0
        %2970 = vmatmul.mubr.f32.gmra.mxu0 %v2903
        %v2971 = vpop.f32.mrf.mxu0
        %v2972 = vadd.f32 0.0, %v2971
        %v2973 = vpop.f32.mrf.mxu0
        %2974 = vdwg.mxu0
        %2976 = vrot.lane.b32.xlu0 %v2972, 8
        %v2977 = vpop.permute.xlu0 %2976
        %2979 = vst.msk [vmem:[#allocation6] sm:$0xff] %vm1961, %v2977
        %v2980 = vld [vmem:[#allocation3] sm:$0xff]
        %v2981 = vld [vmem:[#allocation4] sm:$0xff]
        %v2982 = vld [vmem:[#allocation4 + $0x8] sm:$0xff]
        %2984 = vrot.lane.b32.xlu0 %v2980, 112
        %v2985 = vpop.permute.xlu0 %2984
        %2988 = vrot.lane.b32.xlu0 %v2981, 112
        %v2989 = vpop.permute.xlu0 %2988
        %2990 = vrot.lane.b32.xlu0 %v2982, 112
        %v2991 = vpop.permute.xlu0 %2990
        %v2992 = vsel %vm1623, %v2985, 0
        %v2994 = vsel %vm1623, %v2989, 0
        %v2996 = vsel %vm1623, %v2991, 0
        %2998 = vmatprep.subr.mxu0 0.0
        %2999 = vmatpush1.xpose.msra.mxu0 0.0
        %3000 = vmatprep.subr.mxu0 0.0
        %3001 = vmatpush1.xpose.msra.mxu0 0.0
        %3002 = vmatprep.subr.mxu0 0.0
        %3003 = vmatpush1.xpose.msra.mxu0 0.0
        %3004 = vmatprep.subr.mxu0 0.0
        %3005 = vmatpush1.xpose.msra.mxu0 0.0
        %3006 = vmatprep.subr.mxu0 0.0
        %3007 = vmatpush1.xpose.msra.mxu0 0.0
        %3008 = vmatprep.subr.mxu0 0.0
        %3009 = vmatpush1.xpose.msra.mxu0 0.0
        %3010 = vmatprep.subr.mxu0 0.0
        %3011 = vmatpush1.xpose.msra.mxu0 0.0
        %3012 = vmatprep.subr.mxu0 0.0
        %3013 = vmatpush1.xpose.msra.mxu0 0.0
        %3014 = vmatprep.subr.mxu0 0.0
        %3015 = vmatpush1.xpose.msra.mxu0 0.0
        %3016 = vmatprep.subr.mxu0 0.0
        %3017 = vmatpush1.xpose.msra.mxu0 0.0
        %3018 = vmatprep.subr.mxu0 0.0
        %3019 = vmatpush1.xpose.msra.mxu0 0.0
        %3020 = vmatprep.subr.mxu0 0.0
        %3021 = vmatpush1.xpose.msra.mxu0 0.0
        %3022 = vmatprep.subr.mxu0 0.0
        %3023 = vmatpush1.xpose.msra.mxu0 0.0
        %3024 = vmatprep.subr.mxu0 0.0
        %3025 = vmatpush1.xpose.msra.mxu0 0.0
        %3026 = vmatprep.subr.mxu0 0.0
        %3027 = vmatpush1.xpose.msra.mxu0 %v2996
        %3028 = vmatprep.subr.mxu0 0.0
        %3029 = vmatpush1.xpose.msra.mxu0 %v2994
        %3030 = vmatprep.subr.mxu0 0.0
        %3031 = vmatpush2.xpose.msra.mxu0 0.0
        %3032 = vmatprep.subr.mxu0 0.0
        %3033 = vmatpush2.xpose.msra.mxu0 0.0
        %3034 = vmatprep.subr.mxu0 0.0
        %3035 = vmatpush2.xpose.msra.mxu0 0.0
        %3036 = vmatprep.subr.mxu0 0.0
        %3037 = vmatpush2.xpose.msra.mxu0 0.0
        %3038 = vmatprep.subr.mxu0 0.0
        %3039 = vmatpush2.xpose.msra.mxu0 0.0
        %3040 = vmatprep.subr.mxu0 0.0
        %3041 = vmatpush2.xpose.msra.mxu0 0.0
        %3042 = vmatprep.subr.mxu0 0.0
        %3043 = vmatpush2.xpose.msra.mxu0 0.0
        %3044 = vmatprep.subr.mxu0 0.0
        %3045 = vmatpush2.xpose.msra.mxu0 0.0
        %3046 = vmatprep.subr.mxu0 0.0
        %3047 = vmatpush2.xpose.msra.mxu0 0.0
        %3048 = vmatprep.subr.mxu0 0.0
        %3049 = vmatpush2.xpose.msra.mxu0 0.0
        %3050 = vmatprep.subr.mxu0 0.0
        %3051 = vmatpush2.xpose.msra.mxu0 0.0
        %3052 = vmatprep.subr.mxu0 0.0
        %3053 = vmatpush2.xpose.msra.mxu0 0.0
        %3054 = vmatprep.subr.mxu0 0.0
        %3055 = vmatpush2.xpose.msra.mxu0 0.0
        %3056 = vmatprep.subr.mxu0 0.0
        %3057 = vmatpush2.xpose.msra.mxu0 0.0
        %3058 = vmatprep.subr.mxu0 0.0
        %3059 = vmatpush2.xpose.msra.mxu0 0.0
        %3060 = vmatprep.subr.mxu0 0.0
        %3061 = vmatpush2.xpose.msra.mxu0 0.0
        %3062 = vmatprep.mubr.f32.mxu0 0.0
        %3063 = vmatmul.mubr.f32.gmra.mxu0 %v2992
        %v3064 = vpop.f32.mrf.mxu0
        %v3065 = vadd.f32 0.0, %v3064
        %v3066 = vpop.f32.mrf.mxu0
        %3067 = vdwg.mxu0
        %v3068 = vsel %vm2705, %v3065, -inf
        %3069 = vmax.xlane.f32.xlu0 %v3068
        %v3070 = vpop.xlane.xlu0 %3069
        %v3071 = vsub.f32 %v3065, %v3070
        %v3072 = vmul.f32 %v3071, 1.442695
        %v3073 = vpow.pop %v3072
        %v3074 = vsel %vm2705, %v3073, 0.0
        %3075 = vadd.xlane.f32.xlu0 %v3074
        %v3076 = vpop.xlane.xlu0 %3075
        %v3077 = vrcp.pop %v3076
        %v3078 = vmul.f32 %v3073, %v3077
        %v3079 = vld [vmem:[#allocation5] sm:$0xff]
        %v3080 = vld [vmem:[#allocation5 + $0x8] sm:$0xff]
        %3083 = vrot.lane.b32.xlu0 %v3079, 112
        %v3084 = vpop.permute.xlu0 %3083
        %3085 = vrot.lane.b32.xlu0 %v3080, 112
        %v3086 = vpop.permute.xlu0 %3085
        %v3090 = vsel %vm2705, %v3078, 0
        %3092 = vmatprep.subr.mxu0 0.0
        %3093 = vmatpush1.msra.mxu0 0.0
        %3094 = vmatprep.subr.mxu0 0.0
        %3095 = vmatpush1.msra.mxu0 0.0
        %3096 = vmatprep.subr.mxu0 0.0
        %3097 = vmatpush1.msra.mxu0 0.0
        %3098 = vmatprep.subr.mxu0 0.0
        %3099 = vmatpush1.msra.mxu0 0.0
        %3100 = vmatprep.subr.mxu0 0.0
        %3101 = vmatpush1.msra.mxu0 0.0
        %3102 = vmatprep.subr.mxu0 0.0
        %3103 = vmatpush1.msra.mxu0 0.0
        %3104 = vmatprep.subr.mxu0 0.0
        %3105 = vmatpush1.msra.mxu0 0.0
        %3106 = vmatprep.subr.mxu0 0.0
        %3107 = vmatpush1.msra.mxu0 0.0
        %3108 = vmatprep.subr.mxu0 0.0
        %3109 = vmatpush1.msra.mxu0 0.0
        %3110 = vmatprep.subr.mxu0 0.0
        %3111 = vmatpush1.msra.mxu0 0.0
        %3112 = vmatprep.subr.mxu0 0.0
        %3113 = vmatpush1.msra.mxu0 0.0
        %3114 = vmatprep.subr.mxu0 0.0
        %3115 = vmatpush1.msra.mxu0 0.0
        %3116 = vmatprep.subr.mxu0 0.0
        %3117 = vmatpush1.msra.mxu0 0.0
        %3118 = vmatprep.subr.mxu0 0.0
        %3119 = vmatpush1.msra.mxu0 0.0
        %3120 = vmatprep.subr.mxu0 0.0
        %3121 = vmatpush1.msra.mxu0 %v3086
        %3122 = vmatprep.subr.mxu0 0.0
        %3123 = vmatpush1.msra.mxu0 %v3084
        %3124 = vmatprep.subr.mxu0 0.0
        %3125 = vmatpush2.msra.mxu0 0.0
        %3126 = vmatprep.subr.mxu0 0.0
        %3127 = vmatpush2.msra.mxu0 0.0
        %3128 = vmatprep.subr.mxu0 0.0
        %3129 = vmatpush2.msra.mxu0 0.0
        %3130 = vmatprep.subr.mxu0 0.0
        %3131 = vmatpush2.msra.mxu0 0.0
        %3132 = vmatprep.subr.mxu0 0.0
        %3133 = vmatpush2.msra.mxu0 0.0
        %3134 = vmatprep.subr.mxu0 0.0
        %3135 = vmatpush2.msra.mxu0 0.0
        %3136 = vmatprep.subr.mxu0 0.0
        %3137 = vmatpush2.msra.mxu0 0.0
        %3138 = vmatprep.subr.mxu0 0.0
        %3139 = vmatpush2.msra.mxu0 0.0
        %3140 = vmatprep.subr.mxu0 0.0
        %3141 = vmatpush2.msra.mxu0 0.0
        %3142 = vmatprep.subr.mxu0 0.0
        %3143 = vmatpush2.msra.mxu0 0.0
        %3144 = vmatprep.subr.mxu0 0.0
        %3145 = vmatpush2.msra.mxu0 0.0
        %3146 = vmatprep.subr.mxu0 0.0
        %3147 = vmatpush2.msra.mxu0 0.0
        %3148 = vmatprep.subr.mxu0 0.0
        %3149 = vmatpush2.msra.mxu0 0.0
        %3150 = vmatprep.subr.mxu0 0.0
        %3151 = vmatpush2.msra.mxu0 0.0
        %3152 = vmatprep.subr.mxu0 0.0
        %3153 = vmatpush2.msra.mxu0 0.0
        %3154 = vmatprep.subr.mxu0 0.0
        %3155 = vmatpush2.msra.mxu0 0.0
        %3156 = vmatprep.mubr.f32.mxu0 0.0
        %3157 = vmatmul.mubr.f32.gmra.mxu0 %v3090
        %v3158 = vpop.f32.mrf.mxu0
        %v3159 = vadd.f32 0.0, %v3158
        %v3160 = vpop.f32.mrf.mxu0
        %3161 = vdwg.mxu0
        %3163 = vrot.lane.b32.xlu0 %v3159, 16
        %v3164 = vpop.permute.xlu0 %3163
        %3166 = vst.msk [vmem:[#allocation6] sm:$0xff] %vm2138, %v3164
        %v3167 = vld [vmem:[#allocation3] sm:$0xff]
        %v3168 = vld [vmem:[#allocation4] sm:$0xff]
        %v3169 = vld [vmem:[#allocation4 + $0x8] sm:$0xff]
        %3171 = vrot.lane.b32.xlu0 %v3167, 104
        %v3172 = vpop.permute.xlu0 %3171
        %3175 = vrot.lane.b32.xlu0 %v3168, 104
        %v3176 = vpop.permute.xlu0 %3175
        %3177 = vrot.lane.b32.xlu0 %v3169, 104
        %v3178 = vpop.permute.xlu0 %3177
        %v3179 = vsel %vm1623, %v3172, 0
        %v3181 = vsel %vm1623, %v3176, 0
        %v3183 = vsel %vm1623, %v3178, 0
        %3185 = vmatprep.subr.mxu0 0.0
        %3186 = vmatpush1.xpose.msra.mxu0 0.0
        %3187 = vmatprep.subr.mxu0 0.0
        %3188 = vmatpush1.xpose.msra.mxu0 0.0
        %3189 = vmatprep.subr.mxu0 0.0
        %3190 = vmatpush1.xpose.msra.mxu0 0.0
        %3191 = vmatprep.subr.mxu0 0.0
        %3192 = vmatpush1.xpose.msra.mxu0 0.0
        %3193 = vmatprep.subr.mxu0 0.0
        %3194 = vmatpush1.xpose.msra.mxu0 0.0
        %3195 = vmatprep.subr.mxu0 0.0
        %3196 = vmatpush1.xpose.msra.mxu0 0.0
        %3197 = vmatprep.subr.mxu0 0.0
        %3198 = vmatpush1.xpose.msra.mxu0 0.0
        %3199 = vmatprep.subr.mxu0 0.0
        %3200 = vmatpush1.xpose.msra.mxu0 0.0
        %3201 = vmatprep.subr.mxu0 0.0
        %3202 = vmatpush1.xpose.msra.mxu0 0.0
        %3203 = vmatprep.subr.mxu0 0.0
        %3204 = vmatpush1.xpose.msra.mxu0 0.0
        %3205 = vmatprep.subr.mxu0 0.0
        %3206 = vmatpush1.xpose.msra.mxu0 0.0
        %3207 = vmatprep.subr.mxu0 0.0
        %3208 = vmatpush1.xpose.msra.mxu0 0.0
        %3209 = vmatprep.subr.mxu0 0.0
        %3210 = vmatpush1.xpose.msra.mxu0 0.0
        %3211 = vmatprep.subr.mxu0 0.0
        %3212 = vmatpush1.xpose.msra.mxu0 0.0
        %3213 = vmatprep.subr.mxu0 0.0
        %3214 = vmatpush1.xpose.msra.mxu0 %v3183
        %3215 = vmatprep.subr.mxu0 0.0
        %3216 = vmatpush1.xpose.msra.mxu0 %v3181
        %3217 = vmatprep.subr.mxu0 0.0
        %3218 = vmatpush2.xpose.msra.mxu0 0.0
        %3219 = vmatprep.subr.mxu0 0.0
        %3220 = vmatpush2.xpose.msra.mxu0 0.0
        %3221 = vmatprep.subr.mxu0 0.0
        %3222 = vmatpush2.xpose.msra.mxu0 0.0
        %3223 = vmatprep.subr.mxu0 0.0
        %3224 = vmatpush2.xpose.msra.mxu0 0.0
        %3225 = vmatprep.subr.mxu0 0.0
        %3226 = vmatpush2.xpose.msra.mxu0 0.0
        %3227 = vmatprep.subr.mxu0 0.0
        %3228 = vmatpush2.xpose.msra.mxu0 0.0
        %3229 = vmatprep.subr.mxu0 0.0
        %3230 = vmatpush2.xpose.msra.mxu0 0.0
        %3231 = vmatprep.subr.mxu0 0.0
        %3232 = vmatpush2.xpose.msra.mxu0 0.0
        %3233 = vmatprep.subr.mxu0 0.0
        %3234 = vmatpush2.xpose.msra.mxu0 0.0
        %3235 = vmatprep.subr.mxu0 0.0
        %3236 = vmatpush2.xpose.msra.mxu0 0.0
        %3237 = vmatprep.subr.mxu0 0.0
        %3238 = vmatpush2.xpose.msra.mxu0 0.0
        %3239 = vmatprep.subr.mxu0 0.0
        %3240 = vmatpush2.xpose.msra.mxu0 0.0
        %3241 = vmatprep.subr.mxu0 0.0
        %3242 = vmatpush2.xpose.msra.mxu0 0.0
        %3243 = vmatprep.subr.mxu0 0.0
        %3244 = vmatpush2.xpose.msra.mxu0 0.0
        %3245 = vmatprep.subr.mxu0 0.0
        %3246 = vmatpush2.xpose.msra.mxu0 0.0
        %3247 = vmatprep.subr.mxu0 0.0
        %3248 = vmatpush2.xpose.msra.mxu0 0.0
        %3249 = vmatprep.mubr.f32.mxu0 0.0
        %3250 = vmatmul.mubr.f32.gmra.mxu0 %v3179
        %v3251 = vpop.f32.mrf.mxu0
        %v3252 = vadd.f32 0.0, %v3251
        %v3253 = vpop.f32.mrf.mxu0
        %3254 = vdwg.mxu0
        %v3255 = vsel %vm2705, %v3252, -inf
        %3256 = vmax.xlane.f32.xlu0 %v3255
        %v3257 = vpop.xlane.xlu0 %3256
        %v3258 = vsub.f32 %v3252, %v3257
        %v3259 = vmul.f32 %v3258, 1.442695
        %v3260 = vpow.pop %v3259
        %v3261 = vsel %vm2705, %v3260, 0.0
        %3262 = vadd.xlane.f32.xlu0 %v3261
        %v3263 = vpop.xlane.xlu0 %3262
        %v3264 = vrcp.pop %v3263
        %v3265 = vmul.f32 %v3260, %v3264
        %v3266 = vld [vmem:[#allocation5] sm:$0xff]
        %v3267 = vld [vmem:[#allocation5 + $0x8] sm:$0xff]
        %3270 = vrot.lane.b32.xlu0 %v3266, 104
        %v3271 = vpop.permute.xlu0 %3270
        %3272 = vrot.lane.b32.xlu0 %v3267, 104
        %v3273 = vpop.permute.xlu0 %3272
        %v3277 = vsel %vm2705, %v3265, 0
        %3279 = vmatprep.subr.mxu0 0.0
        %3280 = vmatpush1.msra.mxu0 0.0
        %3281 = vmatprep.subr.mxu0 0.0
        %3282 = vmatpush1.msra.mxu0 0.0
        %3283 = vmatprep.subr.mxu0 0.0
        %3284 = vmatpush1.msra.mxu0 0.0
        %3285 = vmatprep.subr.mxu0 0.0
        %3286 = vmatpush1.msra.mxu0 0.0
        %3287 = vmatprep.subr.mxu0 0.0
        %3288 = vmatpush1.msra.mxu0 0.0
        %3289 = vmatprep.subr.mxu0 0.0
        %3290 = vmatpush1.msra.mxu0 0.0
        %3291 = vmatprep.subr.mxu0 0.0
        %3292 = vmatpush1.msra.mxu0 0.0
        %3293 = vmatprep.subr.mxu0 0.0
        %3294 = vmatpush1.msra.mxu0 0.0
        %3295 = vmatprep.subr.mxu0 0.0
        %3296 = vmatpush1.msra.mxu0 0.0
        %3297 = vmatprep.subr.mxu0 0.0
        %3298 = vmatpush1.msra.mxu0 0.0
        %3299 = vmatprep.subr.mxu0 0.0
        %3300 = vmatpush1.msra.mxu0 0.0
        %3301 = vmatprep.subr.mxu0 0.0
        %3302 = vmatpush1.msra.mxu0 0.0
        %3303 = vmatprep.subr.mxu0 0.0
        %3304 = vmatpush1.msra.mxu0 0.0
        %3305 = vmatprep.subr.mxu0 0.0
        %3306 = vmatpush1.msra.mxu0 0.0
        %3307 = vmatprep.subr.mxu0 0.0
        %3308 = vmatpush1.msra.mxu0 %v3273
        %3309 = vmatprep.subr.mxu0 0.0
        %3310 = vmatpush1.msra.mxu0 %v3271
        %3311 = vmatprep.subr.mxu0 0.0
        %3312 = vmatpush2.msra.mxu0 0.0
        %3313 = vmatprep.subr.mxu0 0.0
        %3314 = vmatpush2.msra.mxu0 0.0
        %3315 = vmatprep.subr.mxu0 0.0
        %3316 = vmatpush2.msra.mxu0 0.0
        %3317 = vmatprep.subr.mxu0 0.0
        %3318 = vmatpush2.msra.mxu0 0.0
        %3319 = vmatprep.subr.mxu0 0.0
        %3320 = vmatpush2.msra.mxu0 0.0
        %3321 = vmatprep.subr.mxu0 0.0
        %3322 = vmatpush2.msra.mxu0 0.0
        %3323 = vmatprep.subr.mxu0 0.0
        %3324 = vmatpush2.msra.mxu0 0.0
        %3325 = vmatprep.subr.mxu0 0.0
        %3326 = vmatpush2.msra.mxu0 0.0
        %3327 = vmatprep.subr.mxu0 0.0
        %3328 = vmatpush2.msra.mxu0 0.0
        %3329 = vmatprep.subr.mxu0 0.0
        %3330 = vmatpush2.msra.mxu0 0.0
        %3331 = vmatprep.subr.mxu0 0.0
        %3332 = vmatpush2.msra.mxu0 0.0
        %3333 = vmatprep.subr.mxu0 0.0
        %3334 = vmatpush2.msra.mxu0 0.0
        %3335 = vmatprep.subr.mxu0 0.0
        %3336 = vmatpush2.msra.mxu0 0.0
        %3337 = vmatprep.subr.mxu0 0.0
        %3338 = vmatpush2.msra.mxu0 0.0
        %3339 = vmatprep.subr.mxu0 0.0
        %3340 = vmatpush2.msra.mxu0 0.0
        %3341 = vmatprep.subr.mxu0 0.0
        %3342 = vmatpush2.msra.mxu0 0.0
        %3343 = vmatprep.mubr.f32.mxu0 0.0
        %3344 = vmatmul.mubr.f32.gmra.mxu0 %v3277
        %v3345 = vpop.f32.mrf.mxu0
        %v3346 = vadd.f32 0.0, %v3345
        %v3347 = vpop.f32.mrf.mxu0
        %3348 = vdwg.mxu0
        %3350 = vrot.lane.b32.xlu0 %v3346, 24
        %v3351 = vpop.permute.xlu0 %3350
        %3353 = vst.msk [vmem:[#allocation6] sm:$0xff] %vm2315, %v3351
        %v3354 = vld [vmem:[#allocation6] sm:$0xff]
        %v3355 = vld [vmem:[%s1226] sm:$0xff]
        %v3356 = vld [vmem:[%s1226 + $0x8] sm:$0xff]
        %v3357 = vld [vmem:[%s1226 + $0x10] sm:$0xff]
        %v3358 = vld [vmem:[%s1226 + $0x18] sm:$0xff]
        %v3359 = vld [vmem:[%s1234] sm:$0x1]
        %v3361 = vlaneseq
        %v3362 = vshrl.u32 %v3361, 7
        %v3363 = vsub.s32 0, %v3362
        %v3364 = vrot.slane %v3359, %v3363
        %v3367 = vsel %vm1530, %v3354, 0
        %3369 = vmatprep.subr.mxu0 0.0
        %3370 = vmatpush1.msra.mxu0 0.0
        %3371 = vmatprep.subr.mxu0 0.0
        %3372 = vmatpush1.msra.mxu0 0.0
        %3373 = vmatprep.subr.mxu0 0.0
        %3374 = vmatpush1.msra.mxu0 0.0
        %3375 = vmatprep.subr.mxu0 0.0
        %3376 = vmatpush1.msra.mxu0 0.0
        %3377 = vmatprep.subr.mxu0 0.0
        %3378 = vmatpush1.msra.mxu0 0.0
        %3379 = vmatprep.subr.mxu0 0.0
        %3380 = vmatpush1.msra.mxu0 0.0
        %3381 = vmatprep.subr.mxu0 0.0
        %3382 = vmatpush1.msra.mxu0 0.0
        %3383 = vmatprep.subr.mxu0 0.0
        %3384 = vmatpush1.msra.mxu0 0.0
        %3385 = vmatprep.subr.mxu0 0.0
        %3386 = vmatpush1.msra.mxu0 0.0
        %3387 = vmatprep.subr.mxu0 0.0
        %3388 = vmatpush1.msra.mxu0 0.0
        %3389 = vmatprep.subr.mxu0 0.0
        %3390 = vmatpush1.msra.mxu0 0.0
        %3391 = vmatprep.subr.mxu0 0.0
        %3392 = vmatpush1.msra.mxu0 0.0
        %3393 = vmatprep.subr.mxu0 0.0
        %3394 = vmatpush1.msra.mxu0 %v3358
        %3395 = vmatprep.subr.mxu0 0.0
        %3396 = vmatpush1.msra.mxu0 %v3357
        %3397 = vmatprep.subr.mxu0 0.0
        %3398 = vmatpush1.msra.mxu0 %v3356
        %3399 = vmatprep.subr.mxu0 0.0
        %3400 = vmatpush1.msra.mxu0 %v3355
        %3401 = vmatprep.subr.mxu0 0.0
        %3402 = vmatpush2.msra.mxu0 0.0
        %3403 = vmatprep.subr.mxu0 0.0
        %3404 = vmatpush2.msra.mxu0 0.0
        %3405 = vmatprep.subr.mxu0 0.0
        %3406 = vmatpush2.msra.mxu0 0.0
        %3407 = vmatprep.subr.mxu0 0.0
        %3408 = vmatpush2.msra.mxu0 0.0
        %3409 = vmatprep.subr.mxu0 0.0
        %3410 = vmatpush2.msra.mxu0 0.0
        %3411 = vmatprep.subr.mxu0 0.0
        %3412 = vmatpush2.msra.mxu0 0.0
        %3413 = vmatprep.subr.mxu0 0.0
        %3414 = vmatpush2.msra.mxu0 0.0
        %3415 = vmatprep.subr.mxu0 0.0
        %3416 = vmatpush2.msra.mxu0 0.0
        %3417 = vmatprep.subr.mxu0 0.0
        %3418 = vmatpush2.msra.mxu0 0.0
        %3419 = vmatprep.subr.mxu0 0.0
        %3420 = vmatpush2.msra.mxu0 0.0
        %3421 = vmatprep.subr.mxu0 0.0
        %3422 = vmatpush2.msra.mxu0 0.0
        %3423 = vmatprep.subr.mxu0 0.0
        %3424 = vmatpush2.msra.mxu0 0.0
        %3425 = vmatprep.subr.mxu0 0.0
        %3426 = vmatpush2.msra.mxu0 0.0
        %3427 = vmatprep.subr.mxu0 0.0
        %3428 = vmatpush2.msra.mxu0 0.0
        %3429 = vmatprep.subr.mxu0 0.0
        %3430 = vmatpush2.msra.mxu0 0.0
        %3431 = vmatprep.subr.mxu0 0.0
        %3432 = vmatpush2.msra.mxu0 0.0
        %3433 = vmatprep.mubr.f32.mxu0 0.0
        %3434 = vmatmul.mubr.f32.gmra.mxu0 %v3367
        %v3435 = vpop.f32.mrf.mxu0
        %v3436 = vadd.f32 %v3364, %v3435
        %v3437 = vpop.f32.mrf.mxu0
        %3438 = vdwg.mxu0
        %v3439 = vadd.f32 %v2432, %v3436
        %v3440 = vld [vmem:[%s1283] sm:$0x1]
        %v3441 = vld [vmem:[%s1291] sm:$0x1]
        %v3442 = vsel %vm1530, %v3439, 0.0
        %3443 = vadd.xlane.f32.xlu0 %v3442
        %v3444 = vpop.xlane.xlu0 %3443
        %v3445 = vmul.f32 %v3444, %v2408
        %v3446 = vsub.f32 %v3439, %v3445
        %v3447 = vmul.f32 %v3446, %v3446
        %v3448 = vsel %vm1530, %v3447, 0.0
        %3449 = vadd.xlane.f32.xlu0 %v3448
        %v3450 = vpop.xlane.xlu0 %3449
        %v3451 = vmul.f32 %v3450, %v2408
        %v3452 = vadd.f32 %v3451, 1e-05
        %v3453 = vrsqrt.pop %v3452
        %v3454 = vmul.f32 %v3446, %v3453
        %v3456 = vlaneseq
        %v3457 = vshrl.u32 %v3456, 7
        %v3458 = vsub.s32 0, %v3457
        %v3459 = vrot.slane %v3440, %v3458
        %v3461 = vmul.f32 %v3454, %v3459
        %v3463 = vlaneseq
        %v3464 = vshrl.u32 %v3463, 7
        %v3465 = vsub.s32 0, %v3464
        %v3466 = vrot.slane %v3441, %v3465
        %v3468 = vadd.f32 %v3461, %v3466
        %v3469 = vld [vmem:[%s1243] sm:$0xff]
        %v3470 = vld [vmem:[%s1243 + $0x8] sm:$0xff]
        %v3471 = vld [vmem:[%s1243 + $0x10] sm:$0xff]
        %v3472 = vld [vmem:[%s1243 + $0x18] sm:$0xff]
        %v3473 = vld [vmem:[%s1251] sm:$0x1]
        %v3475 = vlaneseq
        %v3476 = vshrl.u32 %v3475, 7
        %v3477 = vsub.s32 0, %v3476
        %v3478 = vrot.slane %v3473, %v3477
        %v3481 = vsel %vm1530, %v3468, 0
        %3483 = vmatprep.subr.mxu0 0.0
        %3484 = vmatpush1.msra.mxu0 0.0
        %3485 = vmatprep.subr.mxu0 0.0
        %3486 = vmatpush1.msra.mxu0 0.0
        %3487 = vmatprep.subr.mxu0 0.0
        %3488 = vmatpush1.msra.mxu0 0.0
        %3489 = vmatprep.subr.mxu0 0.0
        %3490 = vmatpush1.msra.mxu0 0.0
        %3491 = vmatprep.subr.mxu0 0.0
        %3492 = vmatpush1.msra.mxu0 0.0
        %3493 = vmatprep.subr.mxu0 0.0
        %3494 = vmatpush1.msra.mxu0 0.0
        %3495 = vmatprep.subr.mxu0 0.0
        %3496 = vmatpush1.msra.mxu0 0.0
        %3497 = vmatprep.subr.mxu0 0.0
        %3498 = vmatpush1.msra.mxu0 0.0
        %3499 = vmatprep.subr.mxu0 0.0
        %3500 = vmatpush1.msra.mxu0 0.0
        %3501 = vmatprep.subr.mxu0 0.0
        %3502 = vmatpush1.msra.mxu0 0.0
        %3503 = vmatprep.subr.mxu0 0.0
        %3504 = vmatpush1.msra.mxu0 0.0
        %3505 = vmatprep.subr.mxu0 0.0
        %3506 = vmatpush1.msra.mxu0 0.0
        %3507 = vmatprep.subr.mxu0 0.0
        %3508 = vmatpush1.msra.mxu0 %v3472
        %3509 = vmatprep.subr.mxu0 0.0
        %3510 = vmatpush1.msra.mxu0 %v3471
        %3511 = vmatprep.subr.mxu0 0.0
        %3512 = vmatpush1.msra.mxu0 %v3470
        %3513 = vmatprep.subr.mxu0 0.0
        %3514 = vmatpush1.msra.mxu0 %v3469
        %3515 = vmatprep.subr.mxu0 0.0
        %3516 = vmatpush2.msra.mxu0 0.0
        %3517 = vmatprep.subr.mxu0 0.0
        %3518 = vmatpush2.msra.mxu0 0.0
        %3519 = vmatprep.subr.mxu0 0.0
        %3520 = vmatpush2.msra.mxu0 0.0
        %3521 = vmatprep.subr.mxu0 0.0
        %3522 = vmatpush2.msra.mxu0 0.0
        %3523 = vmatprep.subr.mxu0 0.0
        %3524 = vmatpush2.msra.mxu0 0.0
        %3525 = vmatprep.subr.mxu0 0.0
        %3526 = vmatpush2.msra.mxu0 0.0
        %3527 = vmatprep.subr.mxu0 0.0
        %3528 = vmatpush2.msra.mxu0 0.0
        %3529 = vmatprep.subr.mxu0 0.0
        %3530 = vmatpush2.msra.mxu0 0.0
        %3531 = vmatprep.subr.mxu0 0.0
        %3532 = vmatpush2.msra.mxu0 0.0
        %3533 = vmatprep.subr.mxu0 0.0
        %3534 = vmatpush2.msra.mxu0 0.0
        %3535 = vmatprep.subr.mxu0 0.0
        %3536 = vmatpush2.msra.mxu0 0.0
        %3537 = vmatprep.subr.mxu0 0.0
        %3538 = vmatpush2.msra.mxu0 0.0
        %3539 = vmatprep.subr.mxu0 0.0
        %3540 = vmatpush2.msra.mxu0 0.0
        %3541 = vmatprep.subr.mxu0 0.0
        %3542 = vmatpush2.msra.mxu0 0.0
        %3543 = vmatprep.subr.mxu0 0.0
        %3544 = vmatpush2.msra.mxu0 0.0
        %3545 = vmatprep.subr.mxu0 0.0
        %3546 = vmatpush2.msra.mxu0 0.0
        %3547 = vmatprep.mubr.f32.mxu0 0.0
        %3548 = vmatmul.mubr.f32.gmra.mxu0 %v3481
        %v3549 = vpop.f32.mrf.mxu0
        %v3550 = vadd.f32 %v3478, %v3549
        %v3551 = vpop.f32.mrf.mxu0
        %3552 = vdwg.mxu0
        %v3553 = vmax.f32 %v3550, 0.0
        %v3554 = vld [vmem:[%s1508] sm:$0xff]
        %v3555 = vld [vmem:[%s1508 + $0x8] sm:$0xff]
        %v3556 = vld [vmem:[%s1508 + $0x10] sm:$0xff]
        %v3557 = vld [vmem:[%s1508 + $0x18] sm:$0xff]
        %v3558 = vld [vmem:[%s1508 + $0x20] sm:$0xff]
        %v3559 = vld [vmem:[%s1508 + $0x28] sm:$0xff]
        %v3560 = vld [vmem:[%s1508 + $0x30] sm:$0xff]
        %v3561 = vld [vmem:[%s1508 + $0x38] sm:$0xff]
        %v3562 = vld [vmem:[%s1259] sm:$0x1]
        %v3564 = vlaneseq
        %v3565 = vshrl.u32 %v3564, 7
        %v3566 = vsub.s32 0, %v3565
        %v3567 = vrot.slane %v3562, %v3566
        %vm3569 = vcmask 523264
        %v3571 = vsel %vm3569, %v3553, 0
        %3573 = vmatprep.subr.mxu0 0.0
        %3574 = vmatpush1.msra.mxu0 0.0
        %3575 = vmatprep.subr.mxu0 0.0
        %3576 = vmatpush1.msra.mxu0 0.0
        %3577 = vmatprep.subr.mxu0 0.0
        %3578 = vmatpush1.msra.mxu0 0.0
        %3579 = vmatprep.subr.mxu0 0.0
        %3580 = vmatpush1.msra.mxu0 0.0
        %3581 = vmatprep.subr.mxu0 0.0
        %3582 = vmatpush1.msra.mxu0 0.0
        %3583 = vmatprep.subr.mxu0 0.0
        %3584 = vmatpush1.msra.mxu0 0.0
        %3585 = vmatprep.subr.mxu0 0.0
        %3586 = vmatpush1.msra.mxu0 0.0
        %3587 = vmatprep.subr.mxu0 0.0
        %3588 = vmatpush1.msra.mxu0 0.0
        %3589 = vmatprep.subr.mxu0 0.0
        %3590 = vmatpush1.msra.mxu0 %v3561
        %3591 = vmatprep.subr.mxu0 0.0
        %3592 = vmatpush1.msra.mxu0 %v3560
        %3593 = vmatprep.subr.mxu0 0.0
        %3594 = vmatpush1.msra.mxu0 %v3559
        %3595 = vmatprep.subr.mxu0 0.0
        %3596 = vmatpush1.msra.mxu0 %v3558
        %3597 = vmatprep.subr.mxu0 0.0
        %3598 = vmatpush1.msra.mxu0 %v3557
        %3599 = vmatprep.subr.mxu0 0.0
        %3600 = vmatpush1.msra.mxu0 %v3556
        %3601 = vmatprep.subr.mxu0 0.0
        %3602 = vmatpush1.msra.mxu0 %v3555
        %3603 = vmatprep.subr.mxu0 0.0
        %3604 = vmatpush1.msra.mxu0 %v3554
        %3605 = vmatprep.subr.mxu0 0.0
        %3606 = vmatpush2.msra.mxu0 0.0
        %3607 = vmatprep.subr.mxu0 0.0
        %3608 = vmatpush2.msra.mxu0 0.0
        %3609 = vmatprep.subr.mxu0 0.0
        %3610 = vmatpush2.msra.mxu0 0.0
        %3611 = vmatprep.subr.mxu0 0.0
        %3612 = vmatpush2.msra.mxu0 0.0
        %3613 = vmatprep.subr.mxu0 0.0
        %3614 = vmatpush2.msra.mxu0 0.0
        %3615 = vmatprep.subr.mxu0 0.0
        %3616 = vmatpush2.msra.mxu0 0.0
        %3617 = vmatprep.subr.mxu0 0.0
        %3618 = vmatpush2.msra.mxu0 0.0
        %3619 = vmatprep.subr.mxu0 0.0
        %3620 = vmatpush2.msra.mxu0 0.0
        %3621 = vmatprep.subr.mxu0 0.0
        %3622 = vmatpush2.msra.mxu0 0.0
        %3623 = vmatprep.subr.mxu0 0.0
        %3624 = vmatpush2.msra.mxu0 0.0
        %3625 = vmatprep.subr.mxu0 0.0
        %3626 = vmatpush2.msra.mxu0 0.0
        %3627 = vmatprep.subr.mxu0 0.0
        %3628 = vmatpush2.msra.mxu0 0.0
        %3629 = vmatprep.subr.mxu0 0.0
        %3630 = vmatpush2.msra.mxu0 0.0
        %3631 = vmatprep.subr.mxu0 0.0
        %3632 = vmatpush2.msra.mxu0 0.0
        %3633 = vmatprep.subr.mxu0 0.0
        %3634 = vmatpush2.msra.mxu0 0.0
        %3635 = vmatprep.subr.mxu0 0.0
        %3636 = vmatpush2.msra.mxu0 0.0
        %3637 = vmatprep.mubr.f32.mxu0 0.0
        %3638 = vmatmul.mubr.f32.gmra.mxu0 %v3571
        %v3639 = vpop.f32.mrf.mxu0
        %v3640 = vadd.f32 %v3567, %v3639
        %v3641 = vpop.f32.mrf.mxu0
        %3642 = vdwg.mxu0
        %v3643 = vadd.f32 %v3468, %v3640
        %v3644 = vld [vmem:[%s1299] sm:$0x1]
        %v3645 = vld [vmem:[%s1307] sm:$0x1]
        %v3646 = vsel %vm1530, %v3643, 0.0
        %3647 = vadd.xlane.f32.xlu0 %v3646
        %v3648 = vpop.xlane.xlu0 %3647
        %v3649 = vmul.f32 %v3648, %v2408
        %v3650 = vsub.f32 %v3643, %v3649
        %v3651 = vmul.f32 %v3650, %v3650
        %v3652 = vsel %vm1530, %v3651, 0.0
        %3653 = vadd.xlane.f32.xlu0 %v3652
        %v3654 = vpop.xlane.xlu0 %3653
        %v3655 = vmul.f32 %v3654, %v2408
        %v3656 = vadd.f32 %v3655, 1e-05
        %v3657 = vrsqrt.pop %v3656
        %v3658 = vmul.f32 %v3650, %v3657
        %v3660 = vlaneseq
        %v3661 = vshrl.u32 %v3660, 7
        %v3662 = vsub.s32 0, %v3661
        %v3663 = vrot.slane %v3644, %v3662
        %v3665 = vmul.f32 %v3658, %v3663
        %v3667 = vlaneseq
        %v3668 = vshrl.u32 %v3667, 7
        %v3669 = vsub.s32 0, %v3668
        %v3670 = vrot.slane %v3645, %v3669
        %v3672 = vadd.f32 %v3665, %v3670
        %3673 = vst.msk [vmem:[#allocation2] sm:$0xff] %vm1530, %v3672
        %p3674 = scmp.eq.s32.totalorder %s74, 1
        // Predicated region
        $region213: #{pallas_decoder_forward.1} parent=123 // pred_check
          %p3675 = pneg %p3674
        $region214: #{pallas_decoder_forward.1} parent=123 // pred_check_branch
          %3677 = sbr.rel (%p3675) target = $region216
        $region215: #{pallas_decoder_forward.1} parent=123 // pred_region
          %v3678 = vld [vmem:[#allocation34] sm:$0x1]
          %v3679 = vld [vmem:[#allocation36] sm:$0x1]
          %v3680 = vsel %vm1530, %v3672, 0.0
          %3681 = vadd.xlane.f32.xlu0 %v3680
          %v3682 = vpop.xlane.xlu0 %3681
          %v3683 = vmul.f32 %v3682, %v2408
          %v3684 = vsub.f32 %v3672, %v3683
          %v3685 = vmul.f32 %v3684, %v3684
          %v3686 = vsel %vm1530, %v3685, 0.0
          %3687 = vadd.xlane.f32.xlu0 %v3686
          %v3688 = vpop.xlane.xlu0 %3687
          %v3689 = vmul.f32 %v3688, %v2408
          %v3690 = vadd.f32 %v3689, 1e-05
          %v3691 = vrsqrt.pop %v3690
          %v3692 = vmul.f32 %v3684, %v3691
          %v3694 = vlaneseq
          %v3695 = vshrl.u32 %v3694, 7
          %v3696 = vsub.s32 0, %v3695
          %v3697 = vrot.slane %v3678, %v3696
          %v3699 = vmul.f32 %v3692, %v3697
          %v3701 = vlaneseq
          %v3702 = vshrl.u32 %v3701, 7
          %v3703 = vsub.s32 0, %v3702
          %v3704 = vrot.slane %v3679, %v3703
          %v3706 = vadd.f32 %v3699, %v3704
          %v3707 = vld [vmem:[#allocation37] sm:$0xff]
          %v3708 = vld [vmem:[#allocation37 + $0x8] sm:$0xff]
          %v3709 = vld [vmem:[#allocation37 + $0x10] sm:$0xff]
          %v3710 = vld [vmem:[#allocation37 + $0x18] sm:$0xff]
          %v3711 = vld [vmem:[#allocation39] sm:$0x1]
          %v3713 = vlaneseq
          %v3714 = vshrl.u32 %v3713, 7
          %v3715 = vsub.s32 0, %v3714
          %v3716 = vrot.slane %v3711, %v3715
          %v3719 = vsel %vm1530, %v3706, 0
          %3721 = vmatprep.subr.mxu0 0.0
          %3722 = vmatpush1.msra.mxu0 0.0
          %3723 = vmatprep.subr.mxu0 0.0
          %3724 = vmatpush1.msra.mxu0 0.0
          %3725 = vmatprep.subr.mxu0 0.0
          %3726 = vmatpush1.msra.mxu0 0.0
          %3727 = vmatprep.subr.mxu0 0.0
          %3728 = vmatpush1.msra.mxu0 0.0
          %3729 = vmatprep.subr.mxu0 0.0
          %3730 = vmatpush1.msra.mxu0 0.0
          %3731 = vmatprep.subr.mxu0 0.0
          %3732 = vmatpush1.msra.mxu0 0.0
          %3733 = vmatprep.subr.mxu0 0.0
          %3734 = vmatpush1.msra.mxu0 0.0
          %3735 = vmatprep.subr.mxu0 0.0
          %3736 = vmatpush1.msra.mxu0 0.0
          %3737 = vmatprep.subr.mxu0 0.0
          %3738 = vmatpush1.msra.mxu0 0.0
          %3739 = vmatprep.subr.mxu0 0.0
          %3740 = vmatpush1.msra.mxu0 0.0
          %3741 = vmatprep.subr.mxu0 0.0
          %3742 = vmatpush1.msra.mxu0 0.0
          %3743 = vmatprep.subr.mxu0 0.0
          %3744 = vmatpush1.msra.mxu0 0.0
          %3745 = vmatprep.subr.mxu0 0.0
          %3746 = vmatpush1.msra.mxu0 %v3710
          %3747 = vmatprep.subr.mxu0 0.0
          %3748 = vmatpush1.msra.mxu0 %v3709
          %3749 = vmatprep.subr.mxu0 0.0
          %3750 = vmatpush1.msra.mxu0 %v3708
          %3751 = vmatprep.subr.mxu0 0.0
          %3752 = vmatpush1.msra.mxu0 %v3707
          %3753 = vmatprep.subr.mxu0 0.0
          %3754 = vmatpush2.msra.mxu0 0.0
          %3755 = vmatprep.subr.mxu0 0.0
          %3756 = vmatpush2.msra.mxu0 0.0
          %3757 = vmatprep.subr.mxu0 0.0
          %3758 = vmatpush2.msra.mxu0 0.0
          %3759 = vmatprep.subr.mxu0 0.0
          %3760 = vmatpush2.msra.mxu0 0.0
          %3761 = vmatprep.subr.mxu0 0.0
          %3762 = vmatpush2.msra.mxu0 0.0
          %3763 = vmatprep.subr.mxu0 0.0
          %3764 = vmatpush2.msra.mxu0 0.0
          %3765 = vmatprep.subr.mxu0 0.0
          %3766 = vmatpush2.msra.mxu0 0.0
          %3767 = vmatprep.subr.mxu0 0.0
          %3768 = vmatpush2.msra.mxu0 0.0
          %3769 = vmatprep.subr.mxu0 0.0
          %3770 = vmatpush2.msra.mxu0 0.0
          %3771 = vmatprep.subr.mxu0 0.0
          %3772 = vmatpush2.msra.mxu0 0.0
          %3773 = vmatprep.subr.mxu0 0.0
          %3774 = vmatpush2.msra.mxu0 0.0
          %3775 = vmatprep.subr.mxu0 0.0
          %3776 = vmatpush2.msra.mxu0 0.0
          %3777 = vmatprep.subr.mxu0 0.0
          %3778 = vmatpush2.msra.mxu0 0.0
          %3779 = vmatprep.subr.mxu0 0.0
          %3780 = vmatpush2.msra.mxu0 0.0
          %3781 = vmatprep.subr.mxu0 0.0
          %3782 = vmatpush2.msra.mxu0 0.0
          %3783 = vmatprep.subr.mxu0 0.0
          %3784 = vmatpush2.msra.mxu0 0.0
          %3785 = vmatprep.mubr.f32.mxu0 0.0
          %3786 = vmatmul.mubr.f32.gmra.mxu0 %v3719
          %v3787 = vpop.f32.mrf.mxu0
          %v3788 = vadd.f32 %v3716, %v3787
          %v3789 = vpop.f32.mrf.mxu0
          %3790 = vdwg.mxu0
          %3791 = vst [vmem:[%s1483] sm:$0xff] %v3788
        $region216: #{pallas_decoder_forward.1} parent=123 // pred_fallthru
          _
        %s3792 = sand.u32 %s745, 1
        %s3793 = scalar_lea.sflag [#allocation9], %s3792
        %s3794 = sand.u32 %s745, 1
        %s3795 = smul.addr %s3794, 8
        %s3796 = scalar_lea.vmem [#allocation40], %s3795
        // Predicated region
        $region217: #{pallas_decoder_forward.1} parent=123 // pred_check
          %p3797 = pneg %p755
        $region218: #{pallas_decoder_forward.1} parent=123 // pred_check_branch
          %3799 = sbr.rel (%p3797) target = $region220
        $region219: #{pallas_decoder_forward.1} parent=123 // pred_region
          %s3801 = ssub.s32 128, 128
          %3802 = vsyncadd %s3793, %s3801
          %s3803 = smul.addr %s73, 128
          %s3804 = scalar_lea.hbm %s26, %s3803
          %s3806 = sshll.u32 %s3796, 4
          %s3807 = int_to_ptr.vmem [resolvable:$true] %s3806
          %3809 = dma.vmem_to_hbm [thread:$0]  %s3807, 128, %s3804, %s3793
        $region220: #{pallas_decoder_forward.1} parent=123 // pred_fallthru
          _
      $region124: #{pallas_decoder_forward.1} parent=5 // pred_fallthru
        _
      %p3810 = scmp.le.s32.totalorder 2, %s64
      // Predicated region
      $region221: #{pallas_decoder_forward.1} parent=5 // pred_check
        %p3811 = pneg %p3810
      $region222: #{pallas_decoder_forward.1} parent=5 // pred_check_branch
        %3813 = sbr.rel (%p3811) target = $region224
      $region223: #{pallas_decoder_forward.1} parent=5 // pred_region
        %s3814 = ssub.s32 %s64, 2
        // Predicated region
        $region225: #{pallas_decoder_forward.1} parent=223 // pred_check
          %p3815 = pneg %p761
        $region226: #{pallas_decoder_forward.1} parent=223 // pred_check_branch
          %3817 = sbr.rel (%p3815) target = $region228
        $region227: #{pallas_decoder_forward.1} parent=223 // pred_region
          %s3818 = sand.u32 %s746, 1
          %s3819 = scalar_lea.sflag [#allocation9], %s3818
          %s3820 = sand.u32 %s746, 1
          %s3821 = smul.addr %s3820, 8
          %s3822 = scalar_lea.vmem [#allocation40], %s3821
          %3823 = dma.done %s3819, 128
        $region228: #{pallas_decoder_forward.1} parent=223 // pred_fallthru
          _
      $region224: #{pallas_decoder_forward.1} parent=5 // pred_fallthru
        _
    $region6: #{pallas_decoder_forward.1} parent=1 // loop_footer
      %s68 = sadd.s32 1, %s64
    $region7: #{pallas_decoder_forward.1} parent=1 // loop_footer_branch
      %63 = sbr.rel target = $region3
    $region8: #{pallas_decoder_forward.1} parent=1 // loop_exit
      _
    %3824 = vsyncpa [#allocation8], 1
    %s3825 = scalar_lea.sflag [#allocation8], 1
    %3826 = vsyncpa %s3825, 1
    %3827 = vsyncpa [#allocation11], 1
    %s3828 = scalar_lea.sflag [#allocation11], 1
    %3829 = vsyncpa %s3828, 1
    %3830 = vsyncpa [#allocation14], 1
    %s3831 = scalar_lea.sflag [#allocation14], 1
    %3832 = vsyncpa %s3831, 1
    %3833 = vsyncpa [#allocation17], 1
    %s3834 = scalar_lea.sflag [#allocation17], 1
    %3835 = vsyncpa %s3834, 1
    %3836 = vsyncpa [#allocation20], 1
    %s3837 = scalar_lea.sflag [#allocation20], 1
    %3838 = vsyncpa %s3837, 1
    %3839 = vsyncpa [#allocation23], 1
    %s3840 = scalar_lea.sflag [#allocation23], 1
    %3841 = vsyncpa %s3840, 1
    %3842 = vsyncpa [#allocation26], 1
    %s3843 = scalar_lea.sflag [#allocation26], 1
    %3844 = vsyncpa %s3843, 1
    %3845 = vsyncpa [#allocation29], 1
    %s3846 = scalar_lea.sflag [#allocation29], 1
    %3847 = vsyncpa %s3846, 1
    %3848 = vsyncpa [#allocation32], 1
    %s3849 = scalar_lea.sflag [#allocation32], 1
    %3850 = vsyncpa %s3849, 1
    %3851 = vsyncpa [#allocation35], 1
    %3852 = vsyncpa [#allocation38], 1
    %3853 = vsyncpa [#allocation9], 1
    %s3854 = scalar_lea.sflag [#allocation9], 1
    %3855 = vsyncpa %s3854, 1

</llo_original>
